<compile_context>
chip_gen: v7x
topology: tpu7x:2x2x1
jax: 0.10.0
libtpu: 0.0.40
codegen_flags: <defaults>
</compile_context>

<pallas_src>
import jax
import jax.numpy as jnp
from jax import lax
from jax.experimental import pallas as pl
from jax.experimental.pallas import tpu as pltpu


# --------------------------------------------------------------------------- #
# Generation-aware sizing helpers
# --------------------------------------------------------------------------- #

def _round_up(x, m):
    return ((x + m - 1) // m) * m


_VMEM_LIMIT_CACHE = [None]


def _vmem_limit_bytes():
    """Scoped-VMEM limit derived from the chip (v5e/v6e: 128 MiB, v7x: 64 MiB)."""
    if _VMEM_LIMIT_CACHE[0] is None:
        cap = None
        try:
            cap = getattr(pltpu.get_tpu_info(), "vmem_capacity_bytes", None)
        except Exception:
            cap = None
        if not cap:
            _VMEM_LIMIT_CACHE[0] = 32 * 1024 * 1024
        else:
            _VMEM_LIMIT_CACHE[0] = int(
                min(96 * 1024 * 1024, max(32 * 1024 * 1024, cap // 2)))
    return _VMEM_LIMIT_CACHE[0]


def _pick_cols(l, c):
    """Lane-dense spatial tile (multiple of 128 dividing l) for the gate pass."""
    if l % 128 != 0:
        return l                              # small / ragged maps: one full block
    per_col = (2 * c + 4) * 4 * 2             # in + out + z columns, double-buffered
    cap = max(128, (_vmem_limit_bytes() // 2) // per_col)
    if l <= cap:
        return l
    t = (min(cap, l) // 128) * 128
    while t >= 128:
        if l % t == 0:
            return t
        t -= 128
    return l


# --------------------------------------------------------------------------- #
# Kernel 1: ChannelPool + folded depthwise/pointwise 3x3 conv + IBN partials
# --------------------------------------------------------------------------- #

def _gate_front_kernel(g_ref, w2_ref, b2_ref, z_ref, zsum_ref, zsq_ref,
                       pad0_ref, pad1_ref):
    _, c, h, w = g_ref.shape

    # --- ChannelPool: max / mean over the channel axis (VPU elementwise) -----
    x0 = g_ref[0, 0, :, :]
    pmax = x0
    psum = x0
    for ci in range(1, c):
        xc = g_ref[0, ci, :, :]
        pmax = jnp.maximum(pmax, xc)
        psum = psum + xc
    pmean = psum * (1.0 / c)

    # --- Build the conv zero padding in VMEM (no wrapper-side pad / mask) ----
    # Interior placed at an (8,128)-aligned origin: the store needs no
    # lane/sublane shifting; padding zeros live in the surrounding border.
    pad0_ref[...] = jnp.zeros_like(pad0_ref)
    pad1_ref[...] = jnp.zeros_like(pad1_ref)
    pad0_ref[8:8 + h, 128:128 + w] = pmax
    pad1_ref[8:8 + h, 128:128 + w] = pmean

    # --- Fused depthwise(3x3, groups=2) + pointwise(1x1): 18 shifted FMAs ----
    w2 = w2_ref[...]                          # (2, 18) weight tile, hoisted once
    b2 = b2_ref[...]                          # (2, 1)  fused bias
    acc0 = jnp.zeros((h, w), jnp.float32) + b2[0:1, 0:1]
    acc1 = jnp.zeros((h, w), jnp.float32) + b2[1:2, 0:1]
    k = 0
    for pad_ref in (pad0_ref, pad1_ref):      # pooled channel 0 (max), 1 (mean)
        for i in range(3):
            for j in range(3):
                # static-offset load == padded_input[h+i, w+j] for the tile
                tap = pad_ref[7 + i:7 + i + h, 127 + j:127 + j + w]   # (h, w)
                acc0 = acc0 + w2[0:1, k:k + 1] * tap
                acc1 = acc1 + w2[1:2, k:k + 1] * tap
                k += 1

    z_ref[0, 0, :, :] = acc0
    z_ref[0, 1, :, :] = acc1

    # --- IBN partial statistics straight from the in-register accumulators ---
    zsum_ref[0, 0, :, :] = jnp.sum(acc0, axis=1, keepdims=True)
    zsum_ref[0, 1, :, :] = jnp.sum(acc1, axis=1, keepdims=True)
    zsq_ref[0, 0, :, :] = jnp.sum(acc0 * acc0, axis=1, keepdims=True)
    zsq_ref[0, 1, :, :] = jnp.sum(acc1 * acc1, axis=1, keepdims=True)


def _gate_front(g, w2, b2):
    n, c, h, w = g.shape
    hs = h + 16                               # aligned interior @ row 8, + halo
    ws = 128 + _round_up(w + 2, 128)          # aligned interior @ lane 128, + halo
    return pl.pallas_call(
        _gate_front_kernel,
        out_shape=(jax.ShapeDtypeStruct((n, 2, h, w), jnp.float32),
                   jax.ShapeDtypeStruct((n, 2, h, 1), jnp.float32),
                   jax.ShapeDtypeStruct((n, 2, h, 1), jnp.float32)),
        grid=(n,),
        in_specs=[
            pl.BlockSpec((1, c, h, w), lambda i: (i, 0, 0, 0)),
            pl.BlockSpec((2, 18), lambda i: (0, 0)),
            pl.BlockSpec((2, 1), lambda i: (0, 0)),
        ],
        out_specs=(
            pl.BlockSpec((1, 2, h, w), lambda i: (i, 0, 0, 0)),
            pl.BlockSpec((1, 2, h, 1), lambda i: (i, 0, 0, 0)),
            pl.BlockSpec((1, 2, h, 1), lambda i: (i, 0, 0, 0)),
        ),
        scratch_shapes=[pltpu.VMEM((hs, ws), jnp.float32),
                        pltpu.VMEM((hs, ws), jnp.float32)],
        compiler_params=pltpu.CompilerParams(
            dimension_semantics=("parallel",),
            vmem_limit_bytes=_vmem_limit_bytes()),
    )(g, w2, b2)


# --------------------------------------------------------------------------- #
# Kernel 2: fused IBN+1x1-conv affine, sigmoid, and x * gate  (lane-dense)
# --------------------------------------------------------------------------- #

def _gate_apply_kernel(g_ref, z_ref, a_ref, b_ref, o_ref):
    z0 = z_ref[0, 0:1, :]                      # (1, T)
    z1 = z_ref[0, 1:2, :]                      # (1, T)
    a = a_ref[0, :, :]                         # (2, 1)
    b = b_ref[0, :, :]                         # (1, 1)
    gate = jax.nn.sigmoid(z0 * a[0:1, :] + z1 * a[1:2, :] + b)   # (1, T)
    o_ref[0, :, :] = g_ref[0, :, :] * gate     # (C, T) * (1, T)


def _gate_apply(g2, z2, a, b):
    n, c, l = g2.shape
    t = _pick_cols(l, c)
    return pl.pallas_call(
        _gate_apply_kernel,
        out_shape=jax.ShapeDtypeStruct((n, c, l), jnp.float32),
        grid=(n, l // t),
        in_specs=[
            pl.BlockSpec((1, c, t), lambda i, s: (i, 0, s)),
            pl.BlockSpec((1, 2, t), lambda i, s: (i, 0, s)),
            pl.BlockSpec((1, 2, 1), lambda i, s: (i, 0, 0)),
            pl.BlockSpec((1, 1, 1), lambda i, s: (i, 0, 0)),
        ],
        out_specs=pl.BlockSpec((1, c, t), lambda i, s: (i, 0, s)),
        compiler_params=pltpu.CompilerParams(
            dimension_semantics=("parallel", "parallel"),
            vmem_limit_bytes=_vmem_limit_bytes()),
    )(g2, z2, a, b)


# --------------------------------------------------------------------------- #
# SpatialGate / TripletAttentionsange modules
# --------------------------------------------------------------------------- #

class SpatialGatePallas:
    """ChannelPool -> DW-separable conv -> BasicConv(IBN, 1x1, no relu) -> gate."""

    def __init__(self, key):
        ks = jax.random.split(key, 9)
        self.dw_w = 0.3 * jax.random.normal(ks[0], (2, 1, 3, 3), jnp.float32)
        self.dw_b = 0.1 * jax.random.normal(ks[1], (2,), jnp.float32)
        self.pw_w = 0.3 * jax.random.normal(ks[2], (2, 2, 1, 1), jnp.float32)
        self.pw_b = 0.1 * jax.random.normal(ks[3], (2,), jnp.float32)
        # IBN(2): InstanceNorm2d(1, affine=True) half + BatchNorm2d(1) half.
        self.in_g = 1.0 + 0.1 * jax.random.normal(ks[4], (1,), jnp.float32)
        self.in_b = 0.1 * jax.random.normal(ks[5], (1,), jnp.float32)
        self.bn_g = 1.0 + 0.1 * jax.random.normal(ks[6], (1,), jnp.float32)
        self.bn_b = 0.1 * jax.random.normal(ks[7], (1,), jnp.float32)
        self.sp_w = 0.5 * jax.random.normal(ks[8], (1, 2, 1, 1), jnp.float32)
        # Fold depthwise+pointwise into one dense 2->2 3x3 stencil (18 taps):
        #   W2[o,c,i,j] = pw_w[o,c] * dw_w[c,i,j];  B2[o] = pw_b[o] + pw_w[o,:]@dw_b
        pw = self.pw_w[:, :, 0, 0]
        self.w2 = (pw[:, :, None, None] * self.dw_w[:, 0][None]).reshape(2, 18)
        self.b2 = (self.pw_b + pw @ self.dw_b).reshape(2, 1)

    def __call__(self, g):
        g = g.astype(jnp.float32)
        n, c, h, w = g.shape
        z, zsum, zsq = _gate_front(g, self.w2, self.b2)

        # IBN scale/shift folded with BasicConv's 1x1 conv => per-sample affine
        # a.z + b.  (O(batch) scalar math; the BatchNorm half needs the full
        # cross-batch reduction so it has to sit between the two Pallas passes.
        # Single-pass variance is fine here: values are O(1) in f32.)
        eps = 1e-5
        cnt = float(h * w)
        s = zsum.reshape(n, 2, h).sum(axis=-1)          # (N, 2)
        q = zsq.reshape(n, 2, h).sum(axis=-1)           # (N, 2)
        mean0 = s[:, 0] / cnt                           # InstanceNorm half (per-n)
        var0 = q[:, 0] / cnt - mean0 * mean0
        sc0 = self.in_g[0] * lax.rsqrt(var0 + eps)
        sh0 = self.in_b[0] - mean0 * sc0
        bmean = s[:, 1].sum() / (cnt * n)               # BatchNorm half (batch stats)
        bvar = q[:, 1].sum() / (cnt * n) - bmean * bmean
        sc1 = self.bn_g[0] * lax.rsqrt(bvar + eps)
        sh1 = self.bn_b[0] - bmean * sc1
        w0 = self.sp_w[0, 0, 0, 0]
        w1 = self.sp_w[0, 1, 0, 0]
        a = jnp.stack([w0 * sc0, jnp.broadcast_to(w1 * sc1, (n,))], axis=1)  # (N, 2)
        b = w0 * sh0 + w1 * sh1                                              # (N,)

        out = _gate_apply(g.reshape(n, c, h * w), z.reshape(n, 2, h * w),
                          a.reshape(n, 2, 1), b.reshape(n, 1, 1))
        return out.reshape(n, c, h, w)


class TripletAttentionsangePallas:
    """Three SpatialGates applied over permuted views of x and y."""

    def __init__(self, gate_channels, reduction_ratio=16,
                 pool_types=("avg", "max"), no_spatial=False, *, key):
        del gate_channels, reduction_ratio, pool_types  # unused by the gates
        # TODO(synk): no_spatial=True leaves x_out undefined in the PyTorch
        #             forward (it would raise); only the default path is modeled.
        assert not no_spatial
        kh, kw, ks = jax.random.split(key, 3)
        self.gate_h = SpatialGatePallas(kh)   # ChannelGateH
        self.gate_w = SpatialGatePallas(kw)   # ChannelGateW
        self.gate_s = SpatialGatePallas(ks)   # SpatialGate

    def __call__(self, x, y):
        x = x.astype(jnp.float32)
        y = y.astype(jnp.float32)
        # Channel<->spatial permutes are pure layout; left to XLA transposes,
        # matching PyTorch's .permute(...).contiguous().
        x_out11 = jnp.transpose(
            self.gate_h(jnp.transpose(x, (0, 2, 1, 3))), (0, 2, 1, 3))
        x_out21 = jnp.transpose(
            self.gate_w(jnp.transpose(x, (0, 3, 2, 1))), (0, 3, 2, 1))
        y_out11 = jnp.transpose(
            self.gate_h(jnp.transpose(y, (0, 2, 1, 3))), (0, 2, 1, 3))
        y_out21 = jnp.transpose(
            self.gate_w(jnp.transpose(y, (0, 3, 2, 1))), (0, 3, 2, 1))
        y_out = self.gate_s(y)
        x_out = self.gate_s(x)
        # (x_out1 = (x_out + x_out11 + x_out21)/3 is computed but NOT returned
        #  by the PyTorch forward, so it is omitted.)
        return (x_out, x_out11, x_out21, y_out, y_out11, y_out21)


# --------------------------------------------------------------------------- #
# Pure-JAX reference (mirrors the PyTorch modules, training-mode norms)
# --------------------------------------------------------------------------- #

def _spatial_gate_reference(g, sg, eps=1e-5):
    g = g.astype(jnp.float32)
    pooled = jnp.concatenate(
        [jnp.max(g, axis=1, keepdims=True), jnp.mean(g, axis=1, keepdims=True)],
        axis=1)
    d = lax.conv_general_dilated(
        pooled, sg.dw_w, (1, 1), [(1, 1), (1, 1)],
        dimension_numbers=("NCHW", "OIHW", "NCHW"),
        feature_group_count=2, precision=lax.Precision.HIGHEST)
    d = d + sg.dw_b.reshape(1, -1, 1, 1)
    z = lax.conv_general_dilated(
        d, sg.pw_w, (1, 1), [(0, 0), (0, 0)],
        dimension_numbers=("NCHW", "OIHW", "NCHW"),
        precision=lax.Precision.HIGHEST)
    z = z + sg.pw_b.reshape(1, -1, 1, 1)
    z0, z1 = z[:, :1], z[:, 1:]
    mu0 = z0.mean(axis=(2, 3), keepdims=True)
    v0 = ((z0 - mu0) ** 2).mean(axis=(2, 3), keepdims=True)
    y0 = ((z0 - mu0) / jnp.sqrt(v0 + eps) * sg.in_g.reshape(1, -1, 1, 1)
          + sg.in_b.reshape(1, -1, 1, 1))
    mu1 = z1.mean(axis=(0, 2, 3), keepdims=True)
    v1 = ((z1 - mu1) ** 2).mean(axis=(0, 2, 3), keepdims=True)
    y1 = ((z1 - mu1) / jnp.sqrt(v1 + eps) * sg.bn_g.reshape(1, -1, 1, 1)
          + sg.bn_b.reshape(1, -1, 1, 1))
    yn = jnp.concatenate([y0, y1], axis=1)
    v = lax.conv_general_dilated(
        yn, sg.sp_w, (1, 1), [(0, 0), (0, 0)],
        dimension_numbers=("NCHW", "OIHW", "NCHW"),
        precision=lax.Precision.HIGHEST)
    return g * jax.nn.sigmoid(v)


def _triplet_reference(x, y, m):
    x = x.astype(jnp.float32)
    y = y.astype(jnp.float32)
    x_out11 = jnp.transpose(_spatial_gate_reference(
        jnp.transpose(x, (0, 2, 1, 3)), m.gate_h), (0, 2, 1, 3))
    x_out21 = jnp.transpose(_spatial_gate_reference(
        jnp.transpose(x, (0, 3, 2, 1)), m.gate_w), (0, 3, 2, 1))
    y_out11 = jnp.transpose(_spatial_gate_reference(
        jnp.transpose(y, (0, 2, 1, 3)), m.gate_h), (0, 2, 1, 3))
    y_out21 = jnp.transpose(_spatial_gate_reference(
        jnp.transpose(y, (0, 3, 2, 1)), m.gate_w), (0, 3, 2, 1))
    y_out = _spatial_gate_reference(y, m.gate_s)
    x_out = _spatial_gate_reference(x, m.gate_s)
    return (x_out, x_out11, x_out21, y_out, y_out11, y_out21)


# --------------------------------------------------------------------------- #
# main
# --------------------------------------------------------------------------- #

if __name__ == "__main__":
    root = jax.random.PRNGKey(0)
    kx, ky, kp = jax.random.split(root, 3)
    x = jax.random.normal(kx, (2, 4, 16, 16), dtype=jnp.float32)
    y = jax.random.normal(ky, (2, 4, 16, 16), dtype=jnp.float32)

    module = TripletAttentionsangePallas(gate_channels=4, key=kp)

    fwd = jax.jit(lambda xa, ya: module(xa, ya))
    outs = jax.block_until_ready(fwd(x, y))

    refs = jax.block_until_ready(_triplet_reference(x, y, module))
    names = ("x_out", "x_out11", "x_out21", "y_out", "y_out11", "y_out21")
    for name, got, ref in zip(names, outs, refs):
        assert got.shape == (2, 4, 16, 16), (name, got.shape)
        err = float(jnp.max(jnp.abs(got - ref)))
        assert err < 2e-3, (name, err)

    print("KERNEL_OK")
</pallas_src>

<mosaic_0001>
module attributes {stable_mosaic.version = 11 : i64} {
  func.func @_gate_front_kernel(%arg0: i32, %arg1: memref<1x16x4x16xf32, #tpu.memory_space<vmem>>, %arg2: memref<2x18xf32, #tpu.memory_space<vmem>>, %arg3: memref<2x1xf32, #tpu.memory_space<vmem>>, %arg4: memref<1x2x4x16xf32, #tpu.memory_space<vmem>>, %arg5: memref<1x2x4x1xf32, #tpu.memory_space<vmem>>, %arg6: memref<1x2x4x1xf32, #tpu.memory_space<vmem>>, %arg7: memref<20x256xf32, #tpu.memory_space<vmem>>, %arg8: memref<20x256xf32, #tpu.memory_space<vmem>>) attributes {dimension_semantics = [#tpu.dimension_semantics<parallel>], iteration_bounds = array<i64: 2>, scalar_prefetch = 0 : i64, scratch_operands = 2 : i64, tpu.core_type = #tpu.core_type<tc>, window_params = [{transform_indices = @transform_0, window_bounds = array<i64: 1, 16, 4, 16>}, {pipeline_mode = #tpu.pipeline_mode<synchronous>, transform_indices = @transform_1, window_bounds = array<i64: 2, 18>}, {pipeline_mode = #tpu.pipeline_mode<synchronous>, transform_indices = @transform_2, window_bounds = array<i64: 2, 1>}, {transform_indices = @transform_3, window_bounds = array<i64: 1, 2, 4, 16>}, {transform_indices = @transform_4, window_bounds = array<i64: 1, 2, 4, 1>}, {transform_indices = @transform_5, window_bounds = array<i64: 1, 2, 4, 1>}]} {
    %c0 = arith.constant 0 : index
    %c0_0 = arith.constant 0 : index
    %c0_1 = arith.constant 0 : index
    %c0_2 = arith.constant 0 : index
    %0 = vector.load %arg1[%c0, %c0_0, %c0_1, %c0_2] : memref<1x16x4x16xf32, #tpu.memory_space<vmem>>, vector<1x1x4x16xf32>
    %1 = vector.shape_cast %0 : vector<1x1x4x16xf32> to vector<4x16xf32>
    %c0_3 = arith.constant 0 : index
    %c1 = arith.constant 1 : index
    %c0_4 = arith.constant 0 : index
    %c0_5 = arith.constant 0 : index
    %2 = vector.load %arg1[%c0_3, %c1, %c0_4, %c0_5] : memref<1x16x4x16xf32, #tpu.memory_space<vmem>>, vector<1x1x4x16xf32>
    %3 = vector.shape_cast %2 : vector<1x1x4x16xf32> to vector<4x16xf32>
    %4 = arith.maximumf %1, %3 : vector<4x16xf32>
    %5 = arith.addf %1, %3 : vector<4x16xf32>
    %c0_6 = arith.constant 0 : index
    %c2 = arith.constant 2 : index
    %c0_7 = arith.constant 0 : index
    %c0_8 = arith.constant 0 : index
    %6 = vector.load %arg1[%c0_6, %c2, %c0_7, %c0_8] : memref<1x16x4x16xf32, #tpu.memory_space<vmem>>, vector<1x1x4x16xf32>
    %7 = vector.shape_cast %6 : vector<1x1x4x16xf32> to vector<4x16xf32>
    %8 = arith.maximumf %4, %7 : vector<4x16xf32>
    %9 = arith.addf %5, %7 : vector<4x16xf32>
    %c0_9 = arith.constant 0 : index
    %c3 = arith.constant 3 : index
    %c0_10 = arith.constant 0 : index
    %c0_11 = arith.constant 0 : index
    %10 = vector.load %arg1[%c0_9, %c3, %c0_10, %c0_11] : memref<1x16x4x16xf32, #tpu.memory_space<vmem>>, vector<1x1x4x16xf32>
    %11 = vector.shape_cast %10 : vector<1x1x4x16xf32> to vector<4x16xf32>
    %12 = arith.maximumf %8, %11 : vector<4x16xf32>
    %13 = arith.addf %9, %11 : vector<4x16xf32>
    %c0_12 = arith.constant 0 : index
    %c4 = arith.constant 4 : index
    %c0_13 = arith.constant 0 : index
    %c0_14 = arith.constant 0 : index
    %14 = vector.load %arg1[%c0_12, %c4, %c0_13, %c0_14] : memref<1x16x4x16xf32, #tpu.memory_space<vmem>>, vector<1x1x4x16xf32>
    %15 = vector.shape_cast %14 : vector<1x1x4x16xf32> to vector<4x16xf32>
    %16 = arith.maximumf %12, %15 : vector<4x16xf32>
    %17 = arith.addf %13, %15 : vector<4x16xf32>
    %c0_15 = arith.constant 0 : index
    %c5 = arith.constant 5 : index
    %c0_16 = arith.constant 0 : index
    %c0_17 = arith.constant 0 : index
    %18 = vector.load %arg1[%c0_15, %c5, %c0_16, %c0_17] : memref<1x16x4x16xf32, #tpu.memory_space<vmem>>, vector<1x1x4x16xf32>
    %19 = vector.shape_cast %18 : vector<1x1x4x16xf32> to vector<4x16xf32>
    %20 = arith.maximumf %16, %19 : vector<4x16xf32>
    %21 = arith.addf %17, %19 : vector<4x16xf32>
    %c0_18 = arith.constant 0 : index
    %c6 = arith.constant 6 : index
    %c0_19 = arith.constant 0 : index
    %c0_20 = arith.constant 0 : index
    %22 = vector.load %arg1[%c0_18, %c6, %c0_19, %c0_20] : memref<1x16x4x16xf32, #tpu.memory_space<vmem>>, vector<1x1x4x16xf32>
    %23 = vector.shape_cast %22 : vector<1x1x4x16xf32> to vector<4x16xf32>
    %24 = arith.maximumf %20, %23 : vector<4x16xf32>
    %25 = arith.addf %21, %23 : vector<4x16xf32>
    %c0_21 = arith.constant 0 : index
    %c7 = arith.constant 7 : index
    %c0_22 = arith.constant 0 : index
    %c0_23 = arith.constant 0 : index
    %26 = vector.load %arg1[%c0_21, %c7, %c0_22, %c0_23] : memref<1x16x4x16xf32, #tpu.memory_space<vmem>>, vector<1x1x4x16xf32>
    %27 = vector.shape_cast %26 : vector<1x1x4x16xf32> to vector<4x16xf32>
    %28 = arith.maximumf %24, %27 : vector<4x16xf32>
    %29 = arith.addf %25, %27 : vector<4x16xf32>
    %c0_24 = arith.constant 0 : index
    %c8 = arith.constant 8 : index
    %c0_25 = arith.constant 0 : index
    %c0_26 = arith.constant 0 : index
    %30 = vector.load %arg1[%c0_24, %c8, %c0_25, %c0_26] : memref<1x16x4x16xf32, #tpu.memory_space<vmem>>, vector<1x1x4x16xf32>
    %31 = vector.shape_cast %30 : vector<1x1x4x16xf32> to vector<4x16xf32>
    %32 = arith.maximumf %28, %31 : vector<4x16xf32>
    %33 = arith.addf %29, %31 : vector<4x16xf32>
    %c0_27 = arith.constant 0 : index
    %c9 = arith.constant 9 : index
    %c0_28 = arith.constant 0 : index
    %c0_29 = arith.constant 0 : index
    %34 = vector.load %arg1[%c0_27, %c9, %c0_28, %c0_29] : memref<1x16x4x16xf32, #tpu.memory_space<vmem>>, vector<1x1x4x16xf32>
    %35 = vector.shape_cast %34 : vector<1x1x4x16xf32> to vector<4x16xf32>
    %36 = arith.maximumf %32, %35 : vector<4x16xf32>
    %37 = arith.addf %33, %35 : vector<4x16xf32>
    %c0_30 = arith.constant 0 : index
    %c10 = arith.constant 10 : index
    %c0_31 = arith.constant 0 : index
    %c0_32 = arith.constant 0 : index
    %38 = vector.load %arg1[%c0_30, %c10, %c0_31, %c0_32] : memref<1x16x4x16xf32, #tpu.memory_space<vmem>>, vector<1x1x4x16xf32>
    %39 = vector.shape_cast %38 : vector<1x1x4x16xf32> to vector<4x16xf32>
    %40 = arith.maximumf %36, %39 : vector<4x16xf32>
    %41 = arith.addf %37, %39 : vector<4x16xf32>
    %c0_33 = arith.constant 0 : index
    %c11 = arith.constant 11 : index
    %c0_34 = arith.constant 0 : index
    %c0_35 = arith.constant 0 : index
    %42 = vector.load %arg1[%c0_33, %c11, %c0_34, %c0_35] : memref<1x16x4x16xf32, #tpu.memory_space<vmem>>, vector<1x1x4x16xf32>
    %43 = vector.shape_cast %42 : vector<1x1x4x16xf32> to vector<4x16xf32>
    %44 = arith.maximumf %40, %43 : vector<4x16xf32>
    %45 = arith.addf %41, %43 : vector<4x16xf32>
    %c0_36 = arith.constant 0 : index
    %c12 = arith.constant 12 : index
    %c0_37 = arith.constant 0 : index
    %c0_38 = arith.constant 0 : index
    %46 = vector.load %arg1[%c0_36, %c12, %c0_37, %c0_38] : memref<1x16x4x16xf32, #tpu.memory_space<vmem>>, vector<1x1x4x16xf32>
    %47 = vector.shape_cast %46 : vector<1x1x4x16xf32> to vector<4x16xf32>
    %48 = arith.maximumf %44, %47 : vector<4x16xf32>
    %49 = arith.addf %45, %47 : vector<4x16xf32>
    %c0_39 = arith.constant 0 : index
    %c13 = arith.constant 13 : index
    %c0_40 = arith.constant 0 : index
    %c0_41 = arith.constant 0 : index
    %50 = vector.load %arg1[%c0_39, %c13, %c0_40, %c0_41] : memref<1x16x4x16xf32, #tpu.memory_space<vmem>>, vector<1x1x4x16xf32>
    %51 = vector.shape_cast %50 : vector<1x1x4x16xf32> to vector<4x16xf32>
    %52 = arith.maximumf %48, %51 : vector<4x16xf32>
    %53 = arith.addf %49, %51 : vector<4x16xf32>
    %c0_42 = arith.constant 0 : index
    %c14 = arith.constant 14 : index
    %c0_43 = arith.constant 0 : index
    %c0_44 = arith.constant 0 : index
    %54 = vector.load %arg1[%c0_42, %c14, %c0_43, %c0_44] : memref<1x16x4x16xf32, #tpu.memory_space<vmem>>, vector<1x1x4x16xf32>
    %55 = vector.shape_cast %54 : vector<1x1x4x16xf32> to vector<4x16xf32>
    %56 = arith.maximumf %52, %55 : vector<4x16xf32>
    %57 = arith.addf %53, %55 : vector<4x16xf32>
    %c0_45 = arith.constant 0 : index
    %c15 = arith.constant 15 : index
    %c0_46 = arith.constant 0 : index
    %c0_47 = arith.constant 0 : index
    %58 = vector.load %arg1[%c0_45, %c15, %c0_46, %c0_47] : memref<1x16x4x16xf32, #tpu.memory_space<vmem>>, vector<1x1x4x16xf32>
    %59 = vector.shape_cast %58 : vector<1x1x4x16xf32> to vector<4x16xf32>
    %60 = arith.maximumf %56, %59 : vector<4x16xf32>
    %61 = arith.addf %57, %59 : vector<4x16xf32>
    %cst = arith.constant 6.250000e-02 : f32
    %62 = vector.broadcast %cst : f32 to vector<4x16xf32>
    %63 = arith.mulf %61, %62 : vector<4x16xf32>
    %cst_48 = arith.constant 0.000000e+00 : f32
    %64 = vector.broadcast %cst_48 : f32 to vector<20x256xf32>
    %c0_49 = arith.constant 0 : index
    %c0_50 = arith.constant 0 : index
    %65 = vector.load %arg7[%c0_49, %c0_50] : memref<20x256xf32, #tpu.memory_space<vmem>>, vector<20x256xf32>
    tpu.vector_store %arg7[%c0_49, %c0_50], %64 {strides = array<i32>} : memref<20x256xf32, #tpu.memory_space<vmem>>, vector<20x256xf32>,
    %cst_51 = arith.constant 0.000000e+00 : f32
    %66 = vector.broadcast %cst_51 : f32 to vector<20x256xf32>
    %c0_52 = arith.constant 0 : index
    %c0_53 = arith.constant 0 : index
    %67 = vector.load %arg8[%c0_52, %c0_53] : memref<20x256xf32, #tpu.memory_space<vmem>>, vector<20x256xf32>
    tpu.vector_store %arg8[%c0_52, %c0_53], %66 {strides = array<i32>} : memref<20x256xf32, #tpu.memory_space<vmem>>, vector<20x256xf32>,
    %c8_54 = arith.constant 8 : index
    %c128 = arith.constant 128 : index
    %68 = vector.load %arg7[%c8_54, %c128] : memref<20x256xf32, #tpu.memory_space<vmem>>, vector<4x16xf32>
    tpu.vector_store %arg7[%c8_54, %c128], %60 {strides = array<i32>} : memref<20x256xf32, #tpu.memory_space<vmem>>, vector<4x16xf32>,
    %c8_55 = arith.constant 8 : index
    %c128_56 = arith.constant 128 : index
    %69 = vector.load %arg8[%c8_55, %c128_56] : memref<20x256xf32, #tpu.memory_space<vmem>>, vector<4x16xf32>
    tpu.vector_store %arg8[%c8_55, %c128_56], %63 {strides = array<i32>} : memref<20x256xf32, #tpu.memory_space<vmem>>, vector<4x16xf32>,
    %c0_57 = arith.constant 0 : index
    %c0_58 = arith.constant 0 : index
    %70 = vector.load %arg2[%c0_57, %c0_58] : memref<2x18xf32, #tpu.memory_space<vmem>>, vector<2x18xf32>
    %c0_59 = arith.constant 0 : index
    %c0_60 = arith.constant 0 : index
    %71 = vector.load %arg3[%c0_59, %c0_60] : memref<2x1xf32, #tpu.memory_space<vmem>>, vector<2x1xf32>
    %cst_61 = arith.constant 0.000000e+00 : f32
    %72 = vector.broadcast %cst_61 : f32 to vector<4x16xf32>
    %73 = vector.extract_strided_slice %71 {offsets = [0, 0], sizes = [1, 1], strides = [1, 1]} : vector<2x1xf32> to vector<1x1xf32>
    %74 = vector.broadcast %73 : vector<1x1xf32> to vector<4x16xf32>
    %75 = arith.addf %72, %74 : vector<4x16xf32>
    %cst_62 = arith.constant 0.000000e+00 : f32
    %76 = vector.broadcast %cst_62 : f32 to vector<4x16xf32>
    %77 = vector.extract_strided_slice %71 {offsets = [1, 0], sizes = [1, 1], strides = [1, 1]} : vector<2x1xf32> to vector<1x1xf32>
    %78 = vector.broadcast %77 : vector<1x1xf32> to vector<4x16xf32>
    %79 = arith.addf %76, %78 : vector<4x16xf32>
    %c7_63 = arith.constant 7 : index
    %c127 = arith.constant 127 : index
    %80 = vector.load %arg7[%c7_63, %c127] : memref<20x256xf32, #tpu.memory_space<vmem>>, vector<4x16xf32>
    %81 = vector.extract_strided_slice %70 {offsets = [0, 0], sizes = [1, 1], strides = [1, 1]} : vector<2x18xf32> to vector<1x1xf32>
    %82 = vector.broadcast %81 : vector<1x1xf32> to vector<4x16xf32>
    %83 = arith.mulf %82, %80 : vector<4x16xf32>
    %84 = arith.addf %75, %83 : vector<4x16xf32>
    %85 = vector.extract_strided_slice %70 {offsets = [1, 0], sizes = [1, 1], strides = [1, 1]} : vector<2x18xf32> to vector<1x1xf32>
    %86 = vector.broadcast %85 : vector<1x1xf32> to vector<4x16xf32>
    %87 = arith.mulf %86, %80 : vector<4x16xf32>
    %88 = arith.addf %79, %87 : vector<4x16xf32>
    %c7_64 = arith.constant 7 : index
    %c128_65 = arith.constant 128 : index
    %89 = vector.load %arg7[%c7_64, %c128_65] : memref<20x256xf32, #tpu.memory_space<vmem>>, vector<4x16xf32>
    %90 = vector.extract_strided_slice %70 {offsets = [0, 1], sizes = [1, 1], strides = [1, 1]} : vector<2x18xf32> to vector<1x1xf32>
    %91 = vector.broadcast %90 : vector<1x1xf32> to vector<4x16xf32>
    %92 = arith.mulf %91, %89 : vector<4x16xf32>
    %93 = arith.addf %84, %92 : vector<4x16xf32>
    %94 = vector.extract_strided_slice %70 {offsets = [1, 1], sizes = [1, 1], strides = [1, 1]} : vector<2x18xf32> to vector<1x1xf32>
    %95 = vector.broadcast %94 : vector<1x1xf32> to vector<4x16xf32>
    %96 = arith.mulf %95, %89 : vector<4x16xf32>
    %97 = arith.addf %88, %96 : vector<4x16xf32>
    %c7_66 = arith.constant 7 : index
    %c129 = arith.constant 129 : index
    %98 = vector.load %arg7[%c7_66, %c129] : memref<20x256xf32, #tpu.memory_space<vmem>>, vector<4x16xf32>
    %99 = vector.extract_strided_slice %70 {offsets = [0, 2], sizes = [1, 1], strides = [1, 1]} : vector<2x18xf32> to vector<1x1xf32>
    %100 = vector.broadcast %99 : vector<1x1xf32> to vector<4x16xf32>
    %101 = arith.mulf %100, %98 : vector<4x16xf32>
    %102 = arith.addf %93, %101 : vector<4x16xf32>
    %103 = vector.extract_strided_slice %70 {offsets = [1, 2], sizes = [1, 1], strides = [1, 1]} : vector<2x18xf32> to vector<1x1xf32>
    %104 = vector.broadcast %103 : vector<1x1xf32> to vector<4x16xf32>
    %105 = arith.mulf %104, %98 : vector<4x16xf32>
    %106 = arith.addf %97, %105 : vector<4x16xf32>
    %c8_67 = arith.constant 8 : index
    %c127_68 = arith.constant 127 : index
    %107 = vector.load %arg7[%c8_67, %c127_68] : memref<20x256xf32, #tpu.memory_space<vmem>>, vector<4x16xf32>
    %108 = vector.extract_strided_slice %70 {offsets = [0, 3], sizes = [1, 1], strides = [1, 1]} : vector<2x18xf32> to vector<1x1xf32>
    %109 = vector.broadcast %108 : vector<1x1xf32> to vector<4x16xf32>
    %110 = arith.mulf %109, %107 : vector<4x16xf32>
    %111 = arith.addf %102, %110 : vector<4x16xf32>
    %112 = vector.extract_strided_slice %70 {offsets = [1, 3], sizes = [1, 1], strides = [1, 1]} : vector<2x18xf32> to vector<1x1xf32>
    %113 = vector.broadcast %112 : vector<1x1xf32> to vector<4x16xf32>
    %114 = arith.mulf %113, %107 : vector<4x16xf32>
    %115 = arith.addf %106, %114 : vector<4x16xf32>
    %c8_69 = arith.constant 8 : index
    %c128_70 = arith.constant 128 : index
    %116 = vector.load %arg7[%c8_69, %c128_70] : memref<20x256xf32, #tpu.memory_space<vmem>>, vector<4x16xf32>
    %117 = vector.extract_strided_slice %70 {offsets = [0, 4], sizes = [1, 1], strides = [1, 1]} : vector<2x18xf32> to vector<1x1xf32>
    %118 = vector.broadcast %117 : vector<1x1xf32> to vector<4x16xf32>
    %119 = arith.mulf %118, %116 : vector<4x16xf32>
    %120 = arith.addf %111, %119 : vector<4x16xf32>
    %121 = vector.extract_strided_slice %70 {offsets = [1, 4], sizes = [1, 1], strides = [1, 1]} : vector<2x18xf32> to vector<1x1xf32>
    %122 = vector.broadcast %121 : vector<1x1xf32> to vector<4x16xf32>
    %123 = arith.mulf %122, %116 : vector<4x16xf32>
    %124 = arith.addf %115, %123 : vector<4x16xf32>
    %c8_71 = arith.constant 8 : index
    %c129_72 = arith.constant 129 : index
    %125 = vector.load %arg7[%c8_71, %c129_72] : memref<20x256xf32, #tpu.memory_space<vmem>>, vector<4x16xf32>
    %126 = vector.extract_strided_slice %70 {offsets = [0, 5], sizes = [1, 1], strides = [1, 1]} : vector<2x18xf32> to vector<1x1xf32>
    %127 = vector.broadcast %126 : vector<1x1xf32> to vector<4x16xf32>
    %128 = arith.mulf %127, %125 : vector<4x16xf32>
    %129 = arith.addf %120, %128 : vector<4x16xf32>
    %130 = vector.extract_strided_slice %70 {offsets = [1, 5], sizes = [1, 1], strides = [1, 1]} : vector<2x18xf32> to vector<1x1xf32>
    %131 = vector.broadcast %130 : vector<1x1xf32> to vector<4x16xf32>
    %132 = arith.mulf %131, %125 : vector<4x16xf32>
    %133 = arith.addf %124, %132 : vector<4x16xf32>
    %c9_73 = arith.constant 9 : index
    %c127_74 = arith.constant 127 : index
    %134 = vector.load %arg7[%c9_73, %c127_74] : memref<20x256xf32, #tpu.memory_space<vmem>>, vector<4x16xf32>
    %135 = vector.extract_strided_slice %70 {offsets = [0, 6], sizes = [1, 1], strides = [1, 1]} : vector<2x18xf32> to vector<1x1xf32>
    %136 = vector.broadcast %135 : vector<1x1xf32> to vector<4x16xf32>
    %137 = arith.mulf %136, %134 : vector<4x16xf32>
    %138 = arith.addf %129, %137 : vector<4x16xf32>
    %139 = vector.extract_strided_slice %70 {offsets = [1, 6], sizes = [1, 1], strides = [1, 1]} : vector<2x18xf32> to vector<1x1xf32>
    %140 = vector.broadcast %139 : vector<1x1xf32> to vector<4x16xf32>
    %141 = arith.mulf %140, %134 : vector<4x16xf32>
    %142 = arith.addf %133, %141 : vector<4x16xf32>
    %c9_75 = arith.constant 9 : index
    %c128_76 = arith.constant 128 : index
    %143 = vector.load %arg7[%c9_75, %c128_76] : memref<20x256xf32, #tpu.memory_space<vmem>>, vector<4x16xf32>
    %144 = vector.extract_strided_slice %70 {offsets = [0, 7], sizes = [1, 1], strides = [1, 1]} : vector<2x18xf32> to vector<1x1xf32>
    %145 = vector.broadcast %144 : vector<1x1xf32> to vector<4x16xf32>
    %146 = arith.mulf %145, %143 : vector<4x16xf32>
    %147 = arith.addf %138, %146 : vector<4x16xf32>
    %148 = vector.extract_strided_slice %70 {offsets = [1, 7], sizes = [1, 1], strides = [1, 1]} : vector<2x18xf32> to vector<1x1xf32>
    %149 = vector.broadcast %148 : vector<1x1xf32> to vector<4x16xf32>
    %150 = arith.mulf %149, %143 : vector<4x16xf32>
    %151 = arith.addf %142, %150 : vector<4x16xf32>
    %c9_77 = arith.constant 9 : index
    %c129_78 = arith.constant 129 : index
    %152 = vector.load %arg7[%c9_77, %c129_78] : memref<20x256xf32, #tpu.memory_space<vmem>>, vector<4x16xf32>
    %153 = vector.extract_strided_slice %70 {offsets = [0, 8], sizes = [1, 1], strides = [1, 1]} : vector<2x18xf32> to vector<1x1xf32>
    %154 = vector.broadcast %153 : vector<1x1xf32> to vector<4x16xf32>
    %155 = arith.mulf %154, %152 : vector<4x16xf32>
    %156 = arith.addf %147, %155 : vector<4x16xf32>
    %157 = vector.extract_strided_slice %70 {offsets = [1, 8], sizes = [1, 1], strides = [1, 1]} : vector<2x18xf32> to vector<1x1xf32>
    %158 = vector.broadcast %157 : vector<1x1xf32> to vector<4x16xf32>
    %159 = arith.mulf %158, %152 : vector<4x16xf32>
    %160 = arith.addf %151, %159 : vector<4x16xf32>
    %c7_79 = arith.constant 7 : index
    %c127_80 = arith.constant 127 : index
    %161 = vector.load %arg8[%c7_79, %c127_80] : memref<20x256xf32, #tpu.memory_space<vmem>>, vector<4x16xf32>
    %162 = vector.extract_strided_slice %70 {offsets = [0, 9], sizes = [1, 1], strides = [1, 1]} : vector<2x18xf32> to vector<1x1xf32>
    %163 = vector.broadcast %162 : vector<1x1xf32> to vector<4x16xf32>
    %164 = arith.mulf %163, %161 : vector<4x16xf32>
    %165 = arith.addf %156, %164 : vector<4x16xf32>
    %166 = vector.extract_strided_slice %70 {offsets = [1, 9], sizes = [1, 1], strides = [1, 1]} : vector<2x18xf32> to vector<1x1xf32>
    %167 = vector.broadcast %166 : vector<1x1xf32> to vector<4x16xf32>
    %168 = arith.mulf %167, %161 : vector<4x16xf32>
    %169 = arith.addf %160, %168 : vector<4x16xf32>
    %c7_81 = arith.constant 7 : index
    %c128_82 = arith.constant 128 : index
    %170 = vector.load %arg8[%c7_81, %c128_82] : memref<20x256xf32, #tpu.memory_space<vmem>>, vector<4x16xf32>
    %171 = vector.extract_strided_slice %70 {offsets = [0, 10], sizes = [1, 1], strides = [1, 1]} : vector<2x18xf32> to vector<1x1xf32>
    %172 = vector.broadcast %171 : vector<1x1xf32> to vector<4x16xf32>
    %173 = arith.mulf %172, %170 : vector<4x16xf32>
    %174 = arith.addf %165, %173 : vector<4x16xf32>
    %175 = vector.extract_strided_slice %70 {offsets = [1, 10], sizes = [1, 1], strides = [1, 1]} : vector<2x18xf32> to vector<1x1xf32>
    %176 = vector.broadcast %175 : vector<1x1xf32> to vector<4x16xf32>
    %177 = arith.mulf %176, %170 : vector<4x16xf32>
    %178 = arith.addf %169, %177 : vector<4x16xf32>
    %c7_83 = arith.constant 7 : index
    %c129_84 = arith.constant 129 : index
    %179 = vector.load %arg8[%c7_83, %c129_84] : memref<20x256xf32, #tpu.memory_space<vmem>>, vector<4x16xf32>
    %180 = vector.extract_strided_slice %70 {offsets = [0, 11], sizes = [1, 1], strides = [1, 1]} : vector<2x18xf32> to vector<1x1xf32>
    %181 = vector.broadcast %180 : vector<1x1xf32> to vector<4x16xf32>
    %182 = arith.mulf %181, %179 : vector<4x16xf32>
    %183 = arith.addf %174, %182 : vector<4x16xf32>
    %184 = vector.extract_strided_slice %70 {offsets = [1, 11], sizes = [1, 1], strides = [1, 1]} : vector<2x18xf32> to vector<1x1xf32>
    %185 = vector.broadcast %184 : vector<1x1xf32> to vector<4x16xf32>
    %186 = arith.mulf %185, %179 : vector<4x16xf32>
    %187 = arith.addf %178, %186 : vector<4x16xf32>
    %c8_85 = arith.constant 8 : index
    %c127_86 = arith.constant 127 : index
    %188 = vector.load %arg8[%c8_85, %c127_86] : memref<20x256xf32, #tpu.memory_space<vmem>>, vector<4x16xf32>
    %189 = vector.extract_strided_slice %70 {offsets = [0, 12], sizes = [1, 1], strides = [1, 1]} : vector<2x18xf32> to vector<1x1xf32>
    %190 = vector.broadcast %189 : vector<1x1xf32> to vector<4x16xf32>
    %191 = arith.mulf %190, %188 : vector<4x16xf32>
    %192 = arith.addf %183, %191 : vector<4x16xf32>
    %193 = vector.extract_strided_slice %70 {offsets = [1, 12], sizes = [1, 1], strides = [1, 1]} : vector<2x18xf32> to vector<1x1xf32>
    %194 = vector.broadcast %193 : vector<1x1xf32> to vector<4x16xf32>
    %195 = arith.mulf %194, %188 : vector<4x16xf32>
    %196 = arith.addf %187, %195 : vector<4x16xf32>
    %c8_87 = arith.constant 8 : index
    %c128_88 = arith.constant 128 : index
    %197 = vector.load %arg8[%c8_87, %c128_88] : memref<20x256xf32, #tpu.memory_space<vmem>>, vector<4x16xf32>
    %198 = vector.extract_strided_slice %70 {offsets = [0, 13], sizes = [1, 1], strides = [1, 1]} : vector<2x18xf32> to vector<1x1xf32>
    %199 = vector.broadcast %198 : vector<1x1xf32> to vector<4x16xf32>
    %200 = arith.mulf %199, %197 : vector<4x16xf32>
    %201 = arith.addf %192, %200 : vector<4x16xf32>
    %202 = vector.extract_strided_slice %70 {offsets = [1, 13], sizes = [1, 1], strides = [1, 1]} : vector<2x18xf32> to vector<1x1xf32>
    %203 = vector.broadcast %202 : vector<1x1xf32> to vector<4x16xf32>
    %204 = arith.mulf %203, %197 : vector<4x16xf32>
    %205 = arith.addf %196, %204 : vector<4x16xf32>
    %c8_89 = arith.constant 8 : index
    %c129_90 = arith.constant 129 : index
    %206 = vector.load %arg8[%c8_89, %c129_90] : memref<20x256xf32, #tpu.memory_space<vmem>>, vector<4x16xf32>
    %207 = vector.extract_strided_slice %70 {offsets = [0, 14], sizes = [1, 1], strides = [1, 1]} : vector<2x18xf32> to vector<1x1xf32>
    %208 = vector.broadcast %207 : vector<1x1xf32> to vector<4x16xf32>
    %209 = arith.mulf %208, %206 : vector<4x16xf32>
    %210 = arith.addf %201, %209 : vector<4x16xf32>
    %211 = vector.extract_strided_slice %70 {offsets = [1, 14], sizes = [1, 1], strides = [1, 1]} : vector<2x18xf32> to vector<1x1xf32>
    %212 = vector.broadcast %211 : vector<1x1xf32> to vector<4x16xf32>
    %213 = arith.mulf %212, %206 : vector<4x16xf32>
    %214 = arith.addf %205, %213 : vector<4x16xf32>
    %c9_91 = arith.constant 9 : index
    %c127_92 = arith.constant 127 : index
    %215 = vector.load %arg8[%c9_91, %c127_92] : memref<20x256xf32, #tpu.memory_space<vmem>>, vector<4x16xf32>
    %216 = vector.extract_strided_slice %70 {offsets = [0, 15], sizes = [1, 1], strides = [1, 1]} : vector<2x18xf32> to vector<1x1xf32>
    %217 = vector.broadcast %216 : vector<1x1xf32> to vector<4x16xf32>
    %218 = arith.mulf %217, %215 : vector<4x16xf32>
    %219 = arith.addf %210, %218 : vector<4x16xf32>
    %220 = vector.extract_strided_slice %70 {offsets = [1, 15], sizes = [1, 1], strides = [1, 1]} : vector<2x18xf32> to vector<1x1xf32>
    %221 = vector.broadcast %220 : vector<1x1xf32> to vector<4x16xf32>
    %222 = arith.mulf %221, %215 : vector<4x16xf32>
    %223 = arith.addf %214, %222 : vector<4x16xf32>
    %c9_93 = arith.constant 9 : index
    %c128_94 = arith.constant 128 : index
    %224 = vector.load %arg8[%c9_93, %c128_94] : memref<20x256xf32, #tpu.memory_space<vmem>>, vector<4x16xf32>
    %225 = vector.extract_strided_slice %70 {offsets = [0, 16], sizes = [1, 1], strides = [1, 1]} : vector<2x18xf32> to vector<1x1xf32>
    %226 = vector.broadcast %225 : vector<1x1xf32> to vector<4x16xf32>
    %227 = arith.mulf %226, %224 : vector<4x16xf32>
    %228 = arith.addf %219, %227 : vector<4x16xf32>
    %229 = vector.extract_strided_slice %70 {offsets = [1, 16], sizes = [1, 1], strides = [1, 1]} : vector<2x18xf32> to vector<1x1xf32>
    %230 = vector.broadcast %229 : vector<1x1xf32> to vector<4x16xf32>
    %231 = arith.mulf %230, %224 : vector<4x16xf32>
    %232 = arith.addf %223, %231 : vector<4x16xf32>
    %c9_95 = arith.constant 9 : index
    %c129_96 = arith.constant 129 : index
    %233 = vector.load %arg8[%c9_95, %c129_96] : memref<20x256xf32, #tpu.memory_space<vmem>>, vector<4x16xf32>
    %234 = vector.extract_strided_slice %70 {offsets = [0, 17], sizes = [1, 1], strides = [1, 1]} : vector<2x18xf32> to vector<1x1xf32>
    %235 = vector.broadcast %234 : vector<1x1xf32> to vector<4x16xf32>
    %236 = arith.mulf %235, %233 : vector<4x16xf32>
    %237 = arith.addf %228, %236 : vector<4x16xf32>
    %238 = vector.extract_strided_slice %70 {offsets = [1, 17], sizes = [1, 1], strides = [1, 1]} : vector<2x18xf32> to vector<1x1xf32>
    %239 = vector.broadcast %238 : vector<1x1xf32> to vector<4x16xf32>
    %240 = arith.mulf %239, %233 : vector<4x16xf32>
    %241 = arith.addf %232, %240 : vector<4x16xf32>
    %c0_97 = arith.constant 0 : index
    %c0_98 = arith.constant 0 : index
    %c0_99 = arith.constant 0 : index
    %c0_100 = arith.constant 0 : index
    %242 = vector.load %arg4[%c0_97, %c0_98, %c0_99, %c0_100] : memref<1x2x4x16xf32, #tpu.memory_space<vmem>>, vector<1x1x4x16xf32>
    %243 = vector.shape_cast %242 : vector<1x1x4x16xf32> to vector<4x16xf32>
    %244 = vector.shape_cast %237 : vector<4x16xf32> to vector<1x1x4x16xf32>
    tpu.vector_store %arg4[%c0_97, %c0_98, %c0_99, %c0_100], %244 {strides = array<i32>} : memref<1x2x4x16xf32, #tpu.memory_space<vmem>>, vector<1x1x4x16xf32>,
    %c0_101 = arith.constant 0 : index
    %c1_102 = arith.constant 1 : index
    %c0_103 = arith.constant 0 : index
    %c0_104 = arith.constant 0 : index
    %245 = vector.load %arg4[%c0_101, %c1_102, %c0_103, %c0_104] : memref<1x2x4x16xf32, #tpu.memory_space<vmem>>, vector<1x1x4x16xf32>
    %246 = vector.shape_cast %245 : vector<1x1x4x16xf32> to vector<4x16xf32>
    %247 = vector.shape_cast %241 : vector<4x16xf32> to vector<1x1x4x16xf32>
    tpu.vector_store %arg4[%c0_101, %c1_102, %c0_103, %c0_104], %247 {strides = array<i32>} : memref<1x2x4x16xf32, #tpu.memory_space<vmem>>, vector<1x1x4x16xf32>,
    %cst_105 = arith.constant dense<0.000000e+00> : vector<4xf32>
    %248 = vector.multi_reduction <add>, %237, %cst_105 [1] : vector<4x16xf32> to vector<4xf32>
    %249 = vector.shape_cast %248 : vector<4xf32> to vector<4x1xf32>
    %c0_106 = arith.constant 0 : index
    %c0_107 = arith.constant 0 : index
    %c0_108 = arith.constant 0 : index
    %c0_109 = arith.constant 0 : index
    %250 = vector.load %arg5[%c0_106, %c0_107, %c0_108, %c0_109] : memref<1x2x4x1xf32, #tpu.memory_space<vmem>>, vector<1x1x4x1xf32>
    %251 = vector.shape_cast %250 : vector<1x1x4x1xf32> to vector<4x1xf32>
    %252 = vector.shape_cast %249 : vector<4x1xf32> to vector<1x1x4x1xf32>
    tpu.vector_store %arg5[%c0_106, %c0_107, %c0_108, %c0_109], %252 {strides = array<i32>} : memref<1x2x4x1xf32, #tpu.memory_space<vmem>>, vector<1x1x4x1xf32>,
    %cst_110 = arith.constant dense<0.000000e+00> : vector<4xf32>
    %253 = vector.multi_reduction <add>, %241, %cst_110 [1] : vector<4x16xf32> to vector<4xf32>
    %254 = vector.shape_cast %253 : vector<4xf32> to vector<4x1xf32>
    %c0_111 = arith.constant 0 : index
    %c1_112 = arith.constant 1 : index
    %c0_113 = arith.constant 0 : index
    %c0_114 = arith.constant 0 : index
    %255 = vector.load %arg5[%c0_111, %c1_112, %c0_113, %c0_114] : memref<1x2x4x1xf32, #tpu.memory_space<vmem>>, vector<1x1x4x1xf32>
    %256 = vector.shape_cast %255 : vector<1x1x4x1xf32> to vector<4x1xf32>
    %257 = vector.shape_cast %254 : vector<4x1xf32> to vector<1x1x4x1xf32>
    tpu.vector_store %arg5[%c0_111, %c1_112, %c0_113, %c0_114], %257 {strides = array<i32>} : memref<1x2x4x1xf32, #tpu.memory_space<vmem>>, vector<1x1x4x1xf32>,
    %258 = arith.mulf %237, %237 : vector<4x16xf32>
    %cst_115 = arith.constant dense<0.000000e+00> : vector<4xf32>
    %259 = vector.multi_reduction <add>, %258, %cst_115 [1] : vector<4x16xf32> to vector<4xf32>
    %260 = vector.shape_cast %259 : vector<4xf32> to vector<4x1xf32>
    %c0_116 = arith.constant 0 : index
    %c0_117 = arith.constant 0 : index
    %c0_118 = arith.constant 0 : index
    %c0_119 = arith.constant 0 : index
    %261 = vector.load %arg6[%c0_116, %c0_117, %c0_118, %c0_119] : memref<1x2x4x1xf32, #tpu.memory_space<vmem>>, vector<1x1x4x1xf32>
    %262 = vector.shape_cast %261 : vector<1x1x4x1xf32> to vector<4x1xf32>
    %263 = vector.shape_cast %260 : vector<4x1xf32> to vector<1x1x4x1xf32>
    tpu.vector_store %arg6[%c0_116, %c0_117, %c0_118, %c0_119], %263 {strides = array<i32>} : memref<1x2x4x1xf32, #tpu.memory_space<vmem>>, vector<1x1x4x1xf32>,
    %264 = arith.mulf %241, %241 : vector<4x16xf32>
    %cst_120 = arith.constant dense<0.000000e+00> : vector<4xf32>
    %265 = vector.multi_reduction <add>, %264, %cst_120 [1] : vector<4x16xf32> to vector<4xf32>
    %266 = vector.shape_cast %265 : vector<4xf32> to vector<4x1xf32>
    %c0_121 = arith.constant 0 : index
    %c1_122 = arith.constant 1 : index
    %c0_123 = arith.constant 0 : index
    %c0_124 = arith.constant 0 : index
    %267 = vector.load %arg6[%c0_121, %c1_122, %c0_123, %c0_124] : memref<1x2x4x1xf32, #tpu.memory_space<vmem>>, vector<1x1x4x1xf32>
    %268 = vector.shape_cast %267 : vector<1x1x4x1xf32> to vector<4x1xf32>
    %269 = vector.shape_cast %266 : vector<4x1xf32> to vector<1x1x4x1xf32>
    tpu.vector_store %arg6[%c0_121, %c1_122, %c0_123, %c0_124], %269 {strides = array<i32>} : memref<1x2x4x1xf32, #tpu.memory_space<vmem>>, vector<1x1x4x1xf32>,
    return
  }
  func.func @transform_0(%arg0: i32) -> (i32, i32, i32, i32) {
    %c0_i32 = arith.constant 0 : i32
    %c0_i32_0 = arith.constant 0 : i32
    %c0_i32_1 = arith.constant 0 : i32
    %c0_i32_2 = arith.constant 0 : i32
    return %arg0, %c0_i32, %c0_i32_0, %c0_i32_1 : i32, i32, i32, i32
  }
  func.func @transform_1(%arg0: i32) -> (i32, i32) {
    %c0_i32 = arith.constant 0 : i32
    %c0_i32_0 = arith.constant 0 : i32
    %c0_i32_1 = arith.constant 0 : i32
    return %c0_i32, %c0_i32_0 : i32, i32
  }
  func.func @transform_2(%arg0: i32) -> (i32, i32) {
    %c0_i32 = arith.constant 0 : i32
    %c0_i32_0 = arith.constant 0 : i32
    %c0_i32_1 = arith.constant 0 : i32
    return %c0_i32, %c0_i32_0 : i32, i32
  }
  func.func @transform_3(%arg0: i32) -> (i32, i32, i32, i32) {
    %c0_i32 = arith.constant 0 : i32
    %c0_i32_0 = arith.constant 0 : i32
    %c0_i32_1 = arith.constant 0 : i32
    %c0_i32_2 = arith.constant 0 : i32
    return %arg0, %c0_i32, %c0_i32_0, %c0_i32_1 : i32, i32, i32, i32
  }
  func.func @transform_4(%arg0: i32) -> (i32, i32, i32, i32) {
    %c0_i32 = arith.constant 0 : i32
    %c0_i32_0 = arith.constant 0 : i32
    %c0_i32_1 = arith.constant 0 : i32
    %c0_i32_2 = arith.constant 0 : i32
    return %arg0, %c0_i32, %c0_i32_0, %c0_i32_1 : i32, i32, i32, i32
  }
  func.func @transform_5(%arg0: i32) -> (i32, i32, i32, i32) {
    %c0_i32 = arith.constant 0 : i32
    %c0_i32_0 = arith.constant 0 : i32
    %c0_i32_1 = arith.constant 0 : i32
    %c0_i32_2 = arith.constant 0 : i32
    return %arg0, %c0_i32, %c0_i32_0, %c0_i32_1 : i32, i32, i32, i32
  }
}

module attributes {stable_mosaic.version = 11 : i64} {
  func.func @_gate_apply_kernel(%arg0: i32, %arg1: i32, %arg2: memref<1x16x64xf32, #tpu.memory_space<vmem>>, %arg3: memref<1x2x64xf32, #tpu.memory_space<vmem>>, %arg4: memref<1x2x1xf32, #tpu.memory_space<vmem>>, %arg5: memref<1x1x1xf32, #tpu.memory_space<vmem>>, %arg6: memref<1x16x64xf32, #tpu.memory_space<vmem>>) attributes {dimension_semantics = [#tpu.dimension_semantics<parallel>, #tpu.dimension_semantics<parallel>], iteration_bounds = array<i64: 2, 1>, scalar_prefetch = 0 : i64, scratch_operands = 0 : i64, tpu.core_type = #tpu.core_type<tc>, window_params = [{transform_indices = @transform_0, window_bounds = array<i64: 1, 16, 64>}, {transform_indices = @transform_1, window_bounds = array<i64: 1, 2, 64>}, {transform_indices = @transform_2, window_bounds = array<i64: 1, 2, 1>}, {transform_indices = @transform_3, window_bounds = array<i64: 1, 1, 1>}, {transform_indices = @transform_4, window_bounds = array<i64: 1, 16, 64>}]} {
    %c0 = arith.constant 0 : index
    %c0_0 = arith.constant 0 : index
    %c0_1 = arith.constant 0 : index
    %0 = vector.load %arg3[%c0, %c0_0, %c0_1] : memref<1x2x64xf32, #tpu.memory_space<vmem>>, vector<1x1x64xf32>
    %1 = vector.shape_cast %0 : vector<1x1x64xf32> to vector<1x64xf32>
    %c0_2 = arith.constant 0 : index
    %c1 = arith.constant 1 : index
    %c0_3 = arith.constant 0 : index
    %2 = vector.load %arg3[%c0_2, %c1, %c0_3] : memref<1x2x64xf32, #tpu.memory_space<vmem>>, vector<1x1x64xf32>
    %3 = vector.shape_cast %2 : vector<1x1x64xf32> to vector<1x64xf32>
    %c0_4 = arith.constant 0 : index
    %c0_5 = arith.constant 0 : index
    %c0_6 = arith.constant 0 : index
    %4 = vector.load %arg4[%c0_4, %c0_5, %c0_6] : memref<1x2x1xf32, #tpu.memory_space<vmem>>, vector<1x2x1xf32>
    %5 = vector.shape_cast %4 : vector<1x2x1xf32> to vector<2x1xf32>
    %c0_7 = arith.constant 0 : index
    %c0_8 = arith.constant 0 : index
    %c0_9 = arith.constant 0 : index
    %6 = vector.load %arg5[%c0_7, %c0_8, %c0_9] : memref<1x1x1xf32, #tpu.memory_space<vmem>>, vector<1x1x1xf32>
    %7 = vector.shape_cast %6 : vector<1x1x1xf32> to vector<1x1xf32>
    %8 = vector.extract_strided_slice %5 {offsets = [0, 0], sizes = [1, 1], strides = [1, 1]} : vector<2x1xf32> to vector<1x1xf32>
    %9 = vector.broadcast %8 : vector<1x1xf32> to vector<1x64xf32>
    %10 = arith.mulf %1, %9 : vector<1x64xf32>
    %11 = vector.extract_strided_slice %5 {offsets = [1, 0], sizes = [1, 1], strides = [1, 1]} : vector<2x1xf32> to vector<1x1xf32>
    %12 = vector.broadcast %11 : vector<1x1xf32> to vector<1x64xf32>
    %13 = arith.mulf %3, %12 : vector<1x64xf32>
    %14 = arith.addf %10, %13 : vector<1x64xf32>
    %15 = vector.broadcast %7 : vector<1x1xf32> to vector<1x64xf32>
    %16 = arith.addf %14, %15 : vector<1x64xf32>
    %17 = arith.negf %16 : vector<1x64xf32>
    %18 = math.exp %17 : vector<1x64xf32>
    %cst = arith.constant 1.000000e+00 : f32
    %19 = vector.broadcast %cst : f32 to vector<1x64xf32>
    %20 = arith.addf %19, %18 : vector<1x64xf32>
    %21 = arith.divf %19, %20 : vector<1x64xf32>
    %c0_10 = arith.constant 0 : index
    %c0_11 = arith.constant 0 : index
    %c0_12 = arith.constant 0 : index
    %22 = vector.load %arg2[%c0_10, %c0_11, %c0_12] : memref<1x16x64xf32, #tpu.memory_space<vmem>>, vector<1x16x64xf32>
    %23 = vector.shape_cast %22 : vector<1x16x64xf32> to vector<16x64xf32>
    %24 = vector.broadcast %21 : vector<1x64xf32> to vector<16x64xf32>
    %25 = arith.mulf %23, %24 : vector<16x64xf32>
    %c0_13 = arith.constant 0 : index
    %c0_14 = arith.constant 0 : index
    %c0_15 = arith.constant 0 : index
    %26 = vector.load %arg6[%c0_13, %c0_14, %c0_15] : memref<1x16x64xf32, #tpu.memory_space<vmem>>, vector<1x16x64xf32>
    %27 = vector.shape_cast %26 : vector<1x16x64xf32> to vector<16x64xf32>
    %28 = vector.shape_cast %25 : vector<16x64xf32> to vector<1x16x64xf32>
    tpu.vector_store %arg6[%c0_13, %c0_14, %c0_15], %28 {strides = array<i32>} : memref<1x16x64xf32, #tpu.memory_space<vmem>>, vector<1x16x64xf32>,
    return
  }
  func.func @transform_0(%arg0: i32, %arg1: i32) -> (i32, i32, i32) {
    %c0_i32 = arith.constant 0 : i32
    %c0_i32_0 = arith.constant 0 : i32
    return %arg0, %c0_i32, %arg1 : i32, i32, i32
  }
  func.func @transform_1(%arg0: i32, %arg1: i32) -> (i32, i32, i32) {
    %c0_i32 = arith.constant 0 : i32
    %c0_i32_0 = arith.constant 0 : i32
    return %arg0, %c0_i32, %arg1 : i32, i32, i32
  }
  func.func @transform_2(%arg0: i32, %arg1: i32) -> (i32, i32, i32) {
    %c0_i32 = arith.constant 0 : i32
    %c0_i32_0 = arith.constant 0 : i32
    %c0_i32_1 = arith.constant 0 : i32
    return %arg0, %c0_i32, %c0_i32_0 : i32, i32, i32
  }
  func.func @transform_3(%arg0: i32, %arg1: i32) -> (i32, i32, i32) {
    %c0_i32 = arith.constant 0 : i32
    %c0_i32_0 = arith.constant 0 : i32
    %c0_i32_1 = arith.constant 0 : i32
    return %arg0, %c0_i32, %c0_i32_0 : i32, i32, i32
  }
  func.func @transform_4(%arg0: i32, %arg1: i32) -> (i32, i32, i32) {
    %c0_i32 = arith.constant 0 : i32
    %c0_i32_0 = arith.constant 0 : i32
    return %arg0, %c0_i32, %arg1 : i32, i32, i32
  }
}

module attributes {stable_mosaic.version = 11 : i64} {
  func.func @_gate_front_kernel(%arg0: i32, %arg1: memref<1x16x16x4xf32, #tpu.memory_space<vmem>>, %arg2: memref<2x18xf32, #tpu.memory_space<vmem>>, %arg3: memref<2x1xf32, #tpu.memory_space<vmem>>, %arg4: memref<1x2x16x4xf32, #tpu.memory_space<vmem>>, %arg5: memref<1x2x16x1xf32, #tpu.memory_space<vmem>>, %arg6: memref<1x2x16x1xf32, #tpu.memory_space<vmem>>, %arg7: memref<32x256xf32, #tpu.memory_space<vmem>>, %arg8: memref<32x256xf32, #tpu.memory_space<vmem>>) attributes {dimension_semantics = [#tpu.dimension_semantics<parallel>], iteration_bounds = array<i64: 2>, scalar_prefetch = 0 : i64, scratch_operands = 2 : i64, tpu.core_type = #tpu.core_type<tc>, window_params = [{transform_indices = @transform_0, window_bounds = array<i64: 1, 16, 16, 4>}, {pipeline_mode = #tpu.pipeline_mode<synchronous>, transform_indices = @transform_1, window_bounds = array<i64: 2, 18>}, {pipeline_mode = #tpu.pipeline_mode<synchronous>, transform_indices = @transform_2, window_bounds = array<i64: 2, 1>}, {transform_indices = @transform_3, window_bounds = array<i64: 1, 2, 16, 4>}, {transform_indices = @transform_4, window_bounds = array<i64: 1, 2, 16, 1>}, {transform_indices = @transform_5, window_bounds = array<i64: 1, 2, 16, 1>}]} {
    %c0 = arith.constant 0 : index
    %c0_0 = arith.constant 0 : index
    %c0_1 = arith.constant 0 : index
    %c0_2 = arith.constant 0 : index
    %0 = vector.load %arg1[%c0, %c0_0, %c0_1, %c0_2] : memref<1x16x16x4xf32, #tpu.memory_space<vmem>>, vector<1x1x16x4xf32>
    %1 = vector.shape_cast %0 : vector<1x1x16x4xf32> to vector<16x4xf32>
    %c0_3 = arith.constant 0 : index
    %c1 = arith.constant 1 : index
    %c0_4 = arith.constant 0 : index
    %c0_5 = arith.constant 0 : index
    %2 = vector.load %arg1[%c0_3, %c1, %c0_4, %c0_5] : memref<1x16x16x4xf32, #tpu.memory_space<vmem>>, vector<1x1x16x4xf32>
    %3 = vector.shape_cast %2 : vector<1x1x16x4xf32> to vector<16x4xf32>
    %4 = arith.maximumf %1, %3 : vector<16x4xf32>
    %5 = arith.addf %1, %3 : vector<16x4xf32>
    %c0_6 = arith.constant 0 : index
    %c2 = arith.constant 2 : index
    %c0_7 = arith.constant 0 : index
    %c0_8 = arith.constant 0 : index
    %6 = vector.load %arg1[%c0_6, %c2, %c0_7, %c0_8] : memref<1x16x16x4xf32, #tpu.memory_space<vmem>>, vector<1x1x16x4xf32>
    %7 = vector.shape_cast %6 : vector<1x1x16x4xf32> to vector<16x4xf32>
    %8 = arith.maximumf %4, %7 : vector<16x4xf32>
    %9 = arith.addf %5, %7 : vector<16x4xf32>
    %c0_9 = arith.constant 0 : index
    %c3 = arith.constant 3 : index
    %c0_10 = arith.constant 0 : index
    %c0_11 = arith.constant 0 : index
    %10 = vector.load %arg1[%c0_9, %c3, %c0_10, %c0_11] : memref<1x16x16x4xf32, #tpu.memory_space<vmem>>, vector<1x1x16x4xf32>
    %11 = vector.shape_cast %10 : vector<1x1x16x4xf32> to vector<16x4xf32>
    %12 = arith.maximumf %8, %11 : vector<16x4xf32>
    %13 = arith.addf %9, %11 : vector<16x4xf32>
    %c0_12 = arith.constant 0 : index
    %c4 = arith.constant 4 : index
    %c0_13 = arith.constant 0 : index
    %c0_14 = arith.constant 0 : index
    %14 = vector.load %arg1[%c0_12, %c4, %c0_13, %c0_14] : memref<1x16x16x4xf32, #tpu.memory_space<vmem>>, vector<1x1x16x4xf32>
    %15 = vector.shape_cast %14 : vector<1x1x16x4xf32> to vector<16x4xf32>
    %16 = arith.maximumf %12, %15 : vector<16x4xf32>
    %17 = arith.addf %13, %15 : vector<16x4xf32>
    %c0_15 = arith.constant 0 : index
    %c5 = arith.constant 5 : index
    %c0_16 = arith.constant 0 : index
    %c0_17 = arith.constant 0 : index
    %18 = vector.load %arg1[%c0_15, %c5, %c0_16, %c0_17] : memref<1x16x16x4xf32, #tpu.memory_space<vmem>>, vector<1x1x16x4xf32>
    %19 = vector.shape_cast %18 : vector<1x1x16x4xf32> to vector<16x4xf32>
    %20 = arith.maximumf %16, %19 : vector<16x4xf32>
    %21 = arith.addf %17, %19 : vector<16x4xf32>
    %c0_18 = arith.constant 0 : index
    %c6 = arith.constant 6 : index
    %c0_19 = arith.constant 0 : index
    %c0_20 = arith.constant 0 : index
    %22 = vector.load %arg1[%c0_18, %c6, %c0_19, %c0_20] : memref<1x16x16x4xf32, #tpu.memory_space<vmem>>, vector<1x1x16x4xf32>
    %23 = vector.shape_cast %22 : vector<1x1x16x4xf32> to vector<16x4xf32>
    %24 = arith.maximumf %20, %23 : vector<16x4xf32>
    %25 = arith.addf %21, %23 : vector<16x4xf32>
    %c0_21 = arith.constant 0 : index
    %c7 = arith.constant 7 : index
    %c0_22 = arith.constant 0 : index
    %c0_23 = arith.constant 0 : index
    %26 = vector.load %arg1[%c0_21, %c7, %c0_22, %c0_23] : memref<1x16x16x4xf32, #tpu.memory_space<vmem>>, vector<1x1x16x4xf32>
    %27 = vector.shape_cast %26 : vector<1x1x16x4xf32> to vector<16x4xf32>
    %28 = arith.maximumf %24, %27 : vector<16x4xf32>
    %29 = arith.addf %25, %27 : vector<16x4xf32>
    %c0_24 = arith.constant 0 : index
    %c8 = arith.constant 8 : index
    %c0_25 = arith.constant 0 : index
    %c0_26 = arith.constant 0 : index
    %30 = vector.load %arg1[%c0_24, %c8, %c0_25, %c0_26] : memref<1x16x16x4xf32, #tpu.memory_space<vmem>>, vector<1x1x16x4xf32>
    %31 = vector.shape_cast %30 : vector<1x1x16x4xf32> to vector<16x4xf32>
    %32 = arith.maximumf %28, %31 : vector<16x4xf32>
    %33 = arith.addf %29, %31 : vector<16x4xf32>
    %c0_27 = arith.constant 0 : index
    %c9 = arith.constant 9 : index
    %c0_28 = arith.constant 0 : index
    %c0_29 = arith.constant 0 : index
    %34 = vector.load %arg1[%c0_27, %c9, %c0_28, %c0_29] : memref<1x16x16x4xf32, #tpu.memory_space<vmem>>, vector<1x1x16x4xf32>
    %35 = vector.shape_cast %34 : vector<1x1x16x4xf32> to vector<16x4xf32>
    %36 = arith.maximumf %32, %35 : vector<16x4xf32>
    %37 = arith.addf %33, %35 : vector<16x4xf32>
    %c0_30 = arith.constant 0 : index
    %c10 = arith.constant 10 : index
    %c0_31 = arith.constant 0 : index
    %c0_32 = arith.constant 0 : index
    %38 = vector.load %arg1[%c0_30, %c10, %c0_31, %c0_32] : memref<1x16x16x4xf32, #tpu.memory_space<vmem>>, vector<1x1x16x4xf32>
    %39 = vector.shape_cast %38 : vector<1x1x16x4xf32> to vector<16x4xf32>
    %40 = arith.maximumf %36, %39 : vector<16x4xf32>
    %41 = arith.addf %37, %39 : vector<16x4xf32>
    %c0_33 = arith.constant 0 : index
    %c11 = arith.constant 11 : index
    %c0_34 = arith.constant 0 : index
    %c0_35 = arith.constant 0 : index
    %42 = vector.load %arg1[%c0_33, %c11, %c0_34, %c0_35] : memref<1x16x16x4xf32, #tpu.memory_space<vmem>>, vector<1x1x16x4xf32>
    %43 = vector.shape_cast %42 : vector<1x1x16x4xf32> to vector<16x4xf32>
    %44 = arith.maximumf %40, %43 : vector<16x4xf32>
    %45 = arith.addf %41, %43 : vector<16x4xf32>
    %c0_36 = arith.constant 0 : index
    %c12 = arith.constant 12 : index
    %c0_37 = arith.constant 0 : index
    %c0_38 = arith.constant 0 : index
    %46 = vector.load %arg1[%c0_36, %c12, %c0_37, %c0_38] : memref<1x16x16x4xf32, #tpu.memory_space<vmem>>, vector<1x1x16x4xf32>
    %47 = vector.shape_cast %46 : vector<1x1x16x4xf32> to vector<16x4xf32>
    %48 = arith.maximumf %44, %47 : vector<16x4xf32>
    %49 = arith.addf %45, %47 : vector<16x4xf32>
    %c0_39 = arith.constant 0 : index
    %c13 = arith.constant 13 : index
    %c0_40 = arith.constant 0 : index
    %c0_41 = arith.constant 0 : index
    %50 = vector.load %arg1[%c0_39, %c13, %c0_40, %c0_41] : memref<1x16x16x4xf32, #tpu.memory_space<vmem>>, vector<1x1x16x4xf32>
    %51 = vector.shape_cast %50 : vector<1x1x16x4xf32> to vector<16x4xf32>
    %52 = arith.maximumf %48, %51 : vector<16x4xf32>
    %53 = arith.addf %49, %51 : vector<16x4xf32>
    %c0_42 = arith.constant 0 : index
    %c14 = arith.constant 14 : index
    %c0_43 = arith.constant 0 : index
    %c0_44 = arith.constant 0 : index
    %54 = vector.load %arg1[%c0_42, %c14, %c0_43, %c0_44] : memref<1x16x16x4xf32, #tpu.memory_space<vmem>>, vector<1x1x16x4xf32>
    %55 = vector.shape_cast %54 : vector<1x1x16x4xf32> to vector<16x4xf32>
    %56 = arith.maximumf %52, %55 : vector<16x4xf32>
    %57 = arith.addf %53, %55 : vector<16x4xf32>
    %c0_45 = arith.constant 0 : index
    %c15 = arith.constant 15 : index
    %c0_46 = arith.constant 0 : index
    %c0_47 = arith.constant 0 : index
    %58 = vector.load %arg1[%c0_45, %c15, %c0_46, %c0_47] : memref<1x16x16x4xf32, #tpu.memory_space<vmem>>, vector<1x1x16x4xf32>
    %59 = vector.shape_cast %58 : vector<1x1x16x4xf32> to vector<16x4xf32>
    %60 = arith.maximumf %56, %59 : vector<16x4xf32>
    %61 = arith.addf %57, %59 : vector<16x4xf32>
    %cst = arith.constant 6.250000e-02 : f32
    %62 = vector.broadcast %cst : f32 to vector<16x4xf32>
    %63 = arith.mulf %61, %62 : vector<16x4xf32>
    %cst_48 = arith.constant 0.000000e+00 : f32
    %64 = vector.broadcast %cst_48 : f32 to vector<32x256xf32>
    %c0_49 = arith.constant 0 : index
    %c0_50 = arith.constant 0 : index
    %65 = vector.load %arg7[%c0_49, %c0_50] : memref<32x256xf32, #tpu.memory_space<vmem>>, vector<32x256xf32>
    tpu.vector_store %arg7[%c0_49, %c0_50], %64 {strides = array<i32>} : memref<32x256xf32, #tpu.memory_space<vmem>>, vector<32x256xf32>,
    %cst_51 = arith.constant 0.000000e+00 : f32
    %66 = vector.broadcast %cst_51 : f32 to vector<32x256xf32>
    %c0_52 = arith.constant 0 : index
    %c0_53 = arith.constant 0 : index
    %67 = vector.load %arg8[%c0_52, %c0_53] : memref<32x256xf32, #tpu.memory_space<vmem>>, vector<32x256xf32>
    tpu.vector_store %arg8[%c0_52, %c0_53], %66 {strides = array<i32>} : memref<32x256xf32, #tpu.memory_space<vmem>>, vector<32x256xf32>,
    %c8_54 = arith.constant 8 : index
    %c128 = arith.constant 128 : index
    %68 = vector.load %arg7[%c8_54, %c128] : memref<32x256xf32, #tpu.memory_space<vmem>>, vector<16x4xf32>
    tpu.vector_store %arg7[%c8_54, %c128], %60 {strides = array<i32>} : memref<32x256xf32, #tpu.memory_space<vmem>>, vector<16x4xf32>,
    %c8_55 = arith.constant 8 : index
    %c128_56 = arith.constant 128 : index
    %69 = vector.load %arg8[%c8_55, %c128_56] : memref<32x256xf32, #tpu.memory_space<vmem>>, vector<16x4xf32>
    tpu.vector_store %arg8[%c8_55, %c128_56], %63 {strides = array<i32>} : memref<32x256xf32, #tpu.memory_space<vmem>>, vector<16x4xf32>,
    %c0_57 = arith.constant 0 : index
    %c0_58 = arith.constant 0 : index
    %70 = vector.load %arg2[%c0_57, %c0_58] : memref<2x18xf32, #tpu.memory_space<vmem>>, vector<2x18xf32>
    %c0_59 = arith.constant 0 : index
    %c0_60 = arith.constant 0 : index
    %71 = vector.load %arg3[%c0_59, %c0_60] : memref<2x1xf32, #tpu.memory_space<vmem>>, vector<2x1xf32>
    %cst_61 = arith.constant 0.000000e+00 : f32
    %72 = vector.broadcast %cst_61 : f32 to vector<16x4xf32>
    %73 = vector.extract_strided_slice %71 {offsets = [0, 0], sizes = [1, 1], strides = [1, 1]} : vector<2x1xf32> to vector<1x1xf32>
    %74 = vector.broadcast %73 : vector<1x1xf32> to vector<16x4xf32>
    %75 = arith.addf %72, %74 : vector<16x4xf32>
    %cst_62 = arith.constant 0.000000e+00 : f32
    %76 = vector.broadcast %cst_62 : f32 to vector<16x4xf32>
    %77 = vector.extract_strided_slice %71 {offsets = [1, 0], sizes = [1, 1], strides = [1, 1]} : vector<2x1xf32> to vector<1x1xf32>
    %78 = vector.broadcast %77 : vector<1x1xf32> to vector<16x4xf32>
    %79 = arith.addf %76, %78 : vector<16x4xf32>
    %c7_63 = arith.constant 7 : index
    %c127 = arith.constant 127 : index
    %80 = vector.load %arg7[%c7_63, %c127] : memref<32x256xf32, #tpu.memory_space<vmem>>, vector<16x4xf32>
    %81 = vector.extract_strided_slice %70 {offsets = [0, 0], sizes = [1, 1], strides = [1, 1]} : vector<2x18xf32> to vector<1x1xf32>
    %82 = vector.broadcast %81 : vector<1x1xf32> to vector<16x4xf32>
    %83 = arith.mulf %82, %80 : vector<16x4xf32>
    %84 = arith.addf %75, %83 : vector<16x4xf32>
    %85 = vector.extract_strided_slice %70 {offsets = [1, 0], sizes = [1, 1], strides = [1, 1]} : vector<2x18xf32> to vector<1x1xf32>
    %86 = vector.broadcast %85 : vector<1x1xf32> to vector<16x4xf32>
    %87 = arith.mulf %86, %80 : vector<16x4xf32>
    %88 = arith.addf %79, %87 : vector<16x4xf32>
    %c7_64 = arith.constant 7 : index
    %c128_65 = arith.constant 128 : index
    %89 = vector.load %arg7[%c7_64, %c128_65] : memref<32x256xf32, #tpu.memory_space<vmem>>, vector<16x4xf32>
    %90 = vector.extract_strided_slice %70 {offsets = [0, 1], sizes = [1, 1], strides = [1, 1]} : vector<2x18xf32> to vector<1x1xf32>
    %91 = vector.broadcast %90 : vector<1x1xf32> to vector<16x4xf32>
    %92 = arith.mulf %91, %89 : vector<16x4xf32>
    %93 = arith.addf %84, %92 : vector<16x4xf32>
    %94 = vector.extract_strided_slice %70 {offsets = [1, 1], sizes = [1, 1], strides = [1, 1]} : vector<2x18xf32> to vector<1x1xf32>
    %95 = vector.broadcast %94 : vector<1x1xf32> to vector<16x4xf32>
    %96 = arith.mulf %95, %89 : vector<16x4xf32>
    %97 = arith.addf %88, %96 : vector<16x4xf32>
    %c7_66 = arith.constant 7 : index
    %c129 = arith.constant 129 : index
    %98 = vector.load %arg7[%c7_66, %c129] : memref<32x256xf32, #tpu.memory_space<vmem>>, vector<16x4xf32>
    %99 = vector.extract_strided_slice %70 {offsets = [0, 2], sizes = [1, 1], strides = [1, 1]} : vector<2x18xf32> to vector<1x1xf32>
    %100 = vector.broadcast %99 : vector<1x1xf32> to vector<16x4xf32>
    %101 = arith.mulf %100, %98 : vector<16x4xf32>
    %102 = arith.addf %93, %101 : vector<16x4xf32>
    %103 = vector.extract_strided_slice %70 {offsets = [1, 2], sizes = [1, 1], strides = [1, 1]} : vector<2x18xf32> to vector<1x1xf32>
    %104 = vector.broadcast %103 : vector<1x1xf32> to vector<16x4xf32>
    %105 = arith.mulf %104, %98 : vector<16x4xf32>
    %106 = arith.addf %97, %105 : vector<16x4xf32>
    %c8_67 = arith.constant 8 : index
    %c127_68 = arith.constant 127 : index
    %107 = vector.load %arg7[%c8_67, %c127_68] : memref<32x256xf32, #tpu.memory_space<vmem>>, vector<16x4xf32>
    %108 = vector.extract_strided_slice %70 {offsets = [0, 3], sizes = [1, 1], strides = [1, 1]} : vector<2x18xf32> to vector<1x1xf32>
    %109 = vector.broadcast %108 : vector<1x1xf32> to vector<16x4xf32>
    %110 = arith.mulf %109, %107 : vector<16x4xf32>
    %111 = arith.addf %102, %110 : vector<16x4xf32>
    %112 = vector.extract_strided_slice %70 {offsets = [1, 3], sizes = [1, 1], strides = [1, 1]} : vector<2x18xf32> to vector<1x1xf32>
    %113 = vector.broadcast %112 : vector<1x1xf32> to vector<16x4xf32>
    %114 = arith.mulf %113, %107 : vector<16x4xf32>
    %115 = arith.addf %106, %114 : vector<16x4xf32>
    %c8_69 = arith.constant 8 : index
    %c128_70 = arith.constant 128 : index
    %116 = vector.load %arg7[%c8_69, %c128_70] : memref<32x256xf32, #tpu.memory_space<vmem>>, vector<16x4xf32>
    %117 = vector.extract_strided_slice %70 {offsets = [0, 4], sizes = [1, 1], strides = [1, 1]} : vector<2x18xf32> to vector<1x1xf32>
    %118 = vector.broadcast %117 : vector<1x1xf32> to vector<16x4xf32>
    %119 = arith.mulf %118, %116 : vector<16x4xf32>
    %120 = arith.addf %111, %119 : vector<16x4xf32>
    %121 = vector.extract_strided_slice %70 {offsets = [1, 4], sizes = [1, 1], strides = [1, 1]} : vector<2x18xf32> to vector<1x1xf32>
    %122 = vector.broadcast %121 : vector<1x1xf32> to vector<16x4xf32>
    %123 = arith.mulf %122, %116 : vector<16x4xf32>
    %124 = arith.addf %115, %123 : vector<16x4xf32>
    %c8_71 = arith.constant 8 : index
    %c129_72 = arith.constant 129 : index
    %125 = vector.load %arg7[%c8_71, %c129_72] : memref<32x256xf32, #tpu.memory_space<vmem>>, vector<16x4xf32>
    %126 = vector.extract_strided_slice %70 {offsets = [0, 5], sizes = [1, 1], strides = [1, 1]} : vector<2x18xf32> to vector<1x1xf32>
    %127 = vector.broadcast %126 : vector<1x1xf32> to vector<16x4xf32>
    %128 = arith.mulf %127, %125 : vector<16x4xf32>
    %129 = arith.addf %120, %128 : vector<16x4xf32>
    %130 = vector.extract_strided_slice %70 {offsets = [1, 5], sizes = [1, 1], strides = [1, 1]} : vector<2x18xf32> to vector<1x1xf32>
    %131 = vector.broadcast %130 : vector<1x1xf32> to vector<16x4xf32>
    %132 = arith.mulf %131, %125 : vector<16x4xf32>
    %133 = arith.addf %124, %132 : vector<16x4xf32>
    %c9_73 = arith.constant 9 : index
    %c127_74 = arith.constant 127 : index
    %134 = vector.load %arg7[%c9_73, %c127_74] : memref<32x256xf32, #tpu.memory_space<vmem>>, vector<16x4xf32>
    %135 = vector.extract_strided_slice %70 {offsets = [0, 6], sizes = [1, 1], strides = [1, 1]} : vector<2x18xf32> to vector<1x1xf32>
    %136 = vector.broadcast %135 : vector<1x1xf32> to vector<16x4xf32>
    %137 = arith.mulf %136, %134 : vector<16x4xf32>
    %138 = arith.addf %129, %137 : vector<16x4xf32>
    %139 = vector.extract_strided_slice %70 {offsets = [1, 6], sizes = [1, 1], strides = [1, 1]} : vector<2x18xf32> to vector<1x1xf32>
    %140 = vector.broadcast %139 : vector<1x1xf32> to vector<16x4xf32>
    %141 = arith.mulf %140, %134 : vector<16x4xf32>
    %142 = arith.addf %133, %141 : vector<16x4xf32>
    %c9_75 = arith.constant 9 : index
    %c128_76 = arith.constant 128 : index
    %143 = vector.load %arg7[%c9_75, %c128_76] : memref<32x256xf32, #tpu.memory_space<vmem>>, vector<16x4xf32>
    %144 = vector.extract_strided_slice %70 {offsets = [0, 7], sizes = [1, 1], strides = [1, 1]} : vector<2x18xf32> to vector<1x1xf32>
    %145 = vector.broadcast %144 : vector<1x1xf32> to vector<16x4xf32>
    %146 = arith.mulf %145, %143 : vector<16x4xf32>
    %147 = arith.addf %138, %146 : vector<16x4xf32>
    %148 = vector.extract_strided_slice %70 {offsets = [1, 7], sizes = [1, 1], strides = [1, 1]} : vector<2x18xf32> to vector<1x1xf32>
    %149 = vector.broadcast %148 : vector<1x1xf32> to vector<16x4xf32>
    %150 = arith.mulf %149, %143 : vector<16x4xf32>
    %151 = arith.addf %142, %150 : vector<16x4xf32>
    %c9_77 = arith.constant 9 : index
    %c129_78 = arith.constant 129 : index
    %152 = vector.load %arg7[%c9_77, %c129_78] : memref<32x256xf32, #tpu.memory_space<vmem>>, vector<16x4xf32>
    %153 = vector.extract_strided_slice %70 {offsets = [0, 8], sizes = [1, 1], strides = [1, 1]} : vector<2x18xf32> to vector<1x1xf32>
    %154 = vector.broadcast %153 : vector<1x1xf32> to vector<16x4xf32>
    %155 = arith.mulf %154, %152 : vector<16x4xf32>
    %156 = arith.addf %147, %155 : vector<16x4xf32>
    %157 = vector.extract_strided_slice %70 {offsets = [1, 8], sizes = [1, 1], strides = [1, 1]} : vector<2x18xf32> to vector<1x1xf32>
    %158 = vector.broadcast %157 : vector<1x1xf32> to vector<16x4xf32>
    %159 = arith.mulf %158, %152 : vector<16x4xf32>
    %160 = arith.addf %151, %159 : vector<16x4xf32>
    %c7_79 = arith.constant 7 : index
    %c127_80 = arith.constant 127 : index
    %161 = vector.load %arg8[%c7_79, %c127_80] : memref<32x256xf32, #tpu.memory_space<vmem>>, vector<16x4xf32>
    %162 = vector.extract_strided_slice %70 {offsets = [0, 9], sizes = [1, 1], strides = [1, 1]} : vector<2x18xf32> to vector<1x1xf32>
    %163 = vector.broadcast %162 : vector<1x1xf32> to vector<16x4xf32>
    %164 = arith.mulf %163, %161 : vector<16x4xf32>
    %165 = arith.addf %156, %164 : vector<16x4xf32>
    %166 = vector.extract_strided_slice %70 {offsets = [1, 9], sizes = [1, 1], strides = [1, 1]} : vector<2x18xf32> to vector<1x1xf32>
    %167 = vector.broadcast %166 : vector<1x1xf32> to vector<16x4xf32>
    %168 = arith.mulf %167, %161 : vector<16x4xf32>
    %169 = arith.addf %160, %168 : vector<16x4xf32>
    %c7_81 = arith.constant 7 : index
    %c128_82 = arith.constant 128 : index
    %170 = vector.load %arg8[%c7_81, %c128_82] : memref<32x256xf32, #tpu.memory_space<vmem>>, vector<16x4xf32>
    %171 = vector.extract_strided_slice %70 {offsets = [0, 10], sizes = [1, 1], strides = [1, 1]} : vector<2x18xf32> to vector<1x1xf32>
    %172 = vector.broadcast %171 : vector<1x1xf32> to vector<16x4xf32>
    %173 = arith.mulf %172, %170 : vector<16x4xf32>
    %174 = arith.addf %165, %173 : vector<16x4xf32>
    %175 = vector.extract_strided_slice %70 {offsets = [1, 10], sizes = [1, 1], strides = [1, 1]} : vector<2x18xf32> to vector<1x1xf32>
    %176 = vector.broadcast %175 : vector<1x1xf32> to vector<16x4xf32>
    %177 = arith.mulf %176, %170 : vector<16x4xf32>
    %178 = arith.addf %169, %177 : vector<16x4xf32>
    %c7_83 = arith.constant 7 : index
    %c129_84 = arith.constant 129 : index
    %179 = vector.load %arg8[%c7_83, %c129_84] : memref<32x256xf32, #tpu.memory_space<vmem>>, vector<16x4xf32>
    %180 = vector.extract_strided_slice %70 {offsets = [0, 11], sizes = [1, 1], strides = [1, 1]} : vector<2x18xf32> to vector<1x1xf32>
    %181 = vector.broadcast %180 : vector<1x1xf32> to vector<16x4xf32>
    %182 = arith.mulf %181, %179 : vector<16x4xf32>
    %183 = arith.addf %174, %182 : vector<16x4xf32>
    %184 = vector.extract_strided_slice %70 {offsets = [1, 11], sizes = [1, 1], strides = [1, 1]} : vector<2x18xf32> to vector<1x1xf32>
    %185 = vector.broadcast %184 : vector<1x1xf32> to vector<16x4xf32>
    %186 = arith.mulf %185, %179 : vector<16x4xf32>
    %187 = arith.addf %178, %186 : vector<16x4xf32>
    %c8_85 = arith.constant 8 : index
    %c127_86 = arith.constant 127 : index
    %188 = vector.load %arg8[%c8_85, %c127_86] : memref<32x256xf32, #tpu.memory_space<vmem>>, vector<16x4xf32>
    %189 = vector.extract_strided_slice %70 {offsets = [0, 12], sizes = [1, 1], strides = [1, 1]} : vector<2x18xf32> to vector<1x1xf32>
    %190 = vector.broadcast %189 : vector<1x1xf32> to vector<16x4xf32>
    %191 = arith.mulf %190, %188 : vector<16x4xf32>
    %192 = arith.addf %183, %191 : vector<16x4xf32>
    %193 = vector.extract_strided_slice %70 {offsets = [1, 12], sizes = [1, 1], strides = [1, 1]} : vector<2x18xf32> to vector<1x1xf32>
    %194 = vector.broadcast %193 : vector<1x1xf32> to vector<16x4xf32>
    %195 = arith.mulf %194, %188 : vector<16x4xf32>
    %196 = arith.addf %187, %195 : vector<16x4xf32>
    %c8_87 = arith.constant 8 : index
    %c128_88 = arith.constant 128 : index
    %197 = vector.load %arg8[%c8_87, %c128_88] : memref<32x256xf32, #tpu.memory_space<vmem>>, vector<16x4xf32>
    %198 = vector.extract_strided_slice %70 {offsets = [0, 13], sizes = [1, 1], strides = [1, 1]} : vector<2x18xf32> to vector<1x1xf32>
    %199 = vector.broadcast %198 : vector<1x1xf32> to vector<16x4xf32>
    %200 = arith.mulf %199, %197 : vector<16x4xf32>
    %201 = arith.addf %192, %200 : vector<16x4xf32>
    %202 = vector.extract_strided_slice %70 {offsets = [1, 13], sizes = [1, 1], strides = [1, 1]} : vector<2x18xf32> to vector<1x1xf32>
    %203 = vector.broadcast %202 : vector<1x1xf32> to vector<16x4xf32>
    %204 = arith.mulf %203, %197 : vector<16x4xf32>
    %205 = arith.addf %196, %204 : vector<16x4xf32>
    %c8_89 = arith.constant 8 : index
    %c129_90 = arith.constant 129 : index
    %206 = vector.load %arg8[%c8_89, %c129_90] : memref<32x256xf32, #tpu.memory_space<vmem>>, vector<16x4xf32>
    %207 = vector.extract_strided_slice %70 {offsets = [0, 14], sizes = [1, 1], strides = [1, 1]} : vector<2x18xf32> to vector<1x1xf32>
    %208 = vector.broadcast %207 : vector<1x1xf32> to vector<16x4xf32>
    %209 = arith.mulf %208, %206 : vector<16x4xf32>
    %210 = arith.addf %201, %209 : vector<16x4xf32>
    %211 = vector.extract_strided_slice %70 {offsets = [1, 14], sizes = [1, 1], strides = [1, 1]} : vector<2x18xf32> to vector<1x1xf32>
    %212 = vector.broadcast %211 : vector<1x1xf32> to vector<16x4xf32>
    %213 = arith.mulf %212, %206 : vector<16x4xf32>
    %214 = arith.addf %205, %213 : vector<16x4xf32>
    %c9_91 = arith.constant 9 : index
    %c127_92 = arith.constant 127 : index
    %215 = vector.load %arg8[%c9_91, %c127_92] : memref<32x256xf32, #tpu.memory_space<vmem>>, vector<16x4xf32>
    %216 = vector.extract_strided_slice %70 {offsets = [0, 15], sizes = [1, 1], strides = [1, 1]} : vector<2x18xf32> to vector<1x1xf32>
    %217 = vector.broadcast %216 : vector<1x1xf32> to vector<16x4xf32>
    %218 = arith.mulf %217, %215 : vector<16x4xf32>
    %219 = arith.addf %210, %218 : vector<16x4xf32>
    %220 = vector.extract_strided_slice %70 {offsets = [1, 15], sizes = [1, 1], strides = [1, 1]} : vector<2x18xf32> to vector<1x1xf32>
    %221 = vector.broadcast %220 : vector<1x1xf32> to vector<16x4xf32>
    %222 = arith.mulf %221, %215 : vector<16x4xf32>
    %223 = arith.addf %214, %222 : vector<16x4xf32>
    %c9_93 = arith.constant 9 : index
    %c128_94 = arith.constant 128 : index
    %224 = vector.load %arg8[%c9_93, %c128_94] : memref<32x256xf32, #tpu.memory_space<vmem>>, vector<16x4xf32>
    %225 = vector.extract_strided_slice %70 {offsets = [0, 16], sizes = [1, 1], strides = [1, 1]} : vector<2x18xf32> to vector<1x1xf32>
    %226 = vector.broadcast %225 : vector<1x1xf32> to vector<16x4xf32>
    %227 = arith.mulf %226, %224 : vector<16x4xf32>
    %228 = arith.addf %219, %227 : vector<16x4xf32>
    %229 = vector.extract_strided_slice %70 {offsets = [1, 16], sizes = [1, 1], strides = [1, 1]} : vector<2x18xf32> to vector<1x1xf32>
    %230 = vector.broadcast %229 : vector<1x1xf32> to vector<16x4xf32>
    %231 = arith.mulf %230, %224 : vector<16x4xf32>
    %232 = arith.addf %223, %231 : vector<16x4xf32>
    %c9_95 = arith.constant 9 : index
    %c129_96 = arith.constant 129 : index
    %233 = vector.load %arg8[%c9_95, %c129_96] : memref<32x256xf32, #tpu.memory_space<vmem>>, vector<16x4xf32>
    %234 = vector.extract_strided_slice %70 {offsets = [0, 17], sizes = [1, 1], strides = [1, 1]} : vector<2x18xf32> to vector<1x1xf32>
    %235 = vector.broadcast %234 : vector<1x1xf32> to vector<16x4xf32>
    %236 = arith.mulf %235, %233 : vector<16x4xf32>
    %237 = arith.addf %228, %236 : vector<16x4xf32>
    %238 = vector.extract_strided_slice %70 {offsets = [1, 17], sizes = [1, 1], strides = [1, 1]} : vector<2x18xf32> to vector<1x1xf32>
    %239 = vector.broadcast %238 : vector<1x1xf32> to vector<16x4xf32>
    %240 = arith.mulf %239, %233 : vector<16x4xf32>
    %241 = arith.addf %232, %240 : vector<16x4xf32>
    %c0_97 = arith.constant 0 : index
    %c0_98 = arith.constant 0 : index
    %c0_99 = arith.constant 0 : index
    %c0_100 = arith.constant 0 : index
    %242 = vector.load %arg4[%c0_97, %c0_98, %c0_99, %c0_100] : memref<1x2x16x4xf32, #tpu.memory_space<vmem>>, vector<1x1x16x4xf32>
    %243 = vector.shape_cast %242 : vector<1x1x16x4xf32> to vector<16x4xf32>
    %244 = vector.shape_cast %237 : vector<16x4xf32> to vector<1x1x16x4xf32>
    tpu.vector_store %arg4[%c0_97, %c0_98, %c0_99, %c0_100], %244 {strides = array<i32>} : memref<1x2x16x4xf32, #tpu.memory_space<vmem>>, vector<1x1x16x4xf32>,
    %c0_101 = arith.constant 0 : index
    %c1_102 = arith.constant 1 : index
    %c0_103 = arith.constant 0 : index
    %c0_104 = arith.constant 0 : index
    %245 = vector.load %arg4[%c0_101, %c1_102, %c0_103, %c0_104] : memref<1x2x16x4xf32, #tpu.memory_space<vmem>>, vector<1x1x16x4xf32>
    %246 = vector.shape_cast %245 : vector<1x1x16x4xf32> to vector<16x4xf32>
    %247 = vector.shape_cast %241 : vector<16x4xf32> to vector<1x1x16x4xf32>
    tpu.vector_store %arg4[%c0_101, %c1_102, %c0_103, %c0_104], %247 {strides = array<i32>} : memref<1x2x16x4xf32, #tpu.memory_space<vmem>>, vector<1x1x16x4xf32>,
    %cst_105 = arith.constant dense<0.000000e+00> : vector<16xf32>
    %248 = vector.multi_reduction <add>, %237, %cst_105 [1] : vector<16x4xf32> to vector<16xf32>
    %249 = vector.shape_cast %248 : vector<16xf32> to vector<16x1xf32>
    %c0_106 = arith.constant 0 : index
    %c0_107 = arith.constant 0 : index
    %c0_108 = arith.constant 0 : index
    %c0_109 = arith.constant 0 : index
    %250 = vector.load %arg5[%c0_106, %c0_107, %c0_108, %c0_109] : memref<1x2x16x1xf32, #tpu.memory_space<vmem>>, vector<1x1x16x1xf32>
    %251 = vector.shape_cast %250 : vector<1x1x16x1xf32> to vector<16x1xf32>
    %252 = vector.shape_cast %249 : vector<16x1xf32> to vector<1x1x16x1xf32>
    tpu.vector_store %arg5[%c0_106, %c0_107, %c0_108, %c0_109], %252 {strides = array<i32>} : memref<1x2x16x1xf32, #tpu.memory_space<vmem>>, vector<1x1x16x1xf32>,
    %cst_110 = arith.constant dense<0.000000e+00> : vector<16xf32>
    %253 = vector.multi_reduction <add>, %241, %cst_110 [1] : vector<16x4xf32> to vector<16xf32>
    %254 = vector.shape_cast %253 : vector<16xf32> to vector<16x1xf32>
    %c0_111 = arith.constant 0 : index
    %c1_112 = arith.constant 1 : index
    %c0_113 = arith.constant 0 : index
    %c0_114 = arith.constant 0 : index
    %255 = vector.load %arg5[%c0_111, %c1_112, %c0_113, %c0_114] : memref<1x2x16x1xf32, #tpu.memory_space<vmem>>, vector<1x1x16x1xf32>
    %256 = vector.shape_cast %255 : vector<1x1x16x1xf32> to vector<16x1xf32>
    %257 = vector.shape_cast %254 : vector<16x1xf32> to vector<1x1x16x1xf32>
    tpu.vector_store %arg5[%c0_111, %c1_112, %c0_113, %c0_114], %257 {strides = array<i32>} : memref<1x2x16x1xf32, #tpu.memory_space<vmem>>, vector<1x1x16x1xf32>,
    %258 = arith.mulf %237, %237 : vector<16x4xf32>
    %cst_115 = arith.constant dense<0.000000e+00> : vector<16xf32>
    %259 = vector.multi_reduction <add>, %258, %cst_115 [1] : vector<16x4xf32> to vector<16xf32>
    %260 = vector.shape_cast %259 : vector<16xf32> to vector<16x1xf32>
    %c0_116 = arith.constant 0 : index
    %c0_117 = arith.constant 0 : index
    %c0_118 = arith.constant 0 : index
    %c0_119 = arith.constant 0 : index
    %261 = vector.load %arg6[%c0_116, %c0_117, %c0_118, %c0_119] : memref<1x2x16x1xf32, #tpu.memory_space<vmem>>, vector<1x1x16x1xf32>
    %262 = vector.shape_cast %261 : vector<1x1x16x1xf32> to vector<16x1xf32>
    %263 = vector.shape_cast %260 : vector<16x1xf32> to vector<1x1x16x1xf32>
    tpu.vector_store %arg6[%c0_116, %c0_117, %c0_118, %c0_119], %263 {strides = array<i32>} : memref<1x2x16x1xf32, #tpu.memory_space<vmem>>, vector<1x1x16x1xf32>,
    %264 = arith.mulf %241, %241 : vector<16x4xf32>
    %cst_120 = arith.constant dense<0.000000e+00> : vector<16xf32>
    %265 = vector.multi_reduction <add>, %264, %cst_120 [1] : vector<16x4xf32> to vector<16xf32>
    %266 = vector.shape_cast %265 : vector<16xf32> to vector<16x1xf32>
    %c0_121 = arith.constant 0 : index
    %c1_122 = arith.constant 1 : index
    %c0_123 = arith.constant 0 : index
    %c0_124 = arith.constant 0 : index
    %267 = vector.load %arg6[%c0_121, %c1_122, %c0_123, %c0_124] : memref<1x2x16x1xf32, #tpu.memory_space<vmem>>, vector<1x1x16x1xf32>
    %268 = vector.shape_cast %267 : vector<1x1x16x1xf32> to vector<16x1xf32>
    %269 = vector.shape_cast %266 : vector<16x1xf32> to vector<1x1x16x1xf32>
    tpu.vector_store %arg6[%c0_121, %c1_122, %c0_123, %c0_124], %269 {strides = array<i32>} : memref<1x2x16x1xf32, #tpu.memory_space<vmem>>, vector<1x1x16x1xf32>,
    return
  }
  func.func @transform_0(%arg0: i32) -> (i32, i32, i32, i32) {
    %c0_i32 = arith.constant 0 : i32
    %c0_i32_0 = arith.constant 0 : i32
    %c0_i32_1 = arith.constant 0 : i32
    %c0_i32_2 = arith.constant 0 : i32
    return %arg0, %c0_i32, %c0_i32_0, %c0_i32_1 : i32, i32, i32, i32
  }
  func.func @transform_1(%arg0: i32) -> (i32, i32) {
    %c0_i32 = arith.constant 0 : i32
    %c0_i32_0 = arith.constant 0 : i32
    %c0_i32_1 = arith.constant 0 : i32
    return %c0_i32, %c0_i32_0 : i32, i32
  }
  func.func @transform_2(%arg0: i32) -> (i32, i32) {
    %c0_i32 = arith.constant 0 : i32
    %c0_i32_0 = arith.constant 0 : i32
    %c0_i32_1 = arith.constant 0 : i32
    return %c0_i32, %c0_i32_0 : i32, i32
  }
  func.func @transform_3(%arg0: i32) -> (i32, i32, i32, i32) {
    %c0_i32 = arith.constant 0 : i32
    %c0_i32_0 = arith.constant 0 : i32
    %c0_i32_1 = arith.constant 0 : i32
    %c0_i32_2 = arith.constant 0 : i32
    return %arg0, %c0_i32, %c0_i32_0, %c0_i32_1 : i32, i32, i32, i32
  }
  func.func @transform_4(%arg0: i32) -> (i32, i32, i32, i32) {
    %c0_i32 = arith.constant 0 : i32
    %c0_i32_0 = arith.constant 0 : i32
    %c0_i32_1 = arith.constant 0 : i32
    %c0_i32_2 = arith.constant 0 : i32
    return %arg0, %c0_i32, %c0_i32_0, %c0_i32_1 : i32, i32, i32, i32
  }
  func.func @transform_5(%arg0: i32) -> (i32, i32, i32, i32) {
    %c0_i32 = arith.constant 0 : i32
    %c0_i32_0 = arith.constant 0 : i32
    %c0_i32_1 = arith.constant 0 : i32
    %c0_i32_2 = arith.constant 0 : i32
    return %arg0, %c0_i32, %c0_i32_0, %c0_i32_1 : i32, i32, i32, i32
  }
}

module attributes {stable_mosaic.version = 11 : i64} {
  func.func @_gate_front_kernel(%arg0: i32, %arg1: memref<1x4x16x16xf32, #tpu.memory_space<vmem>>, %arg2: memref<2x18xf32, #tpu.memory_space<vmem>>, %arg3: memref<2x1xf32, #tpu.memory_space<vmem>>, %arg4: memref<1x2x16x16xf32, #tpu.memory_space<vmem>>, %arg5: memref<1x2x16x1xf32, #tpu.memory_space<vmem>>, %arg6: memref<1x2x16x1xf32, #tpu.memory_space<vmem>>, %arg7: memref<32x256xf32, #tpu.memory_space<vmem>>, %arg8: memref<32x256xf32, #tpu.memory_space<vmem>>) attributes {dimension_semantics = [#tpu.dimension_semantics<parallel>], iteration_bounds = array<i64: 2>, scalar_prefetch = 0 : i64, scratch_operands = 2 : i64, tpu.core_type = #tpu.core_type<tc>, window_params = [{transform_indices = @transform_0, window_bounds = array<i64: 1, 4, 16, 16>}, {pipeline_mode = #tpu.pipeline_mode<synchronous>, transform_indices = @transform_1, window_bounds = array<i64: 2, 18>}, {pipeline_mode = #tpu.pipeline_mode<synchronous>, transform_indices = @transform_2, window_bounds = array<i64: 2, 1>}, {transform_indices = @transform_3, window_bounds = array<i64: 1, 2, 16, 16>}, {transform_indices = @transform_4, window_bounds = array<i64: 1, 2, 16, 1>}, {transform_indices = @transform_5, window_bounds = array<i64: 1, 2, 16, 1>}]} {
    %c0 = arith.constant 0 : index
    %c0_0 = arith.constant 0 : index
    %c0_1 = arith.constant 0 : index
    %c0_2 = arith.constant 0 : index
    %0 = vector.load %arg1[%c0, %c0_0, %c0_1, %c0_2] : memref<1x4x16x16xf32, #tpu.memory_space<vmem>>, vector<1x1x16x16xf32>
    %1 = vector.shape_cast %0 : vector<1x1x16x16xf32> to vector<16x16xf32>
    %c0_3 = arith.constant 0 : index
    %c1 = arith.constant 1 : index
    %c0_4 = arith.constant 0 : index
    %c0_5 = arith.constant 0 : index
    %2 = vector.load %arg1[%c0_3, %c1, %c0_4, %c0_5] : memref<1x4x16x16xf32, #tpu.memory_space<vmem>>, vector<1x1x16x16xf32>
    %3 = vector.shape_cast %2 : vector<1x1x16x16xf32> to vector<16x16xf32>
    %4 = arith.maximumf %1, %3 : vector<16x16xf32>
    %5 = arith.addf %1, %3 : vector<16x16xf32>
    %c0_6 = arith.constant 0 : index
    %c2 = arith.constant 2 : index
    %c0_7 = arith.constant 0 : index
    %c0_8 = arith.constant 0 : index
    %6 = vector.load %arg1[%c0_6, %c2, %c0_7, %c0_8] : memref<1x4x16x16xf32, #tpu.memory_space<vmem>>, vector<1x1x16x16xf32>
    %7 = vector.shape_cast %6 : vector<1x1x16x16xf32> to vector<16x16xf32>
    %8 = arith.maximumf %4, %7 : vector<16x16xf32>
    %9 = arith.addf %5, %7 : vector<16x16xf32>
    %c0_9 = arith.constant 0 : index
    %c3 = arith.constant 3 : index
    %c0_10 = arith.constant 0 : index
    %c0_11 = arith.constant 0 : index
    %10 = vector.load %arg1[%c0_9, %c3, %c0_10, %c0_11] : memref<1x4x16x16xf32, #tpu.memory_space<vmem>>, vector<1x1x16x16xf32>
    %11 = vector.shape_cast %10 : vector<1x1x16x16xf32> to vector<16x16xf32>
    %12 = arith.maximumf %8, %11 : vector<16x16xf32>
    %13 = arith.addf %9, %11 : vector<16x16xf32>
    %cst = arith.constant 2.500000e-01 : f32
    %14 = vector.broadcast %cst : f32 to vector<16x16xf32>
    %15 = arith.mulf %13, %14 : vector<16x16xf32>
    %cst_12 = arith.constant 0.000000e+00 : f32
    %16 = vector.broadcast %cst_12 : f32 to vector<32x256xf32>
    %c0_13 = arith.constant 0 : index
    %c0_14 = arith.constant 0 : index
    %17 = vector.load %arg7[%c0_13, %c0_14] : memref<32x256xf32, #tpu.memory_space<vmem>>, vector<32x256xf32>
    tpu.vector_store %arg7[%c0_13, %c0_14], %16 {strides = array<i32>} : memref<32x256xf32, #tpu.memory_space<vmem>>, vector<32x256xf32>,
    %cst_15 = arith.constant 0.000000e+00 : f32
    %18 = vector.broadcast %cst_15 : f32 to vector<32x256xf32>
    %c0_16 = arith.constant 0 : index
    %c0_17 = arith.constant 0 : index
    %19 = vector.load %arg8[%c0_16, %c0_17] : memref<32x256xf32, #tpu.memory_space<vmem>>, vector<32x256xf32>
    tpu.vector_store %arg8[%c0_16, %c0_17], %18 {strides = array<i32>} : memref<32x256xf32, #tpu.memory_space<vmem>>, vector<32x256xf32>,
    %c8 = arith.constant 8 : index
    %c128 = arith.constant 128 : index
    %20 = vector.load %arg7[%c8, %c128] : memref<32x256xf32, #tpu.memory_space<vmem>>, vector<16x16xf32>
    tpu.vector_store %arg7[%c8, %c128], %12 {strides = array<i32>} : memref<32x256xf32, #tpu.memory_space<vmem>>, vector<16x16xf32>,
    %c8_18 = arith.constant 8 : index
    %c128_19 = arith.constant 128 : index
    %21 = vector.load %arg8[%c8_18, %c128_19] : memref<32x256xf32, #tpu.memory_space<vmem>>, vector<16x16xf32>
    tpu.vector_store %arg8[%c8_18, %c128_19], %15 {strides = array<i32>} : memref<32x256xf32, #tpu.memory_space<vmem>>, vector<16x16xf32>,
    %c0_20 = arith.constant 0 : index
    %c0_21 = arith.constant 0 : index
    %22 = vector.load %arg2[%c0_20, %c0_21] : memref<2x18xf32, #tpu.memory_space<vmem>>, vector<2x18xf32>
    %c0_22 = arith.constant 0 : index
    %c0_23 = arith.constant 0 : index
    %23 = vector.load %arg3[%c0_22, %c0_23] : memref<2x1xf32, #tpu.memory_space<vmem>>, vector<2x1xf32>
    %cst_24 = arith.constant 0.000000e+00 : f32
    %24 = vector.broadcast %cst_24 : f32 to vector<16x16xf32>
    %25 = vector.extract_strided_slice %23 {offsets = [0, 0], sizes = [1, 1], strides = [1, 1]} : vector<2x1xf32> to vector<1x1xf32>
    %26 = vector.broadcast %25 : vector<1x1xf32> to vector<16x16xf32>
    %27 = arith.addf %24, %26 : vector<16x16xf32>
    %cst_25 = arith.constant 0.000000e+00 : f32
    %28 = vector.broadcast %cst_25 : f32 to vector<16x16xf32>
    %29 = vector.extract_strided_slice %23 {offsets = [1, 0], sizes = [1, 1], strides = [1, 1]} : vector<2x1xf32> to vector<1x1xf32>
    %30 = vector.broadcast %29 : vector<1x1xf32> to vector<16x16xf32>
    %31 = arith.addf %28, %30 : vector<16x16xf32>
    %c7 = arith.constant 7 : index
    %c127 = arith.constant 127 : index
    %32 = vector.load %arg7[%c7, %c127] : memref<32x256xf32, #tpu.memory_space<vmem>>, vector<16x16xf32>
    %33 = vector.extract_strided_slice %22 {offsets = [0, 0], sizes = [1, 1], strides = [1, 1]} : vector<2x18xf32> to vector<1x1xf32>
    %34 = vector.broadcast %33 : vector<1x1xf32> to vector<16x16xf32>
    %35 = arith.mulf %34, %32 : vector<16x16xf32>
    %36 = arith.addf %27, %35 : vector<16x16xf32>
    %37 = vector.extract_strided_slice %22 {offsets = [1, 0], sizes = [1, 1], strides = [1, 1]} : vector<2x18xf32> to vector<1x1xf32>
    %38 = vector.broadcast %37 : vector<1x1xf32> to vector<16x16xf32>
    %39 = arith.mulf %38, %32 : vector<16x16xf32>
    %40 = arith.addf %31, %39 : vector<16x16xf32>
    %c7_26 = arith.constant 7 : index
    %c128_27 = arith.constant 128 : index
    %41 = vector.load %arg7[%c7_26, %c128_27] : memref<32x256xf32, #tpu.memory_space<vmem>>, vector<16x16xf32>
    %42 = vector.extract_strided_slice %22 {offsets = [0, 1], sizes = [1, 1], strides = [1, 1]} : vector<2x18xf32> to vector<1x1xf32>
    %43 = vector.broadcast %42 : vector<1x1xf32> to vector<16x16xf32>
    %44 = arith.mulf %43, %41 : vector<16x16xf32>
    %45 = arith.addf %36, %44 : vector<16x16xf32>
    %46 = vector.extract_strided_slice %22 {offsets = [1, 1], sizes = [1, 1], strides = [1, 1]} : vector<2x18xf32> to vector<1x1xf32>
    %47 = vector.broadcast %46 : vector<1x1xf32> to vector<16x16xf32>
    %48 = arith.mulf %47, %41 : vector<16x16xf32>
    %49 = arith.addf %40, %48 : vector<16x16xf32>
    %c7_28 = arith.constant 7 : index
    %c129 = arith.constant 129 : index
    %50 = vector.load %arg7[%c7_28, %c129] : memref<32x256xf32, #tpu.memory_space<vmem>>, vector<16x16xf32>
    %51 = vector.extract_strided_slice %22 {offsets = [0, 2], sizes = [1, 1], strides = [1, 1]} : vector<2x18xf32> to vector<1x1xf32>
    %52 = vector.broadcast %51 : vector<1x1xf32> to vector<16x16xf32>
    %53 = arith.mulf %52, %50 : vector<16x16xf32>
    %54 = arith.addf %45, %53 : vector<16x16xf32>
    %55 = vector.extract_strided_slice %22 {offsets = [1, 2], sizes = [1, 1], strides = [1, 1]} : vector<2x18xf32> to vector<1x1xf32>
    %56 = vector.broadcast %55 : vector<1x1xf32> to vector<16x16xf32>
    %57 = arith.mulf %56, %50 : vector<16x16xf32>
    %58 = arith.addf %49, %57 : vector<16x16xf32>
    %c8_29 = arith.constant 8 : index
    %c127_30 = arith.constant 127 : index
    %59 = vector.load %arg7[%c8_29, %c127_30] : memref<32x256xf32, #tpu.memory_space<vmem>>, vector<16x16xf32>
    %60 = vector.extract_strided_slice %22 {offsets = [0, 3], sizes = [1, 1], strides = [1, 1]} : vector<2x18xf32> to vector<1x1xf32>
    %61 = vector.broadcast %60 : vector<1x1xf32> to vector<16x16xf32>
    %62 = arith.mulf %61, %59 : vector<16x16xf32>
    %63 = arith.addf %54, %62 : vector<16x16xf32>
    %64 = vector.extract_strided_slice %22 {offsets = [1, 3], sizes = [1, 1], strides = [1, 1]} : vector<2x18xf32> to vector<1x1xf32>
    %65 = vector.broadcast %64 : vector<1x1xf32> to vector<16x16xf32>
    %66 = arith.mulf %65, %59 : vector<16x16xf32>
    %67 = arith.addf %58, %66 : vector<16x16xf32>
    %c8_31 = arith.constant 8 : index
    %c128_32 = arith.constant 128 : index
    %68 = vector.load %arg7[%c8_31, %c128_32] : memref<32x256xf32, #tpu.memory_space<vmem>>, vector<16x16xf32>
    %69 = vector.extract_strided_slice %22 {offsets = [0, 4], sizes = [1, 1], strides = [1, 1]} : vector<2x18xf32> to vector<1x1xf32>
    %70 = vector.broadcast %69 : vector<1x1xf32> to vector<16x16xf32>
    %71 = arith.mulf %70, %68 : vector<16x16xf32>
    %72 = arith.addf %63, %71 : vector<16x16xf32>
    %73 = vector.extract_strided_slice %22 {offsets = [1, 4], sizes = [1, 1], strides = [1, 1]} : vector<2x18xf32> to vector<1x1xf32>
    %74 = vector.broadcast %73 : vector<1x1xf32> to vector<16x16xf32>
    %75 = arith.mulf %74, %68 : vector<16x16xf32>
    %76 = arith.addf %67, %75 : vector<16x16xf32>
    %c8_33 = arith.constant 8 : index
    %c129_34 = arith.constant 129 : index
    %77 = vector.load %arg7[%c8_33, %c129_34] : memref<32x256xf32, #tpu.memory_space<vmem>>, vector<16x16xf32>
    %78 = vector.extract_strided_slice %22 {offsets = [0, 5], sizes = [1, 1], strides = [1, 1]} : vector<2x18xf32> to vector<1x1xf32>
    %79 = vector.broadcast %78 : vector<1x1xf32> to vector<16x16xf32>
    %80 = arith.mulf %79, %77 : vector<16x16xf32>
    %81 = arith.addf %72, %80 : vector<16x16xf32>
    %82 = vector.extract_strided_slice %22 {offsets = [1, 5], sizes = [1, 1], strides = [1, 1]} : vector<2x18xf32> to vector<1x1xf32>
    %83 = vector.broadcast %82 : vector<1x1xf32> to vector<16x16xf32>
    %84 = arith.mulf %83, %77 : vector<16x16xf32>
    %85 = arith.addf %76, %84 : vector<16x16xf32>
    %c9 = arith.constant 9 : index
    %c127_35 = arith.constant 127 : index
    %86 = vector.load %arg7[%c9, %c127_35] : memref<32x256xf32, #tpu.memory_space<vmem>>, vector<16x16xf32>
    %87 = vector.extract_strided_slice %22 {offsets = [0, 6], sizes = [1, 1], strides = [1, 1]} : vector<2x18xf32> to vector<1x1xf32>
    %88 = vector.broadcast %87 : vector<1x1xf32> to vector<16x16xf32>
    %89 = arith.mulf %88, %86 : vector<16x16xf32>
    %90 = arith.addf %81, %89 : vector<16x16xf32>
    %91 = vector.extract_strided_slice %22 {offsets = [1, 6], sizes = [1, 1], strides = [1, 1]} : vector<2x18xf32> to vector<1x1xf32>
    %92 = vector.broadcast %91 : vector<1x1xf32> to vector<16x16xf32>
    %93 = arith.mulf %92, %86 : vector<16x16xf32>
    %94 = arith.addf %85, %93 : vector<16x16xf32>
    %c9_36 = arith.constant 9 : index
    %c128_37 = arith.constant 128 : index
    %95 = vector.load %arg7[%c9_36, %c128_37] : memref<32x256xf32, #tpu.memory_space<vmem>>, vector<16x16xf32>
    %96 = vector.extract_strided_slice %22 {offsets = [0, 7], sizes = [1, 1], strides = [1, 1]} : vector<2x18xf32> to vector<1x1xf32>
    %97 = vector.broadcast %96 : vector<1x1xf32> to vector<16x16xf32>
    %98 = arith.mulf %97, %95 : vector<16x16xf32>
    %99 = arith.addf %90, %98 : vector<16x16xf32>
    %100 = vector.extract_strided_slice %22 {offsets = [1, 7], sizes = [1, 1], strides = [1, 1]} : vector<2x18xf32> to vector<1x1xf32>
    %101 = vector.broadcast %100 : vector<1x1xf32> to vector<16x16xf32>
    %102 = arith.mulf %101, %95 : vector<16x16xf32>
    %103 = arith.addf %94, %102 : vector<16x16xf32>
    %c9_38 = arith.constant 9 : index
    %c129_39 = arith.constant 129 : index
    %104 = vector.load %arg7[%c9_38, %c129_39] : memref<32x256xf32, #tpu.memory_space<vmem>>, vector<16x16xf32>
    %105 = vector.extract_strided_slice %22 {offsets = [0, 8], sizes = [1, 1], strides = [1, 1]} : vector<2x18xf32> to vector<1x1xf32>
    %106 = vector.broadcast %105 : vector<1x1xf32> to vector<16x16xf32>
    %107 = arith.mulf %106, %104 : vector<16x16xf32>
    %108 = arith.addf %99, %107 : vector<16x16xf32>
    %109 = vector.extract_strided_slice %22 {offsets = [1, 8], sizes = [1, 1], strides = [1, 1]} : vector<2x18xf32> to vector<1x1xf32>
    %110 = vector.broadcast %109 : vector<1x1xf32> to vector<16x16xf32>
    %111 = arith.mulf %110, %104 : vector<16x16xf32>
    %112 = arith.addf %103, %111 : vector<16x16xf32>
    %c7_40 = arith.constant 7 : index
    %c127_41 = arith.constant 127 : index
    %113 = vector.load %arg8[%c7_40, %c127_41] : memref<32x256xf32, #tpu.memory_space<vmem>>, vector<16x16xf32>
    %114 = vector.extract_strided_slice %22 {offsets = [0, 9], sizes = [1, 1], strides = [1, 1]} : vector<2x18xf32> to vector<1x1xf32>
    %115 = vector.broadcast %114 : vector<1x1xf32> to vector<16x16xf32>
    %116 = arith.mulf %115, %113 : vector<16x16xf32>
    %117 = arith.addf %108, %116 : vector<16x16xf32>
    %118 = vector.extract_strided_slice %22 {offsets = [1, 9], sizes = [1, 1], strides = [1, 1]} : vector<2x18xf32> to vector<1x1xf32>
    %119 = vector.broadcast %118 : vector<1x1xf32> to vector<16x16xf32>
    %120 = arith.mulf %119, %113 : vector<16x16xf32>
    %121 = arith.addf %112, %120 : vector<16x16xf32>
    %c7_42 = arith.constant 7 : index
    %c128_43 = arith.constant 128 : index
    %122 = vector.load %arg8[%c7_42, %c128_43] : memref<32x256xf32, #tpu.memory_space<vmem>>, vector<16x16xf32>
    %123 = vector.extract_strided_slice %22 {offsets = [0, 10], sizes = [1, 1], strides = [1, 1]} : vector<2x18xf32> to vector<1x1xf32>
    %124 = vector.broadcast %123 : vector<1x1xf32> to vector<16x16xf32>
    %125 = arith.mulf %124, %122 : vector<16x16xf32>
    %126 = arith.addf %117, %125 : vector<16x16xf32>
    %127 = vector.extract_strided_slice %22 {offsets = [1, 10], sizes = [1, 1], strides = [1, 1]} : vector<2x18xf32> to vector<1x1xf32>
    %128 = vector.broadcast %127 : vector<1x1xf32> to vector<16x16xf32>
    %129 = arith.mulf %128, %122 : vector<16x16xf32>
    %130 = arith.addf %121, %129 : vector<16x16xf32>
    %c7_44 = arith.constant 7 : index
    %c129_45 = arith.constant 129 : index
    %131 = vector.load %arg8[%c7_44, %c129_45] : memref<32x256xf32, #tpu.memory_space<vmem>>, vector<16x16xf32>
    %132 = vector.extract_strided_slice %22 {offsets = [0, 11], sizes = [1, 1], strides = [1, 1]} : vector<2x18xf32> to vector<1x1xf32>
    %133 = vector.broadcast %132 : vector<1x1xf32> to vector<16x16xf32>
    %134 = arith.mulf %133, %131 : vector<16x16xf32>
    %135 = arith.addf %126, %134 : vector<16x16xf32>
    %136 = vector.extract_strided_slice %22 {offsets = [1, 11], sizes = [1, 1], strides = [1, 1]} : vector<2x18xf32> to vector<1x1xf32>
    %137 = vector.broadcast %136 : vector<1x1xf32> to vector<16x16xf32>
    %138 = arith.mulf %137, %131 : vector<16x16xf32>
    %139 = arith.addf %130, %138 : vector<16x16xf32>
    %c8_46 = arith.constant 8 : index
    %c127_47 = arith.constant 127 : index
    %140 = vector.load %arg8[%c8_46, %c127_47] : memref<32x256xf32, #tpu.memory_space<vmem>>, vector<16x16xf32>
    %141 = vector.extract_strided_slice %22 {offsets = [0, 12], sizes = [1, 1], strides = [1, 1]} : vector<2x18xf32> to vector<1x1xf32>
    %142 = vector.broadcast %141 : vector<1x1xf32> to vector<16x16xf32>
    %143 = arith.mulf %142, %140 : vector<16x16xf32>
    %144 = arith.addf %135, %143 : vector<16x16xf32>
    %145 = vector.extract_strided_slice %22 {offsets = [1, 12], sizes = [1, 1], strides = [1, 1]} : vector<2x18xf32> to vector<1x1xf32>
    %146 = vector.broadcast %145 : vector<1x1xf32> to vector<16x16xf32>
    %147 = arith.mulf %146, %140 : vector<16x16xf32>
    %148 = arith.addf %139, %147 : vector<16x16xf32>
    %c8_48 = arith.constant 8 : index
    %c128_49 = arith.constant 128 : index
    %149 = vector.load %arg8[%c8_48, %c128_49] : memref<32x256xf32, #tpu.memory_space<vmem>>, vector<16x16xf32>
    %150 = vector.extract_strided_slice %22 {offsets = [0, 13], sizes = [1, 1], strides = [1, 1]} : vector<2x18xf32> to vector<1x1xf32>
    %151 = vector.broadcast %150 : vector<1x1xf32> to vector<16x16xf32>
    %152 = arith.mulf %151, %149 : vector<16x16xf32>
    %153 = arith.addf %144, %152 : vector<16x16xf32>
    %154 = vector.extract_strided_slice %22 {offsets = [1, 13], sizes = [1, 1], strides = [1, 1]} : vector<2x18xf32> to vector<1x1xf32>
    %155 = vector.broadcast %154 : vector<1x1xf32> to vector<16x16xf32>
    %156 = arith.mulf %155, %149 : vector<16x16xf32>
    %157 = arith.addf %148, %156 : vector<16x16xf32>
    %c8_50 = arith.constant 8 : index
    %c129_51 = arith.constant 129 : index
    %158 = vector.load %arg8[%c8_50, %c129_51] : memref<32x256xf32, #tpu.memory_space<vmem>>, vector<16x16xf32>
    %159 = vector.extract_strided_slice %22 {offsets = [0, 14], sizes = [1, 1], strides = [1, 1]} : vector<2x18xf32> to vector<1x1xf32>
    %160 = vector.broadcast %159 : vector<1x1xf32> to vector<16x16xf32>
    %161 = arith.mulf %160, %158 : vector<16x16xf32>
    %162 = arith.addf %153, %161 : vector<16x16xf32>
    %163 = vector.extract_strided_slice %22 {offsets = [1, 14], sizes = [1, 1], strides = [1, 1]} : vector<2x18xf32> to vector<1x1xf32>
    %164 = vector.broadcast %163 : vector<1x1xf32> to vector<16x16xf32>
    %165 = arith.mulf %164, %158 : vector<16x16xf32>
    %166 = arith.addf %157, %165 : vector<16x16xf32>
    %c9_52 = arith.constant 9 : index
    %c127_53 = arith.constant 127 : index
    %167 = vector.load %arg8[%c9_52, %c127_53] : memref<32x256xf32, #tpu.memory_space<vmem>>, vector<16x16xf32>
    %168 = vector.extract_strided_slice %22 {offsets = [0, 15], sizes = [1, 1], strides = [1, 1]} : vector<2x18xf32> to vector<1x1xf32>
    %169 = vector.broadcast %168 : vector<1x1xf32> to vector<16x16xf32>
    %170 = arith.mulf %169, %167 : vector<16x16xf32>
    %171 = arith.addf %162, %170 : vector<16x16xf32>
    %172 = vector.extract_strided_slice %22 {offsets = [1, 15], sizes = [1, 1], strides = [1, 1]} : vector<2x18xf32> to vector<1x1xf32>
    %173 = vector.broadcast %172 : vector<1x1xf32> to vector<16x16xf32>
    %174 = arith.mulf %173, %167 : vector<16x16xf32>
    %175 = arith.addf %166, %174 : vector<16x16xf32>
    %c9_54 = arith.constant 9 : index
    %c128_55 = arith.constant 128 : index
    %176 = vector.load %arg8[%c9_54, %c128_55] : memref<32x256xf32, #tpu.memory_space<vmem>>, vector<16x16xf32>
    %177 = vector.extract_strided_slice %22 {offsets = [0, 16], sizes = [1, 1], strides = [1, 1]} : vector<2x18xf32> to vector<1x1xf32>
    %178 = vector.broadcast %177 : vector<1x1xf32> to vector<16x16xf32>
    %179 = arith.mulf %178, %176 : vector<16x16xf32>
    %180 = arith.addf %171, %179 : vector<16x16xf32>
    %181 = vector.extract_strided_slice %22 {offsets = [1, 16], sizes = [1, 1], strides = [1, 1]} : vector<2x18xf32> to vector<1x1xf32>
    %182 = vector.broadcast %181 : vector<1x1xf32> to vector<16x16xf32>
    %183 = arith.mulf %182, %176 : vector<16x16xf32>
    %184 = arith.addf %175, %183 : vector<16x16xf32>
    %c9_56 = arith.constant 9 : index
    %c129_57 = arith.constant 129 : index
    %185 = vector.load %arg8[%c9_56, %c129_57] : memref<32x256xf32, #tpu.memory_space<vmem>>, vector<16x16xf32>
    %186 = vector.extract_strided_slice %22 {offsets = [0, 17], sizes = [1, 1], strides = [1, 1]} : vector<2x18xf32> to vector<1x1xf32>
    %187 = vector.broadcast %186 : vector<1x1xf32> to vector<16x16xf32>
    %188 = arith.mulf %187, %185 : vector<16x16xf32>
    %189 = arith.addf %180, %188 : vector<16x16xf32>
    %190 = vector.extract_strided_slice %22 {offsets = [1, 17], sizes = [1, 1], strides = [1, 1]} : vector<2x18xf32> to vector<1x1xf32>
    %191 = vector.broadcast %190 : vector<1x1xf32> to vector<16x16xf32>
    %192 = arith.mulf %191, %185 : vector<16x16xf32>
    %193 = arith.addf %184, %192 : vector<16x16xf32>
    %c0_58 = arith.constant 0 : index
    %c0_59 = arith.constant 0 : index
    %c0_60 = arith.constant 0 : index
    %c0_61 = arith.constant 0 : index
    %194 = vector.load %arg4[%c0_58, %c0_59, %c0_60, %c0_61] : memref<1x2x16x16xf32, #tpu.memory_space<vmem>>, vector<1x1x16x16xf32>
    %195 = vector.shape_cast %194 : vector<1x1x16x16xf32> to vector<16x16xf32>
    %196 = vector.shape_cast %189 : vector<16x16xf32> to vector<1x1x16x16xf32>
    tpu.vector_store %arg4[%c0_58, %c0_59, %c0_60, %c0_61], %196 {strides = array<i32>} : memref<1x2x16x16xf32, #tpu.memory_space<vmem>>, vector<1x1x16x16xf32>,
    %c0_62 = arith.constant 0 : index
    %c1_63 = arith.constant 1 : index
    %c0_64 = arith.constant 0 : index
    %c0_65 = arith.constant 0 : index
    %197 = vector.load %arg4[%c0_62, %c1_63, %c0_64, %c0_65] : memref<1x2x16x16xf32, #tpu.memory_space<vmem>>, vector<1x1x16x16xf32>
    %198 = vector.shape_cast %197 : vector<1x1x16x16xf32> to vector<16x16xf32>
    %199 = vector.shape_cast %193 : vector<16x16xf32> to vector<1x1x16x16xf32>
    tpu.vector_store %arg4[%c0_62, %c1_63, %c0_64, %c0_65], %199 {strides = array<i32>} : memref<1x2x16x16xf32, #tpu.memory_space<vmem>>, vector<1x1x16x16xf32>,
    %cst_66 = arith.constant dense<0.000000e+00> : vector<16xf32>
    %200 = vector.multi_reduction <add>, %189, %cst_66 [1] : vector<16x16xf32> to vector<16xf32>
    %201 = vector.shape_cast %200 : vector<16xf32> to vector<16x1xf32>
    %c0_67 = arith.constant 0 : index
    %c0_68 = arith.constant 0 : index
    %c0_69 = arith.constant 0 : index
    %c0_70 = arith.constant 0 : index
    %202 = vector.load %arg5[%c0_67, %c0_68, %c0_69, %c0_70] : memref<1x2x16x1xf32, #tpu.memory_space<vmem>>, vector<1x1x16x1xf32>
    %203 = vector.shape_cast %202 : vector<1x1x16x1xf32> to vector<16x1xf32>
    %204 = vector.shape_cast %201 : vector<16x1xf32> to vector<1x1x16x1xf32>
    tpu.vector_store %arg5[%c0_67, %c0_68, %c0_69, %c0_70], %204 {strides = array<i32>} : memref<1x2x16x1xf32, #tpu.memory_space<vmem>>, vector<1x1x16x1xf32>,
    %cst_71 = arith.constant dense<0.000000e+00> : vector<16xf32>
    %205 = vector.multi_reduction <add>, %193, %cst_71 [1] : vector<16x16xf32> to vector<16xf32>
    %206 = vector.shape_cast %205 : vector<16xf32> to vector<16x1xf32>
    %c0_72 = arith.constant 0 : index
    %c1_73 = arith.constant 1 : index
    %c0_74 = arith.constant 0 : index
    %c0_75 = arith.constant 0 : index
    %207 = vector.load %arg5[%c0_72, %c1_73, %c0_74, %c0_75] : memref<1x2x16x1xf32, #tpu.memory_space<vmem>>, vector<1x1x16x1xf32>
    %208 = vector.shape_cast %207 : vector<1x1x16x1xf32> to vector<16x1xf32>
    %209 = vector.shape_cast %206 : vector<16x1xf32> to vector<1x1x16x1xf32>
    tpu.vector_store %arg5[%c0_72, %c1_73, %c0_74, %c0_75], %209 {strides = array<i32>} : memref<1x2x16x1xf32, #tpu.memory_space<vmem>>, vector<1x1x16x1xf32>,
    %210 = arith.mulf %189, %189 : vector<16x16xf32>
    %cst_76 = arith.constant dense<0.000000e+00> : vector<16xf32>
    %211 = vector.multi_reduction <add>, %210, %cst_76 [1] : vector<16x16xf32> to vector<16xf32>
    %212 = vector.shape_cast %211 : vector<16xf32> to vector<16x1xf32>
    %c0_77 = arith.constant 0 : index
    %c0_78 = arith.constant 0 : index
    %c0_79 = arith.constant 0 : index
    %c0_80 = arith.constant 0 : index
    %213 = vector.load %arg6[%c0_77, %c0_78, %c0_79, %c0_80] : memref<1x2x16x1xf32, #tpu.memory_space<vmem>>, vector<1x1x16x1xf32>
    %214 = vector.shape_cast %213 : vector<1x1x16x1xf32> to vector<16x1xf32>
    %215 = vector.shape_cast %212 : vector<16x1xf32> to vector<1x1x16x1xf32>
    tpu.vector_store %arg6[%c0_77, %c0_78, %c0_79, %c0_80], %215 {strides = array<i32>} : memref<1x2x16x1xf32, #tpu.memory_space<vmem>>, vector<1x1x16x1xf32>,
    %216 = arith.mulf %193, %193 : vector<16x16xf32>
    %cst_81 = arith.constant dense<0.000000e+00> : vector<16xf32>
    %217 = vector.multi_reduction <add>, %216, %cst_81 [1] : vector<16x16xf32> to vector<16xf32>
    %218 = vector.shape_cast %217 : vector<16xf32> to vector<16x1xf32>
    %c0_82 = arith.constant 0 : index
    %c1_83 = arith.constant 1 : index
    %c0_84 = arith.constant 0 : index
    %c0_85 = arith.constant 0 : index
    %219 = vector.load %arg6[%c0_82, %c1_83, %c0_84, %c0_85] : memref<1x2x16x1xf32, #tpu.memory_space<vmem>>, vector<1x1x16x1xf32>
    %220 = vector.shape_cast %219 : vector<1x1x16x1xf32> to vector<16x1xf32>
    %221 = vector.shape_cast %218 : vector<16x1xf32> to vector<1x1x16x1xf32>
    tpu.vector_store %arg6[%c0_82, %c1_83, %c0_84, %c0_85], %221 {strides = array<i32>} : memref<1x2x16x1xf32, #tpu.memory_space<vmem>>, vector<1x1x16x1xf32>,
    return
  }
  func.func @transform_0(%arg0: i32) -> (i32, i32, i32, i32) {
    %c0_i32 = arith.constant 0 : i32
    %c0_i32_0 = arith.constant 0 : i32
    %c0_i32_1 = arith.constant 0 : i32
    %c0_i32_2 = arith.constant 0 : i32
    return %arg0, %c0_i32, %c0_i32_0, %c0_i32_1 : i32, i32, i32, i32
  }
  func.func @transform_1(%arg0: i32) -> (i32, i32) {
    %c0_i32 = arith.constant 0 : i32
    %c0_i32_0 = arith.constant 0 : i32
    %c0_i32_1 = arith.constant 0 : i32
    return %c0_i32, %c0_i32_0 : i32, i32
  }
  func.func @transform_2(%arg0: i32) -> (i32, i32) {
    %c0_i32 = arith.constant 0 : i32
    %c0_i32_0 = arith.constant 0 : i32
    %c0_i32_1 = arith.constant 0 : i32
    return %c0_i32, %c0_i32_0 : i32, i32
  }
  func.func @transform_3(%arg0: i32) -> (i32, i32, i32, i32) {
    %c0_i32 = arith.constant 0 : i32
    %c0_i32_0 = arith.constant 0 : i32
    %c0_i32_1 = arith.constant 0 : i32
    %c0_i32_2 = arith.constant 0 : i32
    return %arg0, %c0_i32, %c0_i32_0, %c0_i32_1 : i32, i32, i32, i32
  }
  func.func @transform_4(%arg0: i32) -> (i32, i32, i32, i32) {
    %c0_i32 = arith.constant 0 : i32
    %c0_i32_0 = arith.constant 0 : i32
    %c0_i32_1 = arith.constant 0 : i32
    %c0_i32_2 = arith.constant 0 : i32
    return %arg0, %c0_i32, %c0_i32_0, %c0_i32_1 : i32, i32, i32, i32
  }
  func.func @transform_5(%arg0: i32) -> (i32, i32, i32, i32) {
    %c0_i32 = arith.constant 0 : i32
    %c0_i32_0 = arith.constant 0 : i32
    %c0_i32_1 = arith.constant 0 : i32
    %c0_i32_2 = arith.constant 0 : i32
    return %arg0, %c0_i32, %c0_i32_0, %c0_i32_1 : i32, i32, i32, i32
  }
}

module attributes {stable_mosaic.version = 11 : i64} {
  func.func @_gate_apply_kernel(%arg0: i32, %arg1: i32, %arg2: memref<1x4x256xf32, #tpu.memory_space<vmem>>, %arg3: memref<1x2x256xf32, #tpu.memory_space<vmem>>, %arg4: memref<1x2x1xf32, #tpu.memory_space<vmem>>, %arg5: memref<1x1x1xf32, #tpu.memory_space<vmem>>, %arg6: memref<1x4x256xf32, #tpu.memory_space<vmem>>) attributes {dimension_semantics = [#tpu.dimension_semantics<parallel>, #tpu.dimension_semantics<parallel>], iteration_bounds = array<i64: 2, 1>, scalar_prefetch = 0 : i64, scratch_operands = 0 : i64, tpu.core_type = #tpu.core_type<tc>, window_params = [{transform_indices = @transform_0, window_bounds = array<i64: 1, 4, 256>}, {transform_indices = @transform_1, window_bounds = array<i64: 1, 2, 256>}, {transform_indices = @transform_2, window_bounds = array<i64: 1, 2, 1>}, {transform_indices = @transform_3, window_bounds = array<i64: 1, 1, 1>}, {transform_indices = @transform_4, window_bounds = array<i64: 1, 4, 256>}]} {
    %c0 = arith.constant 0 : index
    %c0_0 = arith.constant 0 : index
    %c0_1 = arith.constant 0 : index
    %0 = vector.load %arg3[%c0, %c0_0, %c0_1] : memref<1x2x256xf32, #tpu.memory_space<vmem>>, vector<1x1x256xf32>
    %1 = vector.shape_cast %0 : vector<1x1x256xf32> to vector<1x256xf32>
    %c0_2 = arith.constant 0 : index
    %c1 = arith.constant 1 : index
    %c0_3 = arith.constant 0 : index
    %2 = vector.load %arg3[%c0_2, %c1, %c0_3] : memref<1x2x256xf32, #tpu.memory_space<vmem>>, vector<1x1x256xf32>
    %3 = vector.shape_cast %2 : vector<1x1x256xf32> to vector<1x256xf32>
    %c0_4 = arith.constant 0 : index
    %c0_5 = arith.constant 0 : index
    %c0_6 = arith.constant 0 : index
    %4 = vector.load %arg4[%c0_4, %c0_5, %c0_6] : memref<1x2x1xf32, #tpu.memory_space<vmem>>, vector<1x2x1xf32>
    %5 = vector.shape_cast %4 : vector<1x2x1xf32> to vector<2x1xf32>
    %c0_7 = arith.constant 0 : index
    %c0_8 = arith.constant 0 : index
    %c0_9 = arith.constant 0 : index
    %6 = vector.load %arg5[%c0_7, %c0_8, %c0_9] : memref<1x1x1xf32, #tpu.memory_space<vmem>>, vector<1x1x1xf32>
    %7 = vector.shape_cast %6 : vector<1x1x1xf32> to vector<1x1xf32>
    %8 = vector.extract_strided_slice %5 {offsets = [0, 0], sizes = [1, 1], strides = [1, 1]} : vector<2x1xf32> to vector<1x1xf32>
    %9 = vector.broadcast %8 : vector<1x1xf32> to vector<1x256xf32>
    %10 = arith.mulf %1, %9 : vector<1x256xf32>
    %11 = vector.extract_strided_slice %5 {offsets = [1, 0], sizes = [1, 1], strides = [1, 1]} : vector<2x1xf32> to vector<1x1xf32>
    %12 = vector.broadcast %11 : vector<1x1xf32> to vector<1x256xf32>
    %13 = arith.mulf %3, %12 : vector<1x256xf32>
    %14 = arith.addf %10, %13 : vector<1x256xf32>
    %15 = vector.broadcast %7 : vector<1x1xf32> to vector<1x256xf32>
    %16 = arith.addf %14, %15 : vector<1x256xf32>
    %17 = arith.negf %16 : vector<1x256xf32>
    %18 = math.exp %17 : vector<1x256xf32>
    %cst = arith.constant 1.000000e+00 : f32
    %19 = vector.broadcast %cst : f32 to vector<1x256xf32>
    %20 = arith.addf %19, %18 : vector<1x256xf32>
    %21 = arith.divf %19, %20 : vector<1x256xf32>
    %c0_10 = arith.constant 0 : index
    %c0_11 = arith.constant 0 : index
    %c0_12 = arith.constant 0 : index
    %22 = vector.load %arg2[%c0_10, %c0_11, %c0_12] : memref<1x4x256xf32, #tpu.memory_space<vmem>>, vector<1x4x256xf32>
    %23 = vector.shape_cast %22 : vector<1x4x256xf32> to vector<4x256xf32>
    %24 = vector.broadcast %21 : vector<1x256xf32> to vector<4x256xf32>
    %25 = arith.mulf %23, %24 : vector<4x256xf32>
    %c0_13 = arith.constant 0 : index
    %c0_14 = arith.constant 0 : index
    %c0_15 = arith.constant 0 : index
    %26 = vector.load %arg6[%c0_13, %c0_14, %c0_15] : memref<1x4x256xf32, #tpu.memory_space<vmem>>, vector<1x4x256xf32>
    %27 = vector.shape_cast %26 : vector<1x4x256xf32> to vector<4x256xf32>
    %28 = vector.shape_cast %25 : vector<4x256xf32> to vector<1x4x256xf32>
    tpu.vector_store %arg6[%c0_13, %c0_14, %c0_15], %28 {strides = array<i32>} : memref<1x4x256xf32, #tpu.memory_space<vmem>>, vector<1x4x256xf32>,
    return
  }
  func.func @transform_0(%arg0: i32, %arg1: i32) -> (i32, i32, i32) {
    %c0_i32 = arith.constant 0 : i32
    %c0_i32_0 = arith.constant 0 : i32
    return %arg0, %c0_i32, %arg1 : i32, i32, i32
  }
  func.func @transform_1(%arg0: i32, %arg1: i32) -> (i32, i32, i32) {
    %c0_i32 = arith.constant 0 : i32
    %c0_i32_0 = arith.constant 0 : i32
    return %arg0, %c0_i32, %arg1 : i32, i32, i32
  }
  func.func @transform_2(%arg0: i32, %arg1: i32) -> (i32, i32, i32) {
    %c0_i32 = arith.constant 0 : i32
    %c0_i32_0 = arith.constant 0 : i32
    %c0_i32_1 = arith.constant 0 : i32
    return %arg0, %c0_i32, %c0_i32_0 : i32, i32, i32
  }
  func.func @transform_3(%arg0: i32, %arg1: i32) -> (i32, i32, i32) {
    %c0_i32 = arith.constant 0 : i32
    %c0_i32_0 = arith.constant 0 : i32
    %c0_i32_1 = arith.constant 0 : i32
    return %arg0, %c0_i32, %c0_i32_0 : i32, i32, i32
  }
  func.func @transform_4(%arg0: i32, %arg1: i32) -> (i32, i32, i32) {
    %c0_i32 = arith.constant 0 : i32
    %c0_i32_0 = arith.constant 0 : i32
    return %arg0, %c0_i32, %arg1 : i32, i32, i32
  }
}

</mosaic_0001>

<llo_original>
// kernel: _lambda_.13
$region0: #{_lambda_.13}
  #allocation0 [shape = 'u32[]', space=smem, size = 0x4, offset = 0x4, fixed_abs, tag = 'smem constant byte address 0x4 - core index']
  #allocation1 [shape = 'u32[144,128]{1,0:T(1,128)}', space=vmem, size = 0x12000, scoped, tag = 'internal scratch']
  %s0 = inlined_call_operand.vmem [shape: f32[2,16,64], index: 0, kind: input, shape index: {}]
  %s1 = inlined_call_operand.vmem [shape: f32[2,2,64], index: 1, kind: input, shape index: {}]
  %s2 = inlined_call_operand.vmem [shape: f32[2,2,1], index: 2, kind: input, shape index: {}]
  %s3 = inlined_call_operand.vmem [shape: f32[2,1,1], index: 3, kind: input, shape index: {}]
  %s4 = inlined_call_operand.vmem [shape: f32[2,16,64], index: 4, kind: output, shape index: {}]
  %s5 = sld [smem:[#allocation0]]
  $region49: #{_lambda_.13} parent=0
    _
  %s7 = ssub.s32 1, %s5
  %s8 = scalar_select 0, %s7, %s5
  loop: start=0, step=1, limit=4
  $region2: #{_lambda_.13} parent=0 // loop_pre_header
    _
  $region3: #{_lambda_.13} parent=0 // loop_header
    %s10 = sphi 0, %s14
    %p11 = scmp.ge.s32.totalorder %s10, 4
    %s17 = sphi 0, %s29
    %s18 = sphi 0, %s25
    %s19 = sphi 0, %s17
    %s20 = sphi 0, %s18
    %s21 = sphi 0, %s19
    %s22 = sphi 0, %s20
    %s34 = sphi 0, %s36
    %s37 = sphi 0, %s34
    %s38 = sphi 0, %s37
    %s54 = sphi 0, %s38
    %s62 = sphi 0, %s64
    %s65 = sphi 0, %s62
    %s66 = sphi 0, %s65
    %s82 = sphi 0, %s66
    %s88 = sphi 0, %s90
    %s91 = sphi 0, %s88
    %s92 = sphi 0, %s91
    %s108 = sphi 0, %s92
    %s114 = sphi 0, %s116
    %s117 = sphi 0, %s114
    %s118 = sphi 0, %s117
    %s134 = sphi 0, %s118
    %s142 = sphi 0, %s144
    %s145 = sphi 0, %s142
    %s146 = sphi 0, %s145
    %s162 = sphi 0, %s146
  $region4: #{_lambda_.13} parent=0 // loop_header_branch
    %13 = sbr.rel (%p11) target = $region8
  $region5: #{_lambda_.13} parent=0 // loop_body
    %s15 = ssub.s32 %s10, 1
    %s16 = ssub.s32 %s10, 2
    %s23 = sadd.s32 1, %s18
    %p24 = scmp.ge.s32.totalorder %s23, 1
    %s25 = scalar_select %p24, 0, %s23
    %s26 = sadd.s32 1, %s17
    %s27 = scalar_select %p24, %s26, %s17
    %p28 = scmp.ge.s32.totalorder %s27, 2
    %s29 = scalar_select %p28, 0, %s27
    %s30 = ssub.s32 %s17, %s29
    %s31 = ssub.s32 %s18, %s25
    %s32 = sor.u32 %s30, %s31
    %p33 = scmp.eq.s32.totalorder %s32, 0
    %s35 = sadd.s32 %s34, 1
    %s36 = scalar_select %p33, %s34, %s35
    %p39 = pneg %p33
    %p40 = scmp.eq.s32.totalorder %s10, 1
    %p41 = por %p39, %p40
    %p42 = scmp.ne.s32.totalorder %s34, %s37
    %p43 = scmp.eq.s32.totalorder %s10, 0
    %p44 = por %p42, %p43
    %p45 = scmp.ne.s32.totalorder %s34, %s37
    %p46 = scmp.eq.s32.totalorder %s15, 1
    %p47 = por %p45, %p46
    %p48 = scmp.ne.s32.totalorder %s37, %s38
    %p49 = scmp.eq.s32.totalorder %s15, 0
    %p50 = por %p48, %p49
    %p51 = scmp.ne.s32.totalorder %s37, %s38
    %p52 = scmp.eq.s32.totalorder %s16, 1
    %p53 = por %p51, %p52
    %p55 = scmp.ne.s32.totalorder %s38, %s54
    %p56 = scmp.eq.s32.totalorder %s16, 0
    %p57 = por %p55, %p56
    %s58 = ssub.s32 %s17, %s29
    %s59 = ssub.s32 %s18, %s25
    %s60 = sor.u32 %s58, %s59
    %p61 = scmp.eq.s32.totalorder %s60, 0
    %s63 = sadd.s32 %s62, 1
    %s64 = scalar_select %p61, %s62, %s63
    %p67 = pneg %p61
    %p68 = scmp.eq.s32.totalorder %s10, 1
    %p69 = por %p67, %p68
    %p70 = scmp.ne.s32.totalorder %s62, %s65
    %p71 = scmp.eq.s32.totalorder %s10, 0
    %p72 = por %p70, %p71
    %p73 = scmp.ne.s32.totalorder %s62, %s65
    %p74 = scmp.eq.s32.totalorder %s15, 1
    %p75 = por %p73, %p74
    %p76 = scmp.ne.s32.totalorder %s65, %s66
    %p77 = scmp.eq.s32.totalorder %s15, 0
    %p78 = por %p76, %p77
    %p79 = scmp.ne.s32.totalorder %s65, %s66
    %p80 = scmp.eq.s32.totalorder %s16, 1
    %p81 = por %p79, %p80
    %p83 = scmp.ne.s32.totalorder %s66, %s82
    %p84 = scmp.eq.s32.totalorder %s16, 0
    %p85 = por %p83, %p84
    %s86 = ssub.s32 %s17, %s29
    %p87 = scmp.eq.s32.totalorder %s86, 0
    %s89 = sadd.s32 %s88, 1
    %s90 = scalar_select %p87, %s88, %s89
    %p93 = pneg %p87
    %p94 = scmp.eq.s32.totalorder %s10, 1
    %p95 = por %p93, %p94
    %p96 = scmp.ne.s32.totalorder %s88, %s91
    %p97 = scmp.eq.s32.totalorder %s10, 0
    %p98 = por %p96, %p97
    %p99 = scmp.ne.s32.totalorder %s88, %s91
    %p100 = scmp.eq.s32.totalorder %s15, 1
    %p101 = por %p99, %p100
    %p102 = scmp.ne.s32.totalorder %s91, %s92
    %p103 = scmp.eq.s32.totalorder %s15, 0
    %p104 = por %p102, %p103
    %p105 = scmp.ne.s32.totalorder %s91, %s92
    %p106 = scmp.eq.s32.totalorder %s16, 1
    %p107 = por %p105, %p106
    %p109 = scmp.ne.s32.totalorder %s92, %s108
    %p110 = scmp.eq.s32.totalorder %s16, 0
    %p111 = por %p109, %p110
    %s112 = ssub.s32 %s17, %s29
    %p113 = scmp.eq.s32.totalorder %s112, 0
    %s115 = sadd.s32 %s114, 1
    %s116 = scalar_select %p113, %s114, %s115
    %p119 = pneg %p113
    %p120 = scmp.eq.s32.totalorder %s10, 1
    %p121 = por %p119, %p120
    %p122 = scmp.ne.s32.totalorder %s114, %s117
    %p123 = scmp.eq.s32.totalorder %s10, 0
    %p124 = por %p122, %p123
    %p125 = scmp.ne.s32.totalorder %s114, %s117
    %p126 = scmp.eq.s32.totalorder %s15, 1
    %p127 = por %p125, %p126
    %p128 = scmp.ne.s32.totalorder %s117, %s118
    %p129 = scmp.eq.s32.totalorder %s15, 0
    %p130 = por %p128, %p129
    %p131 = scmp.ne.s32.totalorder %s117, %s118
    %p132 = scmp.eq.s32.totalorder %s16, 1
    %p133 = por %p131, %p132
    %p135 = scmp.ne.s32.totalorder %s118, %s134
    %p136 = scmp.eq.s32.totalorder %s16, 0
    %p137 = por %p135, %p136
    %s138 = ssub.s32 %s17, %s29
    %s139 = ssub.s32 %s18, %s25
    %s140 = sor.u32 %s138, %s139
    %p141 = scmp.eq.s32.totalorder %s140, 0
    %s143 = sadd.s32 %s142, 1
    %s144 = scalar_select %p141, %s142, %s143
    %p147 = pneg %p141
    %p148 = scmp.eq.s32.totalorder %s10, 1
    %p149 = por %p147, %p148
    %p150 = scmp.ne.s32.totalorder %s142, %s145
    %p151 = scmp.eq.s32.totalorder %s10, 0
    %p152 = por %p150, %p151
    %p153 = scmp.ne.s32.totalorder %s142, %s145
    %p154 = scmp.eq.s32.totalorder %s15, 1
    %p155 = por %p153, %p154
    %p156 = scmp.ne.s32.totalorder %s145, %s146
    %p157 = scmp.eq.s32.totalorder %s15, 0
    %p158 = por %p156, %p157
    %p159 = scmp.ne.s32.totalorder %s145, %s146
    %p160 = scmp.eq.s32.totalorder %s16, 1
    %p161 = por %p159, %p160
    %p163 = scmp.ne.s32.totalorder %s146, %s162
    %p164 = scmp.eq.s32.totalorder %s16, 0
    %p165 = por %p163, %p164
    %p166 = scmp.le.s32.totalorder 1, %s10
    %p167 = scmp.lt.s32.totalorder %s10, 3
    %p168 = pnand %p166, %p167
    %p169 = pneg %p168
    // Predicated region
    $region9: #{_lambda_.13} parent=5 // pred_check
      _
    $region10: #{_lambda_.13} parent=5 // pred_check_branch
      %171 = sbr.rel (%p168) target = $region12
    $region11: #{_lambda_.13} parent=5 // pred_region
      %s172 = ssub.s32 %s10, 1
    $region12: #{_lambda_.13} parent=5 // pred_fallthru
      _
    %p173 = scmp.lt.s32.totalorder %s10, 2
    // Predicated region
    $region13: #{_lambda_.13} parent=5 // pred_check
      %p174 = pneg %p173
    $region14: #{_lambda_.13} parent=5 // pred_check_branch
      %176 = sbr.rel (%p174) target = $region16
    $region15: #{_lambda_.13} parent=5 // pred_region
      // Predicated region
      $region17: #{_lambda_.13} parent=15 // pred_check
        %p177 = pneg %p44
      $region18: #{_lambda_.13} parent=15 // pred_check_branch
        %179 = sbr.rel (%p177) target = $region20
      $region19: #{_lambda_.13} parent=15 // pred_region
        %p180 = scmp.lt.s32.totalorder %s17, 1
        %s181 = scalar_select %p180, %s17, 1
        %p182 = scmp.lt.s32.totalorder %s18, 0
        %s183 = scalar_select %p182, %s18, 0
        %s184 = smul.addr %s181, 2
        %s185 = sadd.s32 %s183, %s184
        %s186 = smul.addr %s185, 8
        %s187 = scalar_lea.vmem %s0, %s186
      $region20: #{_lambda_.13} parent=15 // pred_fallthru
        _
      // Predicated region
      $region21: #{_lambda_.13} parent=15 // pred_check
        %p188 = pneg %p72
      $region22: #{_lambda_.13} parent=15 // pred_check_branch
        %190 = sbr.rel (%p188) target = $region24
      $region23: #{_lambda_.13} parent=15 // pred_region
        %p191 = scmp.lt.s32.totalorder %s17, 1
        %s192 = scalar_select %p191, %s17, 1
        %p193 = scmp.lt.s32.totalorder %s18, 0
        %s194 = scalar_select %p193, %s18, 0
        %s195 = sadd.s32 %s194, %s192
        %s196 = smul.addr %s195, 2
        %s197 = scalar_lea.vmem %s1, %s196
      $region24: #{_lambda_.13} parent=15 // pred_fallthru
        _
      // Predicated region
      $region25: #{_lambda_.13} parent=15 // pred_check
        %p198 = pneg %p98
      $region26: #{_lambda_.13} parent=15 // pred_check_branch
        %200 = sbr.rel (%p198) target = $region28
      $region27: #{_lambda_.13} parent=15 // pred_region
        %p201 = scmp.lt.s32.totalorder %s17, 1
        %s202 = scalar_select %p201, %s17, 1
        %s203 = smul.addr %s202, 2
        %s204 = scalar_lea.vmem %s2, %s203
      $region28: #{_lambda_.13} parent=15 // pred_fallthru
        _
      // Predicated region
      $region29: #{_lambda_.13} parent=15 // pred_check
        %p205 = pneg %p124
      $region30: #{_lambda_.13} parent=15 // pred_check_branch
        %207 = sbr.rel (%p205) target = $region32
      $region31: #{_lambda_.13} parent=15 // pred_region
        %p208 = scmp.lt.s32.totalorder %s17, 1
        %s209 = scalar_select %p208, %s17, 1
        %s210 = scalar_lea.vmem %s3, %s209
      $region32: #{_lambda_.13} parent=15 // pred_fallthru
        _
    $region16: #{_lambda_.13} parent=5 // pred_fallthru
      _
    %p211 = scmp.le.s32.totalorder 1, %s10
    %p212 = scmp.lt.s32.totalorder %s10, 3
    %p213 = pnand %p211, %p212
    %p214 = pneg %p213
    // Predicated region
    $region33: #{_lambda_.13} parent=5 // pred_check
      _
    $region34: #{_lambda_.13} parent=5 // pred_check_branch
      %216 = sbr.rel (%p213) target = $region36
    $region35: #{_lambda_.13} parent=5 // pred_region
      %s217 = ssub.s32 %s10, 1
      %p218 = scmp.lt.s32.totalorder %s19, 1
      %s219 = scalar_select %p218, %s19, 1
      %p220 = scmp.lt.s32.totalorder %s20, 0
      %s221 = scalar_select %p220, %s20, 0
      %s222 = smul.addr %s219, 2
      %s223 = sadd.s32 %s221, %s222
      %s224 = smul.addr %s223, 8
      %s225 = scalar_lea.vmem %s0, %s224
      %p226 = pneg %p50
      %p227 = pneg %p47
      %p228 = scmp.lt.s32.totalorder %s19, 1
      %s229 = scalar_select %p228, %s19, 1
      %p230 = scmp.lt.s32.totalorder %s20, 0
      %s231 = scalar_select %p230, %s20, 0
      %s232 = sadd.s32 %s231, %s229
      %s233 = smul.addr %s232, 2
      %s234 = scalar_lea.vmem %s1, %s233
      %p235 = pneg %p78
      %p236 = pneg %p75
      %p237 = scmp.lt.s32.totalorder %s19, 1
      %s238 = scalar_select %p237, %s19, 1
      %s239 = smul.addr %s238, 2
      %s240 = scalar_lea.vmem %s2, %s239
      %p241 = pneg %p104
      %p242 = pneg %p101
      %p243 = scmp.lt.s32.totalorder %s19, 1
      %s244 = scalar_select %p243, %s19, 1
      %s245 = scalar_lea.vmem %s3, %s244
      %p246 = pneg %p130
      %p247 = pneg %p127
      %p248 = pneg %p158
      %p249 = pneg %p155
      %p250 = scmp.lt.s32.totalorder %s19, 1
      %s251 = scalar_select %p250, %s19, 1
      %p252 = scmp.lt.s32.totalorder %s20, 0
      %s253 = scalar_select %p252, %s20, 0
      %s254 = smul.addr %s251, 2
      %s255 = sadd.s32 %s253, %s254
      %s256 = smul.addr %s255, 8
      %s257 = scalar_lea.vmem %s4, %s256
      %p258 = scmp.lt.s32.totalorder %s19, 1
      %s259 = scalar_select %p258, %s19, 1
      %p260 = scmp.lt.s32.totalorder %s20, 0
      %s261 = scalar_select %p260, %s20, 0
      %s262 = smul.addr %s259, 2
      %s263 = sadd.s32 %s261, %s262
      %s264 = smul.addr %s263, 8
      %s265 = scalar_lea.vmem %s0, %s264
      %p266 = scmp.lt.s32.totalorder %s19, 1
      %s267 = scalar_select %p266, %s19, 1
      %p268 = scmp.lt.s32.totalorder %s20, 0
      %s269 = scalar_select %p268, %s20, 0
      %s270 = sadd.s32 %s269, %s267
      %s271 = smul.addr %s270, 2
      %s272 = scalar_lea.vmem %s1, %s271
      %p273 = scmp.lt.s32.totalorder %s19, 1
      %s274 = scalar_select %p273, %s19, 1
      %s275 = smul.addr %s274, 2
      %s276 = scalar_lea.vmem %s2, %s275
      %p277 = scmp.lt.s32.totalorder %s19, 1
      %s278 = scalar_select %p277, %s19, 1
      %s279 = scalar_lea.vmem %s3, %s278
      %p280 = scmp.lt.s32.totalorder %s19, 1
      %s281 = scalar_select %p280, %s19, 1
      %p282 = scmp.lt.s32.totalorder %s20, 0
      %s283 = scalar_select %p282, %s20, 0
      %s284 = smul.addr %s281, 2
      %s285 = sadd.s32 %s283, %s284
      %s286 = smul.addr %s285, 8
      %s287 = scalar_lea.vmem %s4, %s286
      %v288 = vld [vmem:[%s272] sm:$0x1]
      %v289 = vld [vmem:[%s272 + $0x1] sm:$0x1]
      %v290 = vld [vmem:[%s276] sm:$0x3]
      %v291 = vld [vmem:[%s279] sm:$0x1]
      %293 = vset.pattern.permute.xlu0 0
      %294 = vperm.xlu0 %293, %v290
      %v295 = vpop.permute.xlu0 %294
      %v297 = vmul.f32 %v288, %v295
      %v298 = vrot.slane %v295, 1
      %v300 = vmul.f32 %v289, %v298
      %v301 = vadd.f32 %v297, %v300
      %303 = vset.pattern.permute.xlu0 0
      %304 = vperm.xlu0 %303, %v291
      %v305 = vpop.permute.xlu0 %304
      %v307 = vlaneseq
      %v308 = vshrl.u32 %v307, 7
      %v309 = vsub.s32 0, %v308
      %v310 = vrot.slane %v305, %v309
      %v311 = vadd.f32 %v301, %v310
      %v312 = vxor.u32 %v311, 2147483648
      %v313 = vmul.f32 %v312, 1.442695
      %v314 = vpow.pop %v313
      %v315 = vadd.f32 %v314, 1.0
      %v316 = vrcp.pop %v315
      %v317 = vmul.f32 1.0, %v316
      %v318 = vld [vmem:[%s265] sm:$0xff]
      %v319 = vld [vmem:[%s265 + $0x8] sm:$0xff]
      %v320 = vlaneseq
      %v321 = vshrl.u32 %v320, 7
      %v322 = vsub.s32 0, %v321
      %v323 = vrot.slane %v317, %v322
      %v324 = vmul.f32 %v318, %v323
      %v325 = vmul.f32 %v319, %v323
      %vm326 = vcmask 523264
      %327 = vst.msk [vmem:[%s287] sm:$0xff] %vm326, %v324
      %328 = vst.msk [vmem:[%s287 + $0x8] sm:$0xff] %vm326, %v325
      %p329 = scmp.lt.s32.totalorder %s19, 1
      %s330 = scalar_select %p329, %s19, 1
      %p331 = scmp.lt.s32.totalorder %s20, 0
      %s332 = scalar_select %p331, %s20, 0
      %s333 = smul.addr %s330, 2
      %s334 = sadd.s32 %s332, %s333
      %s335 = smul.addr %s334, 8
      %s336 = scalar_lea.vmem %s4, %s335
      // Predicated region
      $region37: #{_lambda_.13} parent=35 // pred_check
        %p337 = pneg %p155
      $region38: #{_lambda_.13} parent=35 // pred_check_branch
        %339 = sbr.rel (%p337) target = $region40
      $region39: #{_lambda_.13} parent=35 // pred_region
        _
      $region40: #{_lambda_.13} parent=35 // pred_fallthru
        _
    $region36: #{_lambda_.13} parent=5 // pred_fallthru
      _
    %p340 = scmp.le.s32.totalorder 2, %s10
    // Predicated region
    $region41: #{_lambda_.13} parent=5 // pred_check
      %p341 = pneg %p340
    $region42: #{_lambda_.13} parent=5 // pred_check_branch
      %343 = sbr.rel (%p341) target = $region44
    $region43: #{_lambda_.13} parent=5 // pred_region
      %s344 = ssub.s32 %s10, 2
      // Predicated region
      $region45: #{_lambda_.13} parent=43 // pred_check
        %p345 = pneg %p161
      $region46: #{_lambda_.13} parent=43 // pred_check_branch
        %347 = sbr.rel (%p345) target = $region48
      $region47: #{_lambda_.13} parent=43 // pred_region
        %p348 = scmp.lt.s32.totalorder %s21, 1
        %s349 = scalar_select %p348, %s21, 1
        %p350 = scmp.lt.s32.totalorder %s22, 0
        %s351 = scalar_select %p350, %s22, 0
        %s352 = smul.addr %s349, 2
        %s353 = sadd.s32 %s351, %s352
        %s354 = smul.addr %s353, 8
        %s355 = scalar_lea.vmem %s4, %s354
      $region48: #{_lambda_.13} parent=43 // pred_fallthru
        _
    $region44: #{_lambda_.13} parent=5 // pred_fallthru
      _
  $region6: #{_lambda_.13} parent=0 // loop_footer
    %s14 = sadd.s32 1, %s10
  $region7: #{_lambda_.13} parent=0 // loop_footer_branch
    %9 = sbr.rel target = $region3
  $region8: #{_lambda_.13} parent=0 // loop_exit
    _

// kernel: _lambda_.12
$region0: #{_lambda_.12}
  #allocation0 [shape = 'u32[]', space=smem, size = 0x4, offset = 0x4, fixed_abs, tag = 'smem constant byte address 0x4 - core index']
  #allocation1 [shape = 'u32[144,128]{1,0:T(1,128)}', space=vmem, size = 0x12000, scoped, tag = 'internal scratch']
  #allocation2 [shape = 'f32[20,256]{1,0:T(8,128)}', space=vmem, size = 0x6000, scoped, tag = 'scratch operand']
  #allocation3 [shape = 'f32[20,256]{1,0:T(8,128)}', space=vmem, size = 0x6000, scoped, tag = 'scratch operand']
  %s0 = inlined_call_operand.vmem [shape: f32[2,16,4,16], index: 0, kind: input, shape index: {}]
  %s1 = inlined_call_operand.vmem [shape: f32[2,18], index: 1, kind: input, shape index: {}]
  %s2 = inlined_call_operand.vmem [shape: f32[2,1], index: 2, kind: input, shape index: {}]
  %s3 = inlined_call_operand.vmem [shape: f32[2,2,4,16], index: 3, kind: output, shape index: {0}]
  %s4 = inlined_call_operand.vmem [shape: f32[2,2,4,1], index: 4, kind: output, shape index: {1}]
  %s5 = inlined_call_operand.vmem [shape: f32[2,2,4,1], index: 5, kind: output, shape index: {2}]
  %6 = xla_tuple %s3, %s4, %s5
  %s7 = sld [smem:[#allocation0]]
  $region61: #{_lambda_.12} parent=0
    _
  %s9 = ssub.s32 1, %s7
  %s10 = scalar_select 0, %s9, %s7
  loop: start=0, step=1, limit=4
  $region2: #{_lambda_.12} parent=0 // loop_pre_header
    _
  $region3: #{_lambda_.12} parent=0 // loop_header
    %s12 = sphi 0, %s16
    %p13 = scmp.ge.s32.totalorder %s12, 4
    %s22 = sphi 0, %s24
    %s25 = sphi 0, %s22
    %s26 = sphi 0, %s25
    %s42 = sphi 0, %s26
    %s46 = sphi 0, %s46
    %s48 = sphi 0, %s46
    %s49 = sphi 0, %s48
    %s63 = sphi 0, %s49
    %s67 = sphi 0, %s67
    %s69 = sphi 0, %s67
    %s70 = sphi 0, %s69
    %s84 = sphi 0, %s70
    %s90 = sphi 0, %s92
    %s93 = sphi 0, %s90
    %s94 = sphi 0, %s93
    %s110 = sphi 0, %s94
    %s116 = sphi 0, %s118
    %s119 = sphi 0, %s116
    %s120 = sphi 0, %s119
    %s136 = sphi 0, %s120
    %s142 = sphi 0, %s144
    %s145 = sphi 0, %s142
    %s146 = sphi 0, %s145
    %s162 = sphi 0, %s146
  $region4: #{_lambda_.12} parent=0 // loop_header_branch
    %15 = sbr.rel (%p13) target = $region8
  $region5: #{_lambda_.12} parent=0 // loop_body
    %s17 = ssub.s32 %s12, 1
    %s18 = ssub.s32 %s12, 2
    %s19 = sadd.s32 %s12, 1
    %s20 = ssub.s32 %s12, %s19
    %p21 = scmp.eq.s32.totalorder %s20, 0
    %s23 = sadd.s32 %s22, 1
    %s24 = scalar_select %p21, %s22, %s23
    %p27 = pneg %p21
    %p28 = scmp.eq.s32.totalorder %s12, 1
    %p29 = por %p27, %p28
    %p30 = scmp.ne.s32.totalorder %s22, %s25
    %p31 = scmp.eq.s32.totalorder %s12, 0
    %p32 = por %p30, %p31
    %p33 = scmp.ne.s32.totalorder %s22, %s25
    %p34 = scmp.eq.s32.totalorder %s17, 1
    %p35 = por %p33, %p34
    %p36 = scmp.ne.s32.totalorder %s25, %s26
    %p37 = scmp.eq.s32.totalorder %s17, 0
    %p38 = por %p36, %p37
    %p39 = scmp.ne.s32.totalorder %s25, %s26
    %p40 = scmp.eq.s32.totalorder %s18, 1
    %p41 = por %p39, %p40
    %p43 = scmp.ne.s32.totalorder %s26, %s42
    %p44 = scmp.eq.s32.totalorder %s18, 0
    %p45 = por %p43, %p44
    %s47 = sadd.s32 %s46, 1
    %p50 = scmp.eq.s32.totalorder %s12, 1
    %p51 = scmp.ne.s32.totalorder %s46, %s48
    %p52 = scmp.eq.s32.totalorder %s12, 0
    %p53 = por %p51, %p52
    %p54 = scmp.ne.s32.totalorder %s46, %s48
    %p55 = scmp.eq.s32.totalorder %s17, 1
    %p56 = por %p54, %p55
    %p57 = scmp.ne.s32.totalorder %s48, %s49
    %p58 = scmp.eq.s32.totalorder %s17, 0
    %p59 = por %p57, %p58
    %p60 = scmp.ne.s32.totalorder %s48, %s49
    %p61 = scmp.eq.s32.totalorder %s18, 1
    %p62 = por %p60, %p61
    %p64 = scmp.ne.s32.totalorder %s49, %s63
    %p65 = scmp.eq.s32.totalorder %s18, 0
    %p66 = por %p64, %p65
    %s68 = sadd.s32 %s67, 1
    %p71 = scmp.eq.s32.totalorder %s12, 1
    %p72 = scmp.ne.s32.totalorder %s67, %s69
    %p73 = scmp.eq.s32.totalorder %s12, 0
    %p74 = por %p72, %p73
    %p75 = scmp.ne.s32.totalorder %s67, %s69
    %p76 = scmp.eq.s32.totalorder %s17, 1
    %p77 = por %p75, %p76
    %p78 = scmp.ne.s32.totalorder %s69, %s70
    %p79 = scmp.eq.s32.totalorder %s17, 0
    %p80 = por %p78, %p79
    %p81 = scmp.ne.s32.totalorder %s69, %s70
    %p82 = scmp.eq.s32.totalorder %s18, 1
    %p83 = por %p81, %p82
    %p85 = scmp.ne.s32.totalorder %s70, %s84
    %p86 = scmp.eq.s32.totalorder %s18, 0
    %p87 = por %p85, %p86
    %s88 = ssub.s32 %s12, %s19
    %p89 = scmp.eq.s32.totalorder %s88, 0
    %s91 = sadd.s32 %s90, 1
    %s92 = scalar_select %p89, %s90, %s91
    %p95 = pneg %p89
    %p96 = scmp.eq.s32.totalorder %s12, 1
    %p97 = por %p95, %p96
    %p98 = scmp.ne.s32.totalorder %s90, %s93
    %p99 = scmp.eq.s32.totalorder %s12, 0
    %p100 = por %p98, %p99
    %p101 = scmp.ne.s32.totalorder %s90, %s93
    %p102 = scmp.eq.s32.totalorder %s17, 1
    %p103 = por %p101, %p102
    %p104 = scmp.ne.s32.totalorder %s93, %s94
    %p105 = scmp.eq.s32.totalorder %s17, 0
    %p106 = por %p104, %p105
    %p107 = scmp.ne.s32.totalorder %s93, %s94
    %p108 = scmp.eq.s32.totalorder %s18, 1
    %p109 = por %p107, %p108
    %p111 = scmp.ne.s32.totalorder %s94, %s110
    %p112 = scmp.eq.s32.totalorder %s18, 0
    %p113 = por %p111, %p112
    %s114 = ssub.s32 %s12, %s19
    %p115 = scmp.eq.s32.totalorder %s114, 0
    %s117 = sadd.s32 %s116, 1
    %s118 = scalar_select %p115, %s116, %s117
    %p121 = pneg %p115
    %p122 = scmp.eq.s32.totalorder %s12, 1
    %p123 = por %p121, %p122
    %p124 = scmp.ne.s32.totalorder %s116, %s119
    %p125 = scmp.eq.s32.totalorder %s12, 0
    %p126 = por %p124, %p125
    %p127 = scmp.ne.s32.totalorder %s116, %s119
    %p128 = scmp.eq.s32.totalorder %s17, 1
    %p129 = por %p127, %p128
    %p130 = scmp.ne.s32.totalorder %s119, %s120
    %p131 = scmp.eq.s32.totalorder %s17, 0
    %p132 = por %p130, %p131
    %p133 = scmp.ne.s32.totalorder %s119, %s120
    %p134 = scmp.eq.s32.totalorder %s18, 1
    %p135 = por %p133, %p134
    %p137 = scmp.ne.s32.totalorder %s120, %s136
    %p138 = scmp.eq.s32.totalorder %s18, 0
    %p139 = por %p137, %p138
    %s140 = ssub.s32 %s12, %s19
    %p141 = scmp.eq.s32.totalorder %s140, 0
    %s143 = sadd.s32 %s142, 1
    %s144 = scalar_select %p141, %s142, %s143
    %p147 = pneg %p141
    %p148 = scmp.eq.s32.totalorder %s12, 1
    %p149 = por %p147, %p148
    %p150 = scmp.ne.s32.totalorder %s142, %s145
    %p151 = scmp.eq.s32.totalorder %s12, 0
    %p152 = por %p150, %p151
    %p153 = scmp.ne.s32.totalorder %s142, %s145
    %p154 = scmp.eq.s32.totalorder %s17, 1
    %p155 = por %p153, %p154
    %p156 = scmp.ne.s32.totalorder %s145, %s146
    %p157 = scmp.eq.s32.totalorder %s17, 0
    %p158 = por %p156, %p157
    %p159 = scmp.ne.s32.totalorder %s145, %s146
    %p160 = scmp.eq.s32.totalorder %s18, 1
    %p161 = por %p159, %p160
    %p163 = scmp.ne.s32.totalorder %s146, %s162
    %p164 = scmp.eq.s32.totalorder %s18, 0
    %p165 = por %p163, %p164
    %p166 = scmp.le.s32.totalorder 1, %s12
    %p167 = scmp.lt.s32.totalorder %s12, 3
    %p168 = pnand %p166, %p167
    %p169 = pneg %p168
    // Predicated region
    $region9: #{_lambda_.12} parent=5 // pred_check
      _
    $region10: #{_lambda_.12} parent=5 // pred_check_branch
      %171 = sbr.rel (%p168) target = $region12
    $region11: #{_lambda_.12} parent=5 // pred_region
      %s172 = ssub.s32 %s12, 1
      // Predicated region
      $region13: #{_lambda_.12} parent=11 // pred_check
        %p173 = pneg %p59
      $region14: #{_lambda_.12} parent=11 // pred_check_branch
        %175 = sbr.rel (%p173) target = $region16
      $region15: #{_lambda_.12} parent=11 // pred_region
        _
      $region16: #{_lambda_.12} parent=11 // pred_fallthru
        _
      // Predicated region
      $region17: #{_lambda_.12} parent=11 // pred_check
        %p176 = pneg %p80
      $region18: #{_lambda_.12} parent=11 // pred_check_branch
        %178 = sbr.rel (%p176) target = $region20
      $region19: #{_lambda_.12} parent=11 // pred_region
        _
      $region20: #{_lambda_.12} parent=11 // pred_fallthru
        _
    $region12: #{_lambda_.12} parent=5 // pred_fallthru
      _
    %p179 = scmp.lt.s32.totalorder %s12, 2
    // Predicated region
    $region21: #{_lambda_.12} parent=5 // pred_check
      %p180 = pneg %p179
    $region22: #{_lambda_.12} parent=5 // pred_check_branch
      %182 = sbr.rel (%p180) target = $region24
    $region23: #{_lambda_.12} parent=5 // pred_region
      // Predicated region
      $region25: #{_lambda_.12} parent=23 // pred_check
        %p183 = pneg %p32
      $region26: #{_lambda_.12} parent=23 // pred_check_branch
        %185 = sbr.rel (%p183) target = $region28
      $region27: #{_lambda_.12} parent=23 // pred_region
        %p186 = scmp.lt.s32.totalorder %s12, 1
        %s187 = scalar_select %p186, %s12, 1
        %s188 = smul.addr %s187, 16
        %s189 = smul.addr %s188, 4
        %s190 = scalar_lea.vmem %s0, %s189
      $region28: #{_lambda_.12} parent=23 // pred_fallthru
        _
    $region24: #{_lambda_.12} parent=5 // pred_fallthru
      _
    %p191 = scmp.le.s32.totalorder 1, %s12
    %p192 = scmp.lt.s32.totalorder %s12, 3
    %p193 = pnand %p191, %p192
    %p194 = pneg %p193
    // Predicated region
    $region29: #{_lambda_.12} parent=5 // pred_check
      _
    $region30: #{_lambda_.12} parent=5 // pred_check_branch
      %196 = sbr.rel (%p193) target = $region32
    $region31: #{_lambda_.12} parent=5 // pred_region
      %s197 = ssub.s32 %s12, 1
      %p198 = scmp.lt.s32.totalorder %s17, 1
      %s199 = scalar_select %p198, %s17, 1
      %s200 = smul.addr %s199, 16
      %s201 = smul.addr %s200, 4
      %s202 = scalar_lea.vmem %s0, %s201
      %p203 = pneg %p38
      %p204 = pneg %p35
      %p205 = pneg %p59
      %p206 = pneg %p56
      %p207 = pneg %p80
      %p208 = pneg %p77
      %p209 = pneg %p106
      %p210 = pneg %p103
      %p211 = scmp.lt.s32.totalorder %s17, 1
      %s212 = scalar_select %p211, %s17, 1
      %s213 = smul.addr %s212, 2
      %s214 = smul.addr %s213, 4
      %s215 = scalar_lea.vmem %s3, %s214
      %p216 = pneg %p132
      %p217 = pneg %p129
      %p218 = scmp.lt.s32.totalorder %s17, 1
      %s219 = scalar_select %p218, %s17, 1
      %s220 = smul.addr %s219, 2
      %s221 = smul.addr %s220, 4
      %s222 = scalar_lea.vmem %s4, %s221
      %p223 = pneg %p158
      %p224 = pneg %p155
      %p225 = scmp.lt.s32.totalorder %s17, 1
      %s226 = scalar_select %p225, %s17, 1
      %s227 = smul.addr %s226, 2
      %s228 = smul.addr %s227, 4
      %s229 = scalar_lea.vmem %s5, %s228
      %p230 = scmp.lt.s32.totalorder %s17, 1
      %s231 = scalar_select %p230, %s17, 1
      %s232 = smul.addr %s231, 16
      %s233 = smul.addr %s232, 4
      %s234 = scalar_lea.vmem %s0, %s233
      %p235 = scmp.lt.s32.totalorder %s17, 1
      %s236 = scalar_select %p235, %s17, 1
      %s237 = smul.addr %s236, 2
      %s238 = smul.addr %s237, 4
      %s239 = scalar_lea.vmem %s3, %s238
      %p240 = scmp.lt.s32.totalorder %s17, 1
      %s241 = scalar_select %p240, %s17, 1
      %s242 = smul.addr %s241, 2
      %s243 = smul.addr %s242, 4
      %s244 = scalar_lea.vmem %s4, %s243
      %p245 = scmp.lt.s32.totalorder %s17, 1
      %s246 = scalar_select %p245, %s17, 1
      %s247 = smul.addr %s246, 2
      %s248 = smul.addr %s247, 4
      %s249 = scalar_lea.vmem %s5, %s248
      %v250 = vld [vmem:[%s234] sm:$0xf]
      %s251 = scalar_lea.vmem %s234, 4
      %v252 = vld [vmem:[%s251] sm:$0xf]
      %v253 = vmax.f32 %v250, %v252
      %v254 = vadd.f32 %v250, %v252
      %s255 = scalar_lea.vmem %s234, 8
      %v256 = vld [vmem:[%s255] sm:$0xf]
      %v257 = vmax.f32 %v253, %v256
      %v258 = vadd.f32 %v254, %v256
      %s259 = scalar_lea.vmem %s234, 12
      %v260 = vld [vmem:[%s259] sm:$0xf]
      %v261 = vmax.f32 %v257, %v260
      %v262 = vadd.f32 %v258, %v260
      %s263 = scalar_lea.vmem %s234, 16
      %v264 = vld [vmem:[%s263] sm:$0xf]
      %v265 = vmax.f32 %v261, %v264
      %v266 = vadd.f32 %v262, %v264
      %s267 = scalar_lea.vmem %s234, 20
      %v268 = vld [vmem:[%s267] sm:$0xf]
      %v269 = vmax.f32 %v265, %v268
      %v270 = vadd.f32 %v266, %v268
      %s271 = scalar_lea.vmem %s234, 24
      %v272 = vld [vmem:[%s271] sm:$0xf]
      %v273 = vmax.f32 %v269, %v272
      %v274 = vadd.f32 %v270, %v272
      %s275 = scalar_lea.vmem %s234, 28
      %v276 = vld [vmem:[%s275] sm:$0xf]
      %v277 = vmax.f32 %v273, %v276
      %v278 = vadd.f32 %v274, %v276
      %s279 = scalar_lea.vmem %s234, 32
      %v280 = vld [vmem:[%s279] sm:$0xf]
      %v281 = vmax.f32 %v277, %v280
      %v282 = vadd.f32 %v278, %v280
      %s283 = scalar_lea.vmem %s234, 36
      %v284 = vld [vmem:[%s283] sm:$0xf]
      %v285 = vmax.f32 %v281, %v284
      %v286 = vadd.f32 %v282, %v284
      %s287 = scalar_lea.vmem %s234, 40
      %v288 = vld [vmem:[%s287] sm:$0xf]
      %v289 = vmax.f32 %v285, %v288
      %v290 = vadd.f32 %v286, %v288
      %s291 = scalar_lea.vmem %s234, 44
      %v292 = vld [vmem:[%s291] sm:$0xf]
      %v293 = vmax.f32 %v289, %v292
      %v294 = vadd.f32 %v290, %v292
      %s295 = scalar_lea.vmem %s234, 48
      %v296 = vld [vmem:[%s295] sm:$0xf]
      %v297 = vmax.f32 %v293, %v296
      %v298 = vadd.f32 %v294, %v296
      %s299 = scalar_lea.vmem %s234, 52
      %v300 = vld [vmem:[%s299] sm:$0xf]
      %v301 = vmax.f32 %v297, %v300
      %v302 = vadd.f32 %v298, %v300
      %s303 = scalar_lea.vmem %s234, 56
      %v304 = vld [vmem:[%s303] sm:$0xf]
      %v305 = vmax.f32 %v301, %v304
      %v306 = vadd.f32 %v302, %v304
      %s307 = scalar_lea.vmem %s234, 60
      %v308 = vld [vmem:[%s307] sm:$0xf]
      %v309 = vmax.f32 %v305, %v308
      %v310 = vadd.f32 %v306, %v308
      %v311 = vmul.f32 %v310, 0.0625
      %312 = vst [vmem:[#allocation2] sm:$0xff] 0.0
      %313 = vst [vmem:[#allocation2 + $0x8] sm:$0xff] 0.0
      %314 = vst [vmem:[#allocation2 + $0x10] sm:$0xff] 0.0
      %315 = vst [vmem:[#allocation2 + $0x18] sm:$0xff] 0.0
      %316 = vst [vmem:[#allocation2 + $0x20] sm:$0xf] 0.0
      %317 = vst [vmem:[#allocation2 + $0x28] sm:$0xf] 0.0
      %318 = vst [vmem:[#allocation3] sm:$0xff] 0.0
      %319 = vst [vmem:[#allocation3 + $0x8] sm:$0xff] 0.0
      %320 = vst [vmem:[#allocation3 + $0x10] sm:$0xff] 0.0
      %321 = vst [vmem:[#allocation3 + $0x18] sm:$0xff] 0.0
      %322 = vst [vmem:[#allocation3 + $0x20] sm:$0xf] 0.0
      %323 = vst [vmem:[#allocation3 + $0x28] sm:$0xf] 0.0
      %vm324 = vcmask 125952
      %325 = vst.msk [vmem:[#allocation2 + $0x18] sm:$0xf] %vm324, %v309
      %326 = vst.msk [vmem:[#allocation3 + $0x18] sm:$0xf] %vm324, %v311
      %v327 = vld [vmem:[%s1] sm:$0x3]
      %v328 = vld [vmem:[%s2] sm:$0x3]
      %s330 = vtos %v328
      %v331 = vstv %s330
      %v333 = vadd.f32 %v331, 0.0
      %v334 = vrot.slane %v328, 1
      %s335 = vtos %v334
      %v336 = vstv %s335
      %v338 = vadd.f32 %v336, 0.0
      %v339 = vld [vmem:[#allocation2] sm:$0x80]
      %v340 = vld [vmem:[#allocation2 + $0x8] sm:$0x80]
      %v341 = vld [vmem:[#allocation2 + $0x10] sm:$0x7]
      %v342 = vld [vmem:[#allocation2 + $0x18] sm:$0x7]
      %s344 = vtos %v327
      %v345 = vstv %s344
      %v347 = vmul.f32 %v345, %v339
      %v348 = vmul.f32 %v345, %v340
      %v349 = vmul.f32 %v345, %v341
      %v350 = vmul.f32 %v345, %v342
      %v351 = vadd.f32 %v333, %v347
      %v352 = vadd.f32 %v333, %v348
      %v353 = vadd.f32 %v333, %v349
      %v354 = vadd.f32 %v333, %v350
      %v355 = vrot.slane %v327, 1
      %s356 = vtos %v355
      %v357 = vstv %s356
      %v359 = vmul.f32 %v357, %v339
      %v360 = vmul.f32 %v357, %v340
      %v361 = vmul.f32 %v357, %v341
      %v362 = vmul.f32 %v357, %v342
      %v363 = vadd.f32 %v338, %v359
      %v364 = vadd.f32 %v338, %v360
      %v365 = vadd.f32 %v338, %v361
      %v366 = vadd.f32 %v338, %v362
      %367 = vrot.lane.b32.xlu0 %v327, 127
      %v368 = vpop.permute.xlu0 %367
      %s369 = vtos %v368
      %v370 = vstv %s369
      %v372 = vmul.f32 %v370, %v340
      %v373 = vmul.f32 %v370, %v342
      %376 = vrot.lane.b32.xlu0 %v372, 127
      %v377 = vpop.permute.xlu0 %376
      %378 = vrot.lane.b32.xlu0 %v373, 127
      %v379 = vpop.permute.xlu0 %378
      %v382 = vadd.f32 %v351, %v377
      %v383 = vadd.f32 %v352, %v377
      %v384 = vadd.f32 %v353, %v379
      %v385 = vadd.f32 %v354, %v379
      %386 = vrot.lane.b32.xlu0 %v355, 127
      %v387 = vpop.permute.xlu0 %386
      %s388 = vtos %v387
      %v389 = vstv %s388
      %v391 = vmul.f32 %v389, %v340
      %v392 = vmul.f32 %v389, %v342
      %395 = vrot.lane.b32.xlu0 %v391, 127
      %v396 = vpop.permute.xlu0 %395
      %397 = vrot.lane.b32.xlu0 %v392, 127
      %v398 = vpop.permute.xlu0 %397
      %v401 = vadd.f32 %v363, %v396
      %v402 = vadd.f32 %v364, %v396
      %v403 = vadd.f32 %v365, %v398
      %v404 = vadd.f32 %v366, %v398
      %405 = vrot.lane.b32.xlu0 %v327, 126
      %v406 = vpop.permute.xlu0 %405
      %s407 = vtos %v406
      %v408 = vstv %s407
      %v410 = vmul.f32 %v408, %v340
      %v411 = vmul.f32 %v408, %v342
      %414 = vrot.lane.b32.xlu0 %v410, 126
      %v415 = vpop.permute.xlu0 %414
      %416 = vrot.lane.b32.xlu0 %v411, 126
      %v417 = vpop.permute.xlu0 %416
      %v420 = vadd.f32 %v382, %v415
      %v421 = vadd.f32 %v383, %v415
      %v422 = vadd.f32 %v384, %v417
      %v423 = vadd.f32 %v385, %v417
      %424 = vrot.lane.b32.xlu0 %v355, 126
      %v425 = vpop.permute.xlu0 %424
      %s426 = vtos %v425
      %v427 = vstv %s426
      %v429 = vmul.f32 %v427, %v340
      %v430 = vmul.f32 %v427, %v342
      %433 = vrot.lane.b32.xlu0 %v429, 126
      %v434 = vpop.permute.xlu0 %433
      %435 = vrot.lane.b32.xlu0 %v430, 126
      %v436 = vpop.permute.xlu0 %435
      %v439 = vadd.f32 %v401, %v434
      %v440 = vadd.f32 %v402, %v434
      %v441 = vadd.f32 %v403, %v436
      %v442 = vadd.f32 %v404, %v436
      %v443 = vld [vmem:[#allocation2 + $0x10] sm:$0xf]
      %v444 = vld [vmem:[#allocation2 + $0x18] sm:$0xf]
      %445 = vrot.lane.b32.xlu0 %v327, 125
      %v446 = vpop.permute.xlu0 %445
      %s447 = vtos %v446
      %v448 = vstv %s447
      %v450 = vmul.f32 %v448, %v443
      %v451 = vmul.f32 %v448, %v444
      %v454 = vrot.slane %v450, 1
      %v455 = vrot.slane %v451, 1
      %v458 = vadd.f32 %v420, %v454
      %v459 = vadd.f32 %v421, %v455
      %v460 = vadd.f32 %v422, %v454
      %v461 = vadd.f32 %v423, %v455
      %462 = vrot.lane.b32.xlu0 %v355, 125
      %v463 = vpop.permute.xlu0 %462
      %s464 = vtos %v463
      %v465 = vstv %s464
      %v467 = vmul.f32 %v465, %v443
      %v468 = vmul.f32 %v465, %v444
      %v471 = vrot.slane %v467, 1
      %v472 = vrot.slane %v468, 1
      %v475 = vadd.f32 %v439, %v471
      %v476 = vadd.f32 %v440, %v472
      %v477 = vadd.f32 %v441, %v471
      %v478 = vadd.f32 %v442, %v472
      %479 = vrot.lane.b32.xlu0 %v327, 124
      %v480 = vpop.permute.xlu0 %479
      %s481 = vtos %v480
      %v482 = vstv %s481
      %v484 = vmul.f32 %v482, %v444
      %v486 = vrot.slane %v484, 1
      %487 = vrot.lane.b32.xlu0 %v486, 127
      %v488 = vpop.permute.xlu0 %487
      %v490 = vadd.f32 %v458, %v488
      %v491 = vadd.f32 %v459, %v488
      %v492 = vadd.f32 %v460, %v488
      %v493 = vadd.f32 %v461, %v488
      %494 = vrot.lane.b32.xlu0 %v355, 124
      %v495 = vpop.permute.xlu0 %494
      %s496 = vtos %v495
      %v497 = vstv %s496
      %v499 = vmul.f32 %v497, %v444
      %v501 = vrot.slane %v499, 1
      %502 = vrot.lane.b32.xlu0 %v501, 127
      %v503 = vpop.permute.xlu0 %502
      %v505 = vadd.f32 %v475, %v503
      %v506 = vadd.f32 %v476, %v503
      %v507 = vadd.f32 %v477, %v503
      %v508 = vadd.f32 %v478, %v503
      %509 = vrot.lane.b32.xlu0 %v327, 123
      %v510 = vpop.permute.xlu0 %509
      %s511 = vtos %v510
      %v512 = vstv %s511
      %v514 = vmul.f32 %v512, %v444
      %v516 = vrot.slane %v514, 1
      %517 = vrot.lane.b32.xlu0 %v516, 126
      %v518 = vpop.permute.xlu0 %517
      %v520 = vadd.f32 %v490, %v518
      %v521 = vadd.f32 %v491, %v518
      %v522 = vadd.f32 %v492, %v518
      %v523 = vadd.f32 %v493, %v518
      %524 = vrot.lane.b32.xlu0 %v355, 123
      %v525 = vpop.permute.xlu0 %524
      %s526 = vtos %v525
      %v527 = vstv %s526
      %v529 = vmul.f32 %v527, %v444
      %v531 = vrot.slane %v529, 1
      %532 = vrot.lane.b32.xlu0 %v531, 126
      %v533 = vpop.permute.xlu0 %532
      %v535 = vadd.f32 %v505, %v533
      %v536 = vadd.f32 %v506, %v533
      %v537 = vadd.f32 %v507, %v533
      %v538 = vadd.f32 %v508, %v533
      %v539 = vld [vmem:[#allocation2 + $0x10] sm:$0x1e]
      %v540 = vld [vmem:[#allocation2 + $0x18] sm:$0x1e]
      %541 = vrot.lane.b32.xlu0 %v327, 122
      %v542 = vpop.permute.xlu0 %541
      %s543 = vtos %v542
      %v544 = vstv %s543
      %v546 = vmul.f32 %v544, %v539
      %v547 = vmul.f32 %v544, %v540
      %v550 = vrot.slane %v546, 2
      %v551 = vrot.slane %v547, 2
      %v554 = vadd.f32 %v520, %v550
      %v555 = vadd.f32 %v521, %v551
      %v556 = vadd.f32 %v522, %v550
      %v557 = vadd.f32 %v523, %v551
      %558 = vrot.lane.b32.xlu0 %v355, 122
      %v559 = vpop.permute.xlu0 %558
      %s560 = vtos %v559
      %v561 = vstv %s560
      %v563 = vmul.f32 %v561, %v539
      %v564 = vmul.f32 %v561, %v540
      %v567 = vrot.slane %v563, 2
      %v568 = vrot.slane %v564, 2
      %v571 = vadd.f32 %v535, %v567
      %v572 = vadd.f32 %v536, %v568
      %v573 = vadd.f32 %v537, %v567
      %v574 = vadd.f32 %v538, %v568
      %575 = vrot.lane.b32.xlu0 %v327, 121
      %v576 = vpop.permute.xlu0 %575
      %s577 = vtos %v576
      %v578 = vstv %s577
      %v580 = vmul.f32 %v578, %v540
      %v582 = vrot.slane %v580, 2
      %583 = vrot.lane.b32.xlu0 %v582, 127
      %v584 = vpop.permute.xlu0 %583
      %v586 = vadd.f32 %v554, %v584
      %v587 = vadd.f32 %v555, %v584
      %v588 = vadd.f32 %v556, %v584
      %v589 = vadd.f32 %v557, %v584
      %590 = vrot.lane.b32.xlu0 %v355, 121
      %v591 = vpop.permute.xlu0 %590
      %s592 = vtos %v591
      %v593 = vstv %s592
      %v595 = vmul.f32 %v593, %v540
      %v597 = vrot.slane %v595, 2
      %598 = vrot.lane.b32.xlu0 %v597, 127
      %v599 = vpop.permute.xlu0 %598
      %v601 = vadd.f32 %v571, %v599
      %v602 = vadd.f32 %v572, %v599
      %v603 = vadd.f32 %v573, %v599
      %v604 = vadd.f32 %v574, %v599
      %605 = vrot.lane.b32.xlu0 %v327, 120
      %v606 = vpop.permute.xlu0 %605
      %s607 = vtos %v606
      %v608 = vstv %s607
      %v610 = vmul.f32 %v608, %v540
      %v612 = vrot.slane %v610, 2
      %613 = vrot.lane.b32.xlu0 %v612, 126
      %v614 = vpop.permute.xlu0 %613
      %v616 = vadd.f32 %v586, %v614
      %v617 = vadd.f32 %v587, %v614
      %v618 = vadd.f32 %v588, %v614
      %v619 = vadd.f32 %v589, %v614
      %620 = vrot.lane.b32.xlu0 %v355, 120
      %v621 = vpop.permute.xlu0 %620
      %s622 = vtos %v621
      %v623 = vstv %s622
      %v625 = vmul.f32 %v623, %v540
      %v627 = vrot.slane %v625, 2
      %628 = vrot.lane.b32.xlu0 %v627, 126
      %v629 = vpop.permute.xlu0 %628
      %v631 = vadd.f32 %v601, %v629
      %v632 = vadd.f32 %v602, %v629
      %v633 = vadd.f32 %v603, %v629
      %v634 = vadd.f32 %v604, %v629
      %v635 = vld [vmem:[#allocation3] sm:$0x80]
      %v636 = vld [vmem:[#allocation3 + $0x8] sm:$0x80]
      %v637 = vld [vmem:[#allocation3 + $0x10] sm:$0x7]
      %v638 = vld [vmem:[#allocation3 + $0x18] sm:$0x7]
      %639 = vrot.lane.b32.xlu0 %v327, 119
      %v640 = vpop.permute.xlu0 %639
      %s641 = vtos %v640
      %v642 = vstv %s641
      %v644 = vmul.f32 %v642, %v635
      %v645 = vmul.f32 %v642, %v636
      %v646 = vmul.f32 %v642, %v637
      %v647 = vmul.f32 %v642, %v638
      %v648 = vadd.f32 %v616, %v644
      %v649 = vadd.f32 %v617, %v645
      %v650 = vadd.f32 %v618, %v646
      %v651 = vadd.f32 %v619, %v647
      %652 = vrot.lane.b32.xlu0 %v355, 119
      %v653 = vpop.permute.xlu0 %652
      %s654 = vtos %v653
      %v655 = vstv %s654
      %v657 = vmul.f32 %v655, %v635
      %v658 = vmul.f32 %v655, %v636
      %v659 = vmul.f32 %v655, %v637
      %v660 = vmul.f32 %v655, %v638
      %v661 = vadd.f32 %v631, %v657
      %v662 = vadd.f32 %v632, %v658
      %v663 = vadd.f32 %v633, %v659
      %v664 = vadd.f32 %v634, %v660
      %665 = vrot.lane.b32.xlu0 %v327, 118
      %v666 = vpop.permute.xlu0 %665
      %s667 = vtos %v666
      %v668 = vstv %s667
      %v670 = vmul.f32 %v668, %v636
      %v671 = vmul.f32 %v668, %v638
      %674 = vrot.lane.b32.xlu0 %v670, 127
      %v675 = vpop.permute.xlu0 %674
      %676 = vrot.lane.b32.xlu0 %v671, 127
      %v677 = vpop.permute.xlu0 %676
      %v680 = vadd.f32 %v648, %v675
      %v681 = vadd.f32 %v649, %v675
      %v682 = vadd.f32 %v650, %v677
      %v683 = vadd.f32 %v651, %v677
      %684 = vrot.lane.b32.xlu0 %v355, 118
      %v685 = vpop.permute.xlu0 %684
      %s686 = vtos %v685
      %v687 = vstv %s686
      %v689 = vmul.f32 %v687, %v636
      %v690 = vmul.f32 %v687, %v638
      %693 = vrot.lane.b32.xlu0 %v689, 127
      %v694 = vpop.permute.xlu0 %693
      %695 = vrot.lane.b32.xlu0 %v690, 127
      %v696 = vpop.permute.xlu0 %695
      %v699 = vadd.f32 %v661, %v694
      %v700 = vadd.f32 %v662, %v694
      %v701 = vadd.f32 %v663, %v696
      %v702 = vadd.f32 %v664, %v696
      %703 = vrot.lane.b32.xlu0 %v327, 117
      %v704 = vpop.permute.xlu0 %703
      %s705 = vtos %v704
      %v706 = vstv %s705
      %v708 = vmul.f32 %v706, %v636
      %v709 = vmul.f32 %v706, %v638
      %712 = vrot.lane.b32.xlu0 %v708, 126
      %v713 = vpop.permute.xlu0 %712
      %714 = vrot.lane.b32.xlu0 %v709, 126
      %v715 = vpop.permute.xlu0 %714
      %v718 = vadd.f32 %v680, %v713
      %v719 = vadd.f32 %v681, %v713
      %v720 = vadd.f32 %v682, %v715
      %v721 = vadd.f32 %v683, %v715
      %722 = vrot.lane.b32.xlu0 %v355, 117
      %v723 = vpop.permute.xlu0 %722
      %s724 = vtos %v723
      %v725 = vstv %s724
      %v727 = vmul.f32 %v725, %v636
      %v728 = vmul.f32 %v725, %v638
      %731 = vrot.lane.b32.xlu0 %v727, 126
      %v732 = vpop.permute.xlu0 %731
      %733 = vrot.lane.b32.xlu0 %v728, 126
      %v734 = vpop.permute.xlu0 %733
      %v737 = vadd.f32 %v699, %v732
      %v738 = vadd.f32 %v700, %v732
      %v739 = vadd.f32 %v701, %v734
      %v740 = vadd.f32 %v702, %v734
      %v741 = vld [vmem:[#allocation3 + $0x10] sm:$0xf]
      %v742 = vld [vmem:[#allocation3 + $0x18] sm:$0xf]
      %743 = vrot.lane.b32.xlu0 %v327, 116
      %v744 = vpop.permute.xlu0 %743
      %s745 = vtos %v744
      %v746 = vstv %s745
      %v748 = vmul.f32 %v746, %v741
      %v749 = vmul.f32 %v746, %v742
      %v752 = vrot.slane %v748, 1
      %v753 = vrot.slane %v749, 1
      %v756 = vadd.f32 %v718, %v752
      %v757 = vadd.f32 %v719, %v753
      %v758 = vadd.f32 %v720, %v752
      %v759 = vadd.f32 %v721, %v753
      %760 = vrot.lane.b32.xlu0 %v355, 116
      %v761 = vpop.permute.xlu0 %760
      %s762 = vtos %v761
      %v763 = vstv %s762
      %v765 = vmul.f32 %v763, %v741
      %v766 = vmul.f32 %v763, %v742
      %v769 = vrot.slane %v765, 1
      %v770 = vrot.slane %v766, 1
      %v773 = vadd.f32 %v737, %v769
      %v774 = vadd.f32 %v738, %v770
      %v775 = vadd.f32 %v739, %v769
      %v776 = vadd.f32 %v740, %v770
      %777 = vrot.lane.b32.xlu0 %v327, 115
      %v778 = vpop.permute.xlu0 %777
      %s779 = vtos %v778
      %v780 = vstv %s779
      %v782 = vmul.f32 %v780, %v742
      %v784 = vrot.slane %v782, 1
      %785 = vrot.lane.b32.xlu0 %v784, 127
      %v786 = vpop.permute.xlu0 %785
      %v788 = vadd.f32 %v756, %v786
      %v789 = vadd.f32 %v757, %v786
      %v790 = vadd.f32 %v758, %v786
      %v791 = vadd.f32 %v759, %v786
      %792 = vrot.lane.b32.xlu0 %v355, 115
      %v793 = vpop.permute.xlu0 %792
      %s794 = vtos %v793
      %v795 = vstv %s794
      %v797 = vmul.f32 %v795, %v742
      %v799 = vrot.slane %v797, 1
      %800 = vrot.lane.b32.xlu0 %v799, 127
      %v801 = vpop.permute.xlu0 %800
      %v803 = vadd.f32 %v773, %v801
      %v804 = vadd.f32 %v774, %v801
      %v805 = vadd.f32 %v775, %v801
      %v806 = vadd.f32 %v776, %v801
      %807 = vrot.lane.b32.xlu0 %v327, 114
      %v808 = vpop.permute.xlu0 %807
      %s809 = vtos %v808
      %v810 = vstv %s809
      %v812 = vmul.f32 %v810, %v742
      %v814 = vrot.slane %v812, 1
      %815 = vrot.lane.b32.xlu0 %v814, 126
      %v816 = vpop.permute.xlu0 %815
      %v818 = vadd.f32 %v788, %v816
      %v819 = vadd.f32 %v789, %v816
      %v820 = vadd.f32 %v790, %v816
      %v821 = vadd.f32 %v791, %v816
      %822 = vrot.lane.b32.xlu0 %v355, 114
      %v823 = vpop.permute.xlu0 %822
      %s824 = vtos %v823
      %v825 = vstv %s824
      %v827 = vmul.f32 %v825, %v742
      %v829 = vrot.slane %v827, 1
      %830 = vrot.lane.b32.xlu0 %v829, 126
      %v831 = vpop.permute.xlu0 %830
      %v833 = vadd.f32 %v803, %v831
      %v834 = vadd.f32 %v804, %v831
      %v835 = vadd.f32 %v805, %v831
      %v836 = vadd.f32 %v806, %v831
      %v837 = vld [vmem:[#allocation3 + $0x10] sm:$0x1e]
      %v838 = vld [vmem:[#allocation3 + $0x18] sm:$0x1e]
      %839 = vrot.lane.b32.xlu0 %v327, 113
      %v840 = vpop.permute.xlu0 %839
      %s841 = vtos %v840
      %v842 = vstv %s841
      %v844 = vmul.f32 %v842, %v837
      %v845 = vmul.f32 %v842, %v838
      %v848 = vrot.slane %v844, 2
      %v849 = vrot.slane %v845, 2
      %v852 = vadd.f32 %v818, %v848
      %v853 = vadd.f32 %v819, %v849
      %v854 = vadd.f32 %v820, %v848
      %v855 = vadd.f32 %v821, %v849
      %856 = vrot.lane.b32.xlu0 %v355, 113
      %v857 = vpop.permute.xlu0 %856
      %s858 = vtos %v857
      %v859 = vstv %s858
      %v861 = vmul.f32 %v859, %v837
      %v862 = vmul.f32 %v859, %v838
      %v865 = vrot.slane %v861, 2
      %v866 = vrot.slane %v862, 2
      %v869 = vadd.f32 %v833, %v865
      %v870 = vadd.f32 %v834, %v866
      %v871 = vadd.f32 %v835, %v865
      %v872 = vadd.f32 %v836, %v866
      %873 = vrot.lane.b32.xlu0 %v327, 112
      %v874 = vpop.permute.xlu0 %873
      %s875 = vtos %v874
      %v876 = vstv %s875
      %v878 = vmul.f32 %v876, %v838
      %v880 = vrot.slane %v878, 2
      %881 = vrot.lane.b32.xlu0 %v880, 127
      %v882 = vpop.permute.xlu0 %881
      %v884 = vadd.f32 %v852, %v882
      %v885 = vadd.f32 %v853, %v882
      %v886 = vadd.f32 %v854, %v882
      %v887 = vadd.f32 %v855, %v882
      %888 = vrot.lane.b32.xlu0 %v355, 112
      %v889 = vpop.permute.xlu0 %888
      %s890 = vtos %v889
      %v891 = vstv %s890
      %v893 = vmul.f32 %v891, %v838
      %v895 = vrot.slane %v893, 2
      %896 = vrot.lane.b32.xlu0 %v895, 127
      %v897 = vpop.permute.xlu0 %896
      %v899 = vadd.f32 %v869, %v897
      %v900 = vadd.f32 %v870, %v897
      %v901 = vadd.f32 %v871, %v897
      %v902 = vadd.f32 %v872, %v897
      %903 = vrot.lane.b32.xlu0 %v327, 111
      %v904 = vpop.permute.xlu0 %903
      %s905 = vtos %v904
      %v906 = vstv %s905
      %v908 = vmul.f32 %v906, %v838
      %v910 = vrot.slane %v908, 2
      %911 = vrot.lane.b32.xlu0 %v910, 126
      %v912 = vpop.permute.xlu0 %911
      %v914 = vadd.f32 %v884, %v912
      %v915 = vadd.f32 %v885, %v912
      %v916 = vadd.f32 %v886, %v912
      %v917 = vadd.f32 %v887, %v912
      %918 = vrot.lane.b32.xlu0 %v355, 111
      %v919 = vpop.permute.xlu0 %918
      %s920 = vtos %v919
      %v921 = vstv %s920
      %v923 = vmul.f32 %v921, %v838
      %v925 = vrot.slane %v923, 2
      %926 = vrot.lane.b32.xlu0 %v925, 126
      %v927 = vpop.permute.xlu0 %926
      %v929 = vadd.f32 %v899, %v927
      %v930 = vadd.f32 %v900, %v927
      %v931 = vadd.f32 %v901, %v927
      %v932 = vadd.f32 %v902, %v927
      %937 = vrot.lane.b32.xlu0 %v914, 1
      %v938 = vpop.permute.xlu0 %937
      %939 = vrot.lane.b32.xlu0 %v915, 1
      %v940 = vpop.permute.xlu0 %939
      %941 = vrot.lane.b32.xlu0 %v916, 1
      %v942 = vpop.permute.xlu0 %941
      %943 = vrot.lane.b32.xlu0 %v917, 1
      %v944 = vpop.permute.xlu0 %943
      %vm945 = vcmask 7168
      %v946 = vsel %vm945, %v938, %v940
      %v947 = vsel %vm945, %v942, %v944
      %vm950 = vcmask 130055
      %951 = vst.msk [vmem:[%s239 - $0x7] sm:$0x80] %vm950, %v946
      %vm952 = vcmask 124928
      %953 = vst.msk [vmem:[%s239 + $0x1] sm:$0x7] %vm952, %v947
      %958 = vrot.lane.b32.xlu0 %v929, 1
      %v959 = vpop.permute.xlu0 %958
      %960 = vrot.lane.b32.xlu0 %v930, 1
      %v961 = vpop.permute.xlu0 %960
      %962 = vrot.lane.b32.xlu0 %v931, 1
      %v963 = vpop.permute.xlu0 %962
      %964 = vrot.lane.b32.xlu0 %v932, 1
      %v965 = vpop.permute.xlu0 %964
      %v966 = vsel %vm945, %v959, %v961
      %v967 = vsel %vm945, %v963, %v965
      %s970 = scalar_lea.vmem %s239, 4
      %971 = vst.msk [vmem:[%s970 - $0x7] sm:$0x80] %vm950, %v966
      %972 = vst.msk [vmem:[%s970 + $0x1] sm:$0x7] %vm952, %v967
      %v973 = vsel %vm950, %v946, 0.0
      %974 = vadd.xlane.f32.xlu0 %v973
      %v975 = vpop.xlane.xlu0 %974
      %v976 = vsel %vm952, %v947, 0.0
      %977 = vadd.xlane.f32.xlu0 %v976
      %v978 = vpop.xlane.xlu0 %977
      %vm979 = vcmask 7175
      %980 = vst.msk [vmem:[%s244 - $0x7] sm:$0x80] %vm979, %v975
      %vm981 = vcmask 2048
      %982 = vst.msk [vmem:[%s244 + $0x1] sm:$0x7] %vm981, %v978
      %v983 = vsel %vm950, %v966, 0.0
      %984 = vadd.xlane.f32.xlu0 %v983
      %v985 = vpop.xlane.xlu0 %984
      %v986 = vsel %vm952, %v967, 0.0
      %987 = vadd.xlane.f32.xlu0 %v986
      %v988 = vpop.xlane.xlu0 %987
      %s989 = scalar_lea.vmem %s244, 4
      %990 = vst.msk [vmem:[%s989 - $0x7] sm:$0x80] %vm979, %v985
      %991 = vst.msk [vmem:[%s989 + $0x1] sm:$0x7] %vm981, %v988
      %v992 = vmul.f32 %v914, %v914
      %v993 = vmul.f32 %v915, %v915
      %v994 = vmul.f32 %v916, %v916
      %v995 = vmul.f32 %v917, %v917
      %1000 = vrot.lane.b32.xlu0 %v992, 1
      %v1001 = vpop.permute.xlu0 %1000
      %1002 = vrot.lane.b32.xlu0 %v993, 1
      %v1003 = vpop.permute.xlu0 %1002
      %1004 = vrot.lane.b32.xlu0 %v994, 1
      %v1005 = vpop.permute.xlu0 %1004
      %1006 = vrot.lane.b32.xlu0 %v995, 1
      %v1007 = vpop.permute.xlu0 %1006
      %v1008 = vsel %vm945, %v1001, %v1003
      %v1009 = vsel %vm945, %v1005, %v1007
      %v1012 = vsel %vm950, %v1008, 0.0
      %1013 = vadd.xlane.f32.xlu0 %v1012
      %v1014 = vpop.xlane.xlu0 %1013
      %v1015 = vsel %vm952, %v1009, 0.0
      %1016 = vadd.xlane.f32.xlu0 %v1015
      %v1017 = vpop.xlane.xlu0 %1016
      %1018 = vst.msk [vmem:[%s249 - $0x7] sm:$0x80] %vm979, %v1014
      %1019 = vst.msk [vmem:[%s249 + $0x1] sm:$0x7] %vm981, %v1017
      %v1020 = vmul.f32 %v929, %v929
      %v1021 = vmul.f32 %v930, %v930
      %v1022 = vmul.f32 %v931, %v931
      %v1023 = vmul.f32 %v932, %v932
      %1028 = vrot.lane.b32.xlu0 %v1020, 1
      %v1029 = vpop.permute.xlu0 %1028
      %1030 = vrot.lane.b32.xlu0 %v1021, 1
      %v1031 = vpop.permute.xlu0 %1030
      %1032 = vrot.lane.b32.xlu0 %v1022, 1
      %v1033 = vpop.permute.xlu0 %1032
      %1034 = vrot.lane.b32.xlu0 %v1023, 1
      %v1035 = vpop.permute.xlu0 %1034
      %v1036 = vsel %vm945, %v1029, %v1031
      %v1037 = vsel %vm945, %v1033, %v1035
      %v1040 = vsel %vm950, %v1036, 0.0
      %1041 = vadd.xlane.f32.xlu0 %v1040
      %v1042 = vpop.xlane.xlu0 %1041
      %v1043 = vsel %vm952, %v1037, 0.0
      %1044 = vadd.xlane.f32.xlu0 %v1043
      %v1045 = vpop.xlane.xlu0 %1044
      %s1046 = scalar_lea.vmem %s249, 4
      %1047 = vst.msk [vmem:[%s1046 - $0x7] sm:$0x80] %vm979, %v1042
      %1048 = vst.msk [vmem:[%s1046 + $0x1] sm:$0x7] %vm981, %v1045
      %p1049 = scmp.lt.s32.totalorder %s17, 1
      %s1050 = scalar_select %p1049, %s17, 1
      %s1051 = smul.addr %s1050, 2
      %s1052 = smul.addr %s1051, 4
      %s1053 = scalar_lea.vmem %s3, %s1052
      %p1054 = scmp.lt.s32.totalorder %s17, 1
      %s1055 = scalar_select %p1054, %s17, 1
      %s1056 = smul.addr %s1055, 2
      %s1057 = smul.addr %s1056, 4
      %s1058 = scalar_lea.vmem %s4, %s1057
      %p1059 = scmp.lt.s32.totalorder %s17, 1
      %s1060 = scalar_select %p1059, %s17, 1
      %s1061 = smul.addr %s1060, 2
      %s1062 = smul.addr %s1061, 4
      %s1063 = scalar_lea.vmem %s5, %s1062
      // Predicated region
      $region33: #{_lambda_.12} parent=31 // pred_check
        %p1064 = pneg %p103
      $region34: #{_lambda_.12} parent=31 // pred_check_branch
        %1066 = sbr.rel (%p1064) target = $region36
      $region35: #{_lambda_.12} parent=31 // pred_region
        _
      $region36: #{_lambda_.12} parent=31 // pred_fallthru
        _
      // Predicated region
      $region37: #{_lambda_.12} parent=31 // pred_check
        %p1067 = pneg %p129
      $region38: #{_lambda_.12} parent=31 // pred_check_branch
        %1069 = sbr.rel (%p1067) target = $region40
      $region39: #{_lambda_.12} parent=31 // pred_region
        _
      $region40: #{_lambda_.12} parent=31 // pred_fallthru
        _
      // Predicated region
      $region41: #{_lambda_.12} parent=31 // pred_check
        %p1070 = pneg %p155
      $region42: #{_lambda_.12} parent=31 // pred_check_branch
        %1072 = sbr.rel (%p1070) target = $region44
      $region43: #{_lambda_.12} parent=31 // pred_region
        _
      $region44: #{_lambda_.12} parent=31 // pred_fallthru
        _
    $region32: #{_lambda_.12} parent=5 // pred_fallthru
      _
    %p1073 = scmp.le.s32.totalorder 2, %s12
    // Predicated region
    $region45: #{_lambda_.12} parent=5 // pred_check
      %p1074 = pneg %p1073
    $region46: #{_lambda_.12} parent=5 // pred_check_branch
      %1076 = sbr.rel (%p1074) target = $region48
    $region47: #{_lambda_.12} parent=5 // pred_region
      %s1077 = ssub.s32 %s12, 2
      // Predicated region
      $region49: #{_lambda_.12} parent=47 // pred_check
        %p1078 = pneg %p109
      $region50: #{_lambda_.12} parent=47 // pred_check_branch
        %1080 = sbr.rel (%p1078) target = $region52
      $region51: #{_lambda_.12} parent=47 // pred_region
        %p1081 = scmp.lt.s32.totalorder %s18, 1
        %s1082 = scalar_select %p1081, %s18, 1
        %s1083 = smul.addr %s1082, 2
        %s1084 = smul.addr %s1083, 4
        %s1085 = scalar_lea.vmem %s3, %s1084
      $region52: #{_lambda_.12} parent=47 // pred_fallthru
        _
      // Predicated region
      $region53: #{_lambda_.12} parent=47 // pred_check
        %p1086 = pneg %p135
      $region54: #{_lambda_.12} parent=47 // pred_check_branch
        %1088 = sbr.rel (%p1086) target = $region56
      $region55: #{_lambda_.12} parent=47 // pred_region
        %p1089 = scmp.lt.s32.totalorder %s18, 1
        %s1090 = scalar_select %p1089, %s18, 1
        %s1091 = smul.addr %s1090, 2
        %s1092 = smul.addr %s1091, 4
        %s1093 = scalar_lea.vmem %s4, %s1092
      $region56: #{_lambda_.12} parent=47 // pred_fallthru
        _
      // Predicated region
      $region57: #{_lambda_.12} parent=47 // pred_check
        %p1094 = pneg %p161
      $region58: #{_lambda_.12} parent=47 // pred_check_branch
        %1096 = sbr.rel (%p1094) target = $region60
      $region59: #{_lambda_.12} parent=47 // pred_region
        %p1097 = scmp.lt.s32.totalorder %s18, 1
        %s1098 = scalar_select %p1097, %s18, 1
        %s1099 = smul.addr %s1098, 2
        %s1100 = smul.addr %s1099, 4
        %s1101 = scalar_lea.vmem %s5, %s1100
      $region60: #{_lambda_.12} parent=47 // pred_fallthru
        _
    $region48: #{_lambda_.12} parent=5 // pred_fallthru
      _
  $region6: #{_lambda_.12} parent=0 // loop_footer
    %s16 = sadd.s32 1, %s12
  $region7: #{_lambda_.12} parent=0 // loop_footer_branch
    %11 = sbr.rel target = $region3
  $region8: #{_lambda_.12} parent=0 // loop_exit
    _

// kernel: _lambda_.18
$region0: #{_lambda_.18}
  #allocation0 [shape = 'u32[]', space=smem, size = 0x4, offset = 0x4, fixed_abs, tag = 'smem constant byte address 0x4 - core index']
  #allocation1 [shape = 'u32[144,128]{1,0:T(1,128)}', space=vmem, size = 0x12000, scoped, tag = 'internal scratch']
  #allocation2 [shape = 'f32[32,256]{1,0:T(8,128)}', space=vmem, size = 0x8000, scoped, tag = 'scratch operand']
  #allocation3 [shape = 'f32[32,256]{1,0:T(8,128)}', space=vmem, size = 0x8000, scoped, tag = 'scratch operand']
  %s0 = inlined_call_operand.vmem [shape: f32[2,16,16,4], index: 0, kind: input, shape index: {}]
  %s1 = inlined_call_operand.vmem [shape: f32[2,18], index: 1, kind: input, shape index: {}]
  %s2 = inlined_call_operand.vmem [shape: f32[2,1], index: 2, kind: input, shape index: {}]
  %s3 = inlined_call_operand.vmem [shape: f32[2,2,16,4], index: 3, kind: output, shape index: {0}]
  %s4 = inlined_call_operand.vmem [shape: f32[2,2,16,1], index: 4, kind: output, shape index: {1}]
  %s5 = inlined_call_operand.vmem [shape: f32[2,2,16,1], index: 5, kind: output, shape index: {2}]
  %6 = xla_tuple %s3, %s4, %s5
  %s7 = sld [smem:[#allocation0]]
  $region61: #{_lambda_.18} parent=0
    _
  %s9 = ssub.s32 1, %s7
  %s10 = scalar_select 0, %s9, %s7
  loop: start=0, step=1, limit=4
  $region2: #{_lambda_.18} parent=0 // loop_pre_header
    _
  $region3: #{_lambda_.18} parent=0 // loop_header
    %s12 = sphi 0, %s16
    %p13 = scmp.ge.s32.totalorder %s12, 4
    %s22 = sphi 0, %s24
    %s25 = sphi 0, %s22
    %s26 = sphi 0, %s25
    %s42 = sphi 0, %s26
    %s46 = sphi 0, %s46
    %s48 = sphi 0, %s46
    %s49 = sphi 0, %s48
    %s63 = sphi 0, %s49
    %s67 = sphi 0, %s67
    %s69 = sphi 0, %s67
    %s70 = sphi 0, %s69
    %s84 = sphi 0, %s70
    %s90 = sphi 0, %s92
    %s93 = sphi 0, %s90
    %s94 = sphi 0, %s93
    %s110 = sphi 0, %s94
    %s116 = sphi 0, %s118
    %s119 = sphi 0, %s116
    %s120 = sphi 0, %s119
    %s136 = sphi 0, %s120
    %s142 = sphi 0, %s144
    %s145 = sphi 0, %s142
    %s146 = sphi 0, %s145
    %s162 = sphi 0, %s146
  $region4: #{_lambda_.18} parent=0 // loop_header_branch
    %15 = sbr.rel (%p13) target = $region8
  $region5: #{_lambda_.18} parent=0 // loop_body
    %s17 = ssub.s32 %s12, 1
    %s18 = ssub.s32 %s12, 2
    %s19 = sadd.s32 %s12, 1
    %s20 = ssub.s32 %s12, %s19
    %p21 = scmp.eq.s32.totalorder %s20, 0
    %s23 = sadd.s32 %s22, 1
    %s24 = scalar_select %p21, %s22, %s23
    %p27 = pneg %p21
    %p28 = scmp.eq.s32.totalorder %s12, 1
    %p29 = por %p27, %p28
    %p30 = scmp.ne.s32.totalorder %s22, %s25
    %p31 = scmp.eq.s32.totalorder %s12, 0
    %p32 = por %p30, %p31
    %p33 = scmp.ne.s32.totalorder %s22, %s25
    %p34 = scmp.eq.s32.totalorder %s17, 1
    %p35 = por %p33, %p34
    %p36 = scmp.ne.s32.totalorder %s25, %s26
    %p37 = scmp.eq.s32.totalorder %s17, 0
    %p38 = por %p36, %p37
    %p39 = scmp.ne.s32.totalorder %s25, %s26
    %p40 = scmp.eq.s32.totalorder %s18, 1
    %p41 = por %p39, %p40
    %p43 = scmp.ne.s32.totalorder %s26, %s42
    %p44 = scmp.eq.s32.totalorder %s18, 0
    %p45 = por %p43, %p44
    %s47 = sadd.s32 %s46, 1
    %p50 = scmp.eq.s32.totalorder %s12, 1
    %p51 = scmp.ne.s32.totalorder %s46, %s48
    %p52 = scmp.eq.s32.totalorder %s12, 0
    %p53 = por %p51, %p52
    %p54 = scmp.ne.s32.totalorder %s46, %s48
    %p55 = scmp.eq.s32.totalorder %s17, 1
    %p56 = por %p54, %p55
    %p57 = scmp.ne.s32.totalorder %s48, %s49
    %p58 = scmp.eq.s32.totalorder %s17, 0
    %p59 = por %p57, %p58
    %p60 = scmp.ne.s32.totalorder %s48, %s49
    %p61 = scmp.eq.s32.totalorder %s18, 1
    %p62 = por %p60, %p61
    %p64 = scmp.ne.s32.totalorder %s49, %s63
    %p65 = scmp.eq.s32.totalorder %s18, 0
    %p66 = por %p64, %p65
    %s68 = sadd.s32 %s67, 1
    %p71 = scmp.eq.s32.totalorder %s12, 1
    %p72 = scmp.ne.s32.totalorder %s67, %s69
    %p73 = scmp.eq.s32.totalorder %s12, 0
    %p74 = por %p72, %p73
    %p75 = scmp.ne.s32.totalorder %s67, %s69
    %p76 = scmp.eq.s32.totalorder %s17, 1
    %p77 = por %p75, %p76
    %p78 = scmp.ne.s32.totalorder %s69, %s70
    %p79 = scmp.eq.s32.totalorder %s17, 0
    %p80 = por %p78, %p79
    %p81 = scmp.ne.s32.totalorder %s69, %s70
    %p82 = scmp.eq.s32.totalorder %s18, 1
    %p83 = por %p81, %p82
    %p85 = scmp.ne.s32.totalorder %s70, %s84
    %p86 = scmp.eq.s32.totalorder %s18, 0
    %p87 = por %p85, %p86
    %s88 = ssub.s32 %s12, %s19
    %p89 = scmp.eq.s32.totalorder %s88, 0
    %s91 = sadd.s32 %s90, 1
    %s92 = scalar_select %p89, %s90, %s91
    %p95 = pneg %p89
    %p96 = scmp.eq.s32.totalorder %s12, 1
    %p97 = por %p95, %p96
    %p98 = scmp.ne.s32.totalorder %s90, %s93
    %p99 = scmp.eq.s32.totalorder %s12, 0
    %p100 = por %p98, %p99
    %p101 = scmp.ne.s32.totalorder %s90, %s93
    %p102 = scmp.eq.s32.totalorder %s17, 1
    %p103 = por %p101, %p102
    %p104 = scmp.ne.s32.totalorder %s93, %s94
    %p105 = scmp.eq.s32.totalorder %s17, 0
    %p106 = por %p104, %p105
    %p107 = scmp.ne.s32.totalorder %s93, %s94
    %p108 = scmp.eq.s32.totalorder %s18, 1
    %p109 = por %p107, %p108
    %p111 = scmp.ne.s32.totalorder %s94, %s110
    %p112 = scmp.eq.s32.totalorder %s18, 0
    %p113 = por %p111, %p112
    %s114 = ssub.s32 %s12, %s19
    %p115 = scmp.eq.s32.totalorder %s114, 0
    %s117 = sadd.s32 %s116, 1
    %s118 = scalar_select %p115, %s116, %s117
    %p121 = pneg %p115
    %p122 = scmp.eq.s32.totalorder %s12, 1
    %p123 = por %p121, %p122
    %p124 = scmp.ne.s32.totalorder %s116, %s119
    %p125 = scmp.eq.s32.totalorder %s12, 0
    %p126 = por %p124, %p125
    %p127 = scmp.ne.s32.totalorder %s116, %s119
    %p128 = scmp.eq.s32.totalorder %s17, 1
    %p129 = por %p127, %p128
    %p130 = scmp.ne.s32.totalorder %s119, %s120
    %p131 = scmp.eq.s32.totalorder %s17, 0
    %p132 = por %p130, %p131
    %p133 = scmp.ne.s32.totalorder %s119, %s120
    %p134 = scmp.eq.s32.totalorder %s18, 1
    %p135 = por %p133, %p134
    %p137 = scmp.ne.s32.totalorder %s120, %s136
    %p138 = scmp.eq.s32.totalorder %s18, 0
    %p139 = por %p137, %p138
    %s140 = ssub.s32 %s12, %s19
    %p141 = scmp.eq.s32.totalorder %s140, 0
    %s143 = sadd.s32 %s142, 1
    %s144 = scalar_select %p141, %s142, %s143
    %p147 = pneg %p141
    %p148 = scmp.eq.s32.totalorder %s12, 1
    %p149 = por %p147, %p148
    %p150 = scmp.ne.s32.totalorder %s142, %s145
    %p151 = scmp.eq.s32.totalorder %s12, 0
    %p152 = por %p150, %p151
    %p153 = scmp.ne.s32.totalorder %s142, %s145
    %p154 = scmp.eq.s32.totalorder %s17, 1
    %p155 = por %p153, %p154
    %p156 = scmp.ne.s32.totalorder %s145, %s146
    %p157 = scmp.eq.s32.totalorder %s17, 0
    %p158 = por %p156, %p157
    %p159 = scmp.ne.s32.totalorder %s145, %s146
    %p160 = scmp.eq.s32.totalorder %s18, 1
    %p161 = por %p159, %p160
    %p163 = scmp.ne.s32.totalorder %s146, %s162
    %p164 = scmp.eq.s32.totalorder %s18, 0
    %p165 = por %p163, %p164
    %p166 = scmp.le.s32.totalorder 1, %s12
    %p167 = scmp.lt.s32.totalorder %s12, 3
    %p168 = pnand %p166, %p167
    %p169 = pneg %p168
    // Predicated region
    $region9: #{_lambda_.18} parent=5 // pred_check
      _
    $region10: #{_lambda_.18} parent=5 // pred_check_branch
      %171 = sbr.rel (%p168) target = $region12
    $region11: #{_lambda_.18} parent=5 // pred_region
      %s172 = ssub.s32 %s12, 1
      // Predicated region
      $region13: #{_lambda_.18} parent=11 // pred_check
        %p173 = pneg %p59
      $region14: #{_lambda_.18} parent=11 // pred_check_branch
        %175 = sbr.rel (%p173) target = $region16
      $region15: #{_lambda_.18} parent=11 // pred_region
        _
      $region16: #{_lambda_.18} parent=11 // pred_fallthru
        _
      // Predicated region
      $region17: #{_lambda_.18} parent=11 // pred_check
        %p176 = pneg %p80
      $region18: #{_lambda_.18} parent=11 // pred_check_branch
        %178 = sbr.rel (%p176) target = $region20
      $region19: #{_lambda_.18} parent=11 // pred_region
        _
      $region20: #{_lambda_.18} parent=11 // pred_fallthru
        _
    $region12: #{_lambda_.18} parent=5 // pred_fallthru
      _
    %p179 = scmp.lt.s32.totalorder %s12, 2
    // Predicated region
    $region21: #{_lambda_.18} parent=5 // pred_check
      %p180 = pneg %p179
    $region22: #{_lambda_.18} parent=5 // pred_check_branch
      %182 = sbr.rel (%p180) target = $region24
    $region23: #{_lambda_.18} parent=5 // pred_region
      // Predicated region
      $region25: #{_lambda_.18} parent=23 // pred_check
        %p183 = pneg %p32
      $region26: #{_lambda_.18} parent=23 // pred_check_branch
        %185 = sbr.rel (%p183) target = $region28
      $region27: #{_lambda_.18} parent=23 // pred_region
        %p186 = scmp.lt.s32.totalorder %s12, 1
        %s187 = scalar_select %p186, %s12, 1
        %s188 = smul.addr %s187, 32
        %s189 = smul.addr %s188, 8
        %s190 = scalar_lea.vmem %s0, %s189
      $region28: #{_lambda_.18} parent=23 // pred_fallthru
        _
    $region24: #{_lambda_.18} parent=5 // pred_fallthru
      _
    %p191 = scmp.le.s32.totalorder 1, %s12
    %p192 = scmp.lt.s32.totalorder %s12, 3
    %p193 = pnand %p191, %p192
    %p194 = pneg %p193
    // Predicated region
    $region29: #{_lambda_.18} parent=5 // pred_check
      _
    $region30: #{_lambda_.18} parent=5 // pred_check_branch
      %196 = sbr.rel (%p193) target = $region32
    $region31: #{_lambda_.18} parent=5 // pred_region
      %s197 = ssub.s32 %s12, 1
      %p198 = scmp.lt.s32.totalorder %s17, 1
      %s199 = scalar_select %p198, %s17, 1
      %s200 = smul.addr %s199, 32
      %s201 = smul.addr %s200, 8
      %s202 = scalar_lea.vmem %s0, %s201
      %p203 = pneg %p38
      %p204 = pneg %p35
      %p205 = pneg %p59
      %p206 = pneg %p56
      %p207 = pneg %p80
      %p208 = pneg %p77
      %p209 = pneg %p106
      %p210 = pneg %p103
      %p211 = scmp.lt.s32.totalorder %s17, 1
      %s212 = scalar_select %p211, %s17, 1
      %s213 = smul.addr %s212, 4
      %s214 = smul.addr %s213, 8
      %s215 = scalar_lea.vmem %s3, %s214
      %p216 = pneg %p132
      %p217 = pneg %p129
      %p218 = scmp.lt.s32.totalorder %s17, 1
      %s219 = scalar_select %p218, %s17, 1
      %s220 = smul.addr %s219, 4
      %s221 = smul.addr %s220, 8
      %s222 = scalar_lea.vmem %s4, %s221
      %p223 = pneg %p158
      %p224 = pneg %p155
      %p225 = scmp.lt.s32.totalorder %s17, 1
      %s226 = scalar_select %p225, %s17, 1
      %s227 = smul.addr %s226, 4
      %s228 = smul.addr %s227, 8
      %s229 = scalar_lea.vmem %s5, %s228
      %p230 = scmp.lt.s32.totalorder %s17, 1
      %s231 = scalar_select %p230, %s17, 1
      %s232 = smul.addr %s231, 32
      %s233 = smul.addr %s232, 8
      %s234 = scalar_lea.vmem %s0, %s233
      %p235 = scmp.lt.s32.totalorder %s17, 1
      %s236 = scalar_select %p235, %s17, 1
      %s237 = smul.addr %s236, 4
      %s238 = smul.addr %s237, 8
      %s239 = scalar_lea.vmem %s3, %s238
      %p240 = scmp.lt.s32.totalorder %s17, 1
      %s241 = scalar_select %p240, %s17, 1
      %s242 = smul.addr %s241, 4
      %s243 = smul.addr %s242, 8
      %s244 = scalar_lea.vmem %s4, %s243
      %p245 = scmp.lt.s32.totalorder %s17, 1
      %s246 = scalar_select %p245, %s17, 1
      %s247 = smul.addr %s246, 4
      %s248 = smul.addr %s247, 8
      %s249 = scalar_lea.vmem %s5, %s248
      %v250 = vld [vmem:[%s234] sm:$0xff]
      %v251 = vld [vmem:[%s234 + $0x8] sm:$0xff]
      %s252 = scalar_lea.vmem %s234, 16
      %v253 = vld [vmem:[%s252] sm:$0xff]
      %v254 = vld [vmem:[%s252 + $0x8] sm:$0xff]
      %v255 = vmax.f32 %v250, %v253
      %v256 = vmax.f32 %v251, %v254
      %v257 = vadd.f32 %v250, %v253
      %v258 = vadd.f32 %v251, %v254
      %s259 = scalar_lea.vmem %s234, 32
      %v260 = vld [vmem:[%s259] sm:$0xff]
      %v261 = vld [vmem:[%s259 + $0x8] sm:$0xff]
      %v262 = vmax.f32 %v255, %v260
      %v263 = vmax.f32 %v256, %v261
      %v264 = vadd.f32 %v257, %v260
      %v265 = vadd.f32 %v258, %v261
      %s266 = scalar_lea.vmem %s234, 48
      %v267 = vld [vmem:[%s266] sm:$0xff]
      %v268 = vld [vmem:[%s266 + $0x8] sm:$0xff]
      %v269 = vmax.f32 %v262, %v267
      %v270 = vmax.f32 %v263, %v268
      %v271 = vadd.f32 %v264, %v267
      %v272 = vadd.f32 %v265, %v268
      %s273 = scalar_lea.vmem %s234, 64
      %v274 = vld [vmem:[%s273] sm:$0xff]
      %v275 = vld [vmem:[%s273 + $0x8] sm:$0xff]
      %v276 = vmax.f32 %v269, %v274
      %v277 = vmax.f32 %v270, %v275
      %v278 = vadd.f32 %v271, %v274
      %v279 = vadd.f32 %v272, %v275
      %s280 = scalar_lea.vmem %s234, 80
      %v281 = vld [vmem:[%s280] sm:$0xff]
      %v282 = vld [vmem:[%s280 + $0x8] sm:$0xff]
      %v283 = vmax.f32 %v276, %v281
      %v284 = vmax.f32 %v277, %v282
      %v285 = vadd.f32 %v278, %v281
      %v286 = vadd.f32 %v279, %v282
      %s287 = scalar_lea.vmem %s234, 96
      %v288 = vld [vmem:[%s287] sm:$0xff]
      %v289 = vld [vmem:[%s287 + $0x8] sm:$0xff]
      %v290 = vmax.f32 %v283, %v288
      %v291 = vmax.f32 %v284, %v289
      %v292 = vadd.f32 %v285, %v288
      %v293 = vadd.f32 %v286, %v289
      %s294 = scalar_lea.vmem %s234, 112
      %v295 = vld [vmem:[%s294] sm:$0xff]
      %v296 = vld [vmem:[%s294 + $0x8] sm:$0xff]
      %v297 = vmax.f32 %v290, %v295
      %v298 = vmax.f32 %v291, %v296
      %v299 = vadd.f32 %v292, %v295
      %v300 = vadd.f32 %v293, %v296
      %s301 = scalar_lea.vmem %s234, 128
      %v302 = vld [vmem:[%s301] sm:$0xff]
      %v303 = vld [vmem:[%s301 + $0x8] sm:$0xff]
      %v304 = vmax.f32 %v297, %v302
      %v305 = vmax.f32 %v298, %v303
      %v306 = vadd.f32 %v299, %v302
      %v307 = vadd.f32 %v300, %v303
      %s308 = scalar_lea.vmem %s234, 144
      %v309 = vld [vmem:[%s308] sm:$0xff]
      %v310 = vld [vmem:[%s308 + $0x8] sm:$0xff]
      %v311 = vmax.f32 %v304, %v309
      %v312 = vmax.f32 %v305, %v310
      %v313 = vadd.f32 %v306, %v309
      %v314 = vadd.f32 %v307, %v310
      %s315 = scalar_lea.vmem %s234, 160
      %v316 = vld [vmem:[%s315] sm:$0xff]
      %v317 = vld [vmem:[%s315 + $0x8] sm:$0xff]
      %v318 = vmax.f32 %v311, %v316
      %v319 = vmax.f32 %v312, %v317
      %v320 = vadd.f32 %v313, %v316
      %v321 = vadd.f32 %v314, %v317
      %s322 = scalar_lea.vmem %s234, 176
      %v323 = vld [vmem:[%s322] sm:$0xff]
      %v324 = vld [vmem:[%s322 + $0x8] sm:$0xff]
      %v325 = vmax.f32 %v318, %v323
      %v326 = vmax.f32 %v319, %v324
      %v327 = vadd.f32 %v320, %v323
      %v328 = vadd.f32 %v321, %v324
      %s329 = scalar_lea.vmem %s234, 192
      %v330 = vld [vmem:[%s329] sm:$0xff]
      %v331 = vld [vmem:[%s329 + $0x8] sm:$0xff]
      %v332 = vmax.f32 %v325, %v330
      %v333 = vmax.f32 %v326, %v331
      %v334 = vadd.f32 %v327, %v330
      %v335 = vadd.f32 %v328, %v331
      %s336 = scalar_lea.vmem %s234, 208
      %v337 = vld [vmem:[%s336] sm:$0xff]
      %v338 = vld [vmem:[%s336 + $0x8] sm:$0xff]
      %v339 = vmax.f32 %v332, %v337
      %v340 = vmax.f32 %v333, %v338
      %v341 = vadd.f32 %v334, %v337
      %v342 = vadd.f32 %v335, %v338
      %s343 = scalar_lea.vmem %s234, 224
      %v344 = vld [vmem:[%s343] sm:$0xff]
      %v345 = vld [vmem:[%s343 + $0x8] sm:$0xff]
      %v346 = vmax.f32 %v339, %v344
      %v347 = vmax.f32 %v340, %v345
      %v348 = vadd.f32 %v341, %v344
      %v349 = vadd.f32 %v342, %v345
      %s350 = scalar_lea.vmem %s234, 240
      %v351 = vld [vmem:[%s350] sm:$0xff]
      %v352 = vld [vmem:[%s350 + $0x8] sm:$0xff]
      %v353 = vmax.f32 %v346, %v351
      %v354 = vmax.f32 %v347, %v352
      %v355 = vadd.f32 %v348, %v351
      %v356 = vadd.f32 %v349, %v352
      %v357 = vmul.f32 %v355, 0.0625
      %v358 = vmul.f32 %v356, 0.0625
      %359 = vst [vmem:[#allocation2] sm:$0xff] 0.0
      %360 = vst [vmem:[#allocation2 + $0x8] sm:$0xff] 0.0
      %361 = vst [vmem:[#allocation2 + $0x10] sm:$0xff] 0.0
      %362 = vst [vmem:[#allocation2 + $0x18] sm:$0xff] 0.0
      %363 = vst [vmem:[#allocation2 + $0x20] sm:$0xff] 0.0
      %364 = vst [vmem:[#allocation2 + $0x28] sm:$0xff] 0.0
      %365 = vst [vmem:[#allocation2 + $0x30] sm:$0xff] 0.0
      %366 = vst [vmem:[#allocation2 + $0x38] sm:$0xff] 0.0
      %367 = vst [vmem:[#allocation3] sm:$0xff] 0.0
      %368 = vst [vmem:[#allocation3 + $0x8] sm:$0xff] 0.0
      %369 = vst [vmem:[#allocation3 + $0x10] sm:$0xff] 0.0
      %370 = vst [vmem:[#allocation3 + $0x18] sm:$0xff] 0.0
      %371 = vst [vmem:[#allocation3 + $0x20] sm:$0xff] 0.0
      %372 = vst [vmem:[#allocation3 + $0x28] sm:$0xff] 0.0
      %373 = vst [vmem:[#allocation3 + $0x30] sm:$0xff] 0.0
      %374 = vst [vmem:[#allocation3 + $0x38] sm:$0xff] 0.0
      %vm375 = vcmask 31744
      %376 = vst.msk [vmem:[#allocation2 + $0x18] sm:$0xff] %vm375, %v353
      %377 = vst.msk [vmem:[#allocation2 + $0x28] sm:$0xff] %vm375, %v354
      %378 = vst.msk [vmem:[#allocation3 + $0x18] sm:$0xff] %vm375, %v357
      %379 = vst.msk [vmem:[#allocation3 + $0x28] sm:$0xff] %vm375, %v358
      %v380 = vld [vmem:[%s1] sm:$0x3]
      %v381 = vld [vmem:[%s2] sm:$0x3]
      %s383 = vtos %v381
      %v384 = vstv %s383
      %v386 = vadd.f32 %v384, 0.0
      %v387 = vrot.slane %v381, 1
      %s388 = vtos %v387
      %v389 = vstv %s388
      %v391 = vadd.f32 %v389, 0.0
      %v392 = vld [vmem:[#allocation2] sm:$0x80]
      %v393 = vld [vmem:[#allocation2 + $0x8] sm:$0x80]
      %v394 = vld [vmem:[#allocation2 + $0x10] sm:$0xff]
      %v395 = vld [vmem:[#allocation2 + $0x18] sm:$0xff]
      %v396 = vld [vmem:[#allocation2 + $0x20] sm:$0x7f]
      %v397 = vld [vmem:[#allocation2 + $0x28] sm:$0x7f]
      %s399 = vtos %v380
      %v400 = vstv %s399
      %v402 = vmul.f32 %v400, %v392
      %v403 = vmul.f32 %v400, %v393
      %v404 = vmul.f32 %v400, %v394
      %v405 = vmul.f32 %v400, %v395
      %v406 = vmul.f32 %v400, %v396
      %v407 = vmul.f32 %v400, %v397
      %v408 = vadd.f32 %v386, %v402
      %v409 = vadd.f32 %v386, %v403
      %v410 = vadd.f32 %v386, %v404
      %v411 = vadd.f32 %v386, %v405
      %v412 = vadd.f32 %v386, %v406
      %v413 = vadd.f32 %v386, %v407
      %v414 = vrot.slane %v380, 1
      %s415 = vtos %v414
      %v416 = vstv %s415
      %v418 = vmul.f32 %v416, %v392
      %v419 = vmul.f32 %v416, %v393
      %v420 = vmul.f32 %v416, %v394
      %v421 = vmul.f32 %v416, %v395
      %v422 = vmul.f32 %v416, %v396
      %v423 = vmul.f32 %v416, %v397
      %v424 = vadd.f32 %v391, %v418
      %v425 = vadd.f32 %v391, %v419
      %v426 = vadd.f32 %v391, %v420
      %v427 = vadd.f32 %v391, %v421
      %v428 = vadd.f32 %v391, %v422
      %v429 = vadd.f32 %v391, %v423
      %430 = vrot.lane.b32.xlu0 %v380, 127
      %v431 = vpop.permute.xlu0 %430
      %s432 = vtos %v431
      %v433 = vstv %s432
      %v435 = vmul.f32 %v433, %v393
      %v436 = vmul.f32 %v433, %v395
      %v437 = vmul.f32 %v433, %v397
      %441 = vrot.lane.b32.xlu0 %v435, 127
      %v442 = vpop.permute.xlu0 %441
      %443 = vrot.lane.b32.xlu0 %v436, 127
      %v444 = vpop.permute.xlu0 %443
      %445 = vrot.lane.b32.xlu0 %v437, 127
      %v446 = vpop.permute.xlu0 %445
      %v450 = vadd.f32 %v408, %v442
      %v451 = vadd.f32 %v409, %v442
      %v452 = vadd.f32 %v410, %v444
      %v453 = vadd.f32 %v411, %v444
      %v454 = vadd.f32 %v412, %v446
      %v455 = vadd.f32 %v413, %v446
      %456 = vrot.lane.b32.xlu0 %v414, 127
      %v457 = vpop.permute.xlu0 %456
      %s458 = vtos %v457
      %v459 = vstv %s458
      %v461 = vmul.f32 %v459, %v393
      %v462 = vmul.f32 %v459, %v395
      %v463 = vmul.f32 %v459, %v397
      %467 = vrot.lane.b32.xlu0 %v461, 127
      %v468 = vpop.permute.xlu0 %467
      %469 = vrot.lane.b32.xlu0 %v462, 127
      %v470 = vpop.permute.xlu0 %469
      %471 = vrot.lane.b32.xlu0 %v463, 127
      %v472 = vpop.permute.xlu0 %471
      %v476 = vadd.f32 %v424, %v468
      %v477 = vadd.f32 %v425, %v468
      %v478 = vadd.f32 %v426, %v470
      %v479 = vadd.f32 %v427, %v470
      %v480 = vadd.f32 %v428, %v472
      %v481 = vadd.f32 %v429, %v472
      %482 = vrot.lane.b32.xlu0 %v380, 126
      %v483 = vpop.permute.xlu0 %482
      %s484 = vtos %v483
      %v485 = vstv %s484
      %v487 = vmul.f32 %v485, %v393
      %v488 = vmul.f32 %v485, %v395
      %v489 = vmul.f32 %v485, %v397
      %493 = vrot.lane.b32.xlu0 %v487, 126
      %v494 = vpop.permute.xlu0 %493
      %495 = vrot.lane.b32.xlu0 %v488, 126
      %v496 = vpop.permute.xlu0 %495
      %497 = vrot.lane.b32.xlu0 %v489, 126
      %v498 = vpop.permute.xlu0 %497
      %v502 = vadd.f32 %v450, %v494
      %v503 = vadd.f32 %v451, %v494
      %v504 = vadd.f32 %v452, %v496
      %v505 = vadd.f32 %v453, %v496
      %v506 = vadd.f32 %v454, %v498
      %v507 = vadd.f32 %v455, %v498
      %508 = vrot.lane.b32.xlu0 %v414, 126
      %v509 = vpop.permute.xlu0 %508
      %s510 = vtos %v509
      %v511 = vstv %s510
      %v513 = vmul.f32 %v511, %v393
      %v514 = vmul.f32 %v511, %v395
      %v515 = vmul.f32 %v511, %v397
      %519 = vrot.lane.b32.xlu0 %v513, 126
      %v520 = vpop.permute.xlu0 %519
      %521 = vrot.lane.b32.xlu0 %v514, 126
      %v522 = vpop.permute.xlu0 %521
      %523 = vrot.lane.b32.xlu0 %v515, 126
      %v524 = vpop.permute.xlu0 %523
      %v528 = vadd.f32 %v476, %v520
      %v529 = vadd.f32 %v477, %v520
      %v530 = vadd.f32 %v478, %v522
      %v531 = vadd.f32 %v479, %v522
      %v532 = vadd.f32 %v480, %v524
      %v533 = vadd.f32 %v481, %v524
      %v534 = vld [vmem:[#allocation2 + $0x20] sm:$0xff]
      %v535 = vld [vmem:[#allocation2 + $0x28] sm:$0xff]
      %536 = vrot.lane.b32.xlu0 %v380, 125
      %v537 = vpop.permute.xlu0 %536
      %s538 = vtos %v537
      %v539 = vstv %s538
      %v541 = vmul.f32 %v539, %v394
      %v542 = vmul.f32 %v539, %v395
      %v543 = vmul.f32 %v539, %v534
      %v544 = vmul.f32 %v539, %v535
      %vm549 = vcmask 1046528
      %v550 = vrot.slane %v541, 1
      %v551 = vrot.slane %v542, 1
      %v552 = vrot.slane %v543, 1
      %v553 = vsel %vm549, %v550, %v552
      %v554 = vrot.slane %v544, 1
      %v555 = vsel %vm549, %v551, %v554
      %v562 = vadd.f32 %v502, %v550
      %v563 = vadd.f32 %v503, %v551
      %v564 = vadd.f32 %v504, %v553
      %v565 = vadd.f32 %v505, %v555
      %v566 = vadd.f32 %v506, %v552
      %v567 = vadd.f32 %v507, %v554
      %568 = vrot.lane.b32.xlu0 %v414, 125
      %v569 = vpop.permute.xlu0 %568
      %s570 = vtos %v569
      %v571 = vstv %s570
      %v573 = vmul.f32 %v571, %v394
      %v574 = vmul.f32 %v571, %v395
      %v575 = vmul.f32 %v571, %v534
      %v576 = vmul.f32 %v571, %v535
      %v581 = vrot.slane %v573, 1
      %v582 = vrot.slane %v574, 1
      %v583 = vrot.slane %v575, 1
      %v584 = vsel %vm549, %v581, %v583
      %v585 = vrot.slane %v576, 1
      %v586 = vsel %vm549, %v582, %v585
      %v593 = vadd.f32 %v528, %v581
      %v594 = vadd.f32 %v529, %v582
      %v595 = vadd.f32 %v530, %v584
      %v596 = vadd.f32 %v531, %v586
      %v597 = vadd.f32 %v532, %v583
      %v598 = vadd.f32 %v533, %v585
      %599 = vrot.lane.b32.xlu0 %v380, 124
      %v600 = vpop.permute.xlu0 %599
      %s601 = vtos %v600
      %v602 = vstv %s601
      %v604 = vmul.f32 %v602, %v395
      %v605 = vmul.f32 %v602, %v535
      %v608 = vrot.slane %v604, 1
      %v609 = vrot.slane %v605, 1
      %v610 = vsel %vm549, %v608, %v609
      %611 = vrot.lane.b32.xlu0 %v608, 127
      %v612 = vpop.permute.xlu0 %611
      %613 = vrot.lane.b32.xlu0 %v610, 127
      %v614 = vpop.permute.xlu0 %613
      %615 = vrot.lane.b32.xlu0 %v609, 127
      %v616 = vpop.permute.xlu0 %615
      %v620 = vadd.f32 %v562, %v612
      %v621 = vadd.f32 %v563, %v612
      %v622 = vadd.f32 %v564, %v614
      %v623 = vadd.f32 %v565, %v614
      %v624 = vadd.f32 %v566, %v616
      %v625 = vadd.f32 %v567, %v616
      %626 = vrot.lane.b32.xlu0 %v414, 124
      %v627 = vpop.permute.xlu0 %626
      %s628 = vtos %v627
      %v629 = vstv %s628
      %v631 = vmul.f32 %v629, %v395
      %v632 = vmul.f32 %v629, %v535
      %v635 = vrot.slane %v631, 1
      %v636 = vrot.slane %v632, 1
      %v637 = vsel %vm549, %v635, %v636
      %638 = vrot.lane.b32.xlu0 %v635, 127
      %v639 = vpop.permute.xlu0 %638
      %640 = vrot.lane.b32.xlu0 %v637, 127
      %v641 = vpop.permute.xlu0 %640
      %642 = vrot.lane.b32.xlu0 %v636, 127
      %v643 = vpop.permute.xlu0 %642
      %v647 = vadd.f32 %v593, %v639
      %v648 = vadd.f32 %v594, %v639
      %v649 = vadd.f32 %v595, %v641
      %v650 = vadd.f32 %v596, %v641
      %v651 = vadd.f32 %v597, %v643
      %v652 = vadd.f32 %v598, %v643
      %653 = vrot.lane.b32.xlu0 %v380, 123
      %v654 = vpop.permute.xlu0 %653
      %s655 = vtos %v654
      %v656 = vstv %s655
      %v658 = vmul.f32 %v656, %v395
      %v659 = vmul.f32 %v656, %v535
      %v662 = vrot.slane %v658, 1
      %v663 = vrot.slane %v659, 1
      %v664 = vsel %vm549, %v662, %v663
      %665 = vrot.lane.b32.xlu0 %v662, 126
      %v666 = vpop.permute.xlu0 %665
      %667 = vrot.lane.b32.xlu0 %v664, 126
      %v668 = vpop.permute.xlu0 %667
      %669 = vrot.lane.b32.xlu0 %v663, 126
      %v670 = vpop.permute.xlu0 %669
      %v674 = vadd.f32 %v620, %v666
      %v675 = vadd.f32 %v621, %v666
      %v676 = vadd.f32 %v622, %v668
      %v677 = vadd.f32 %v623, %v668
      %v678 = vadd.f32 %v624, %v670
      %v679 = vadd.f32 %v625, %v670
      %680 = vrot.lane.b32.xlu0 %v414, 123
      %v681 = vpop.permute.xlu0 %680
      %s682 = vtos %v681
      %v683 = vstv %s682
      %v685 = vmul.f32 %v683, %v395
      %v686 = vmul.f32 %v683, %v535
      %v689 = vrot.slane %v685, 1
      %v690 = vrot.slane %v686, 1
      %v691 = vsel %vm549, %v689, %v690
      %692 = vrot.lane.b32.xlu0 %v689, 126
      %v693 = vpop.permute.xlu0 %692
      %694 = vrot.lane.b32.xlu0 %v691, 126
      %v695 = vpop.permute.xlu0 %694
      %696 = vrot.lane.b32.xlu0 %v690, 126
      %v697 = vpop.permute.xlu0 %696
      %v701 = vadd.f32 %v647, %v693
      %v702 = vadd.f32 %v648, %v693
      %v703 = vadd.f32 %v649, %v695
      %v704 = vadd.f32 %v650, %v695
      %v705 = vadd.f32 %v651, %v697
      %v706 = vadd.f32 %v652, %v697
      %v707 = vld [vmem:[#allocation2 + $0x10] sm:$0xfe]
      %v708 = vld [vmem:[#allocation2 + $0x18] sm:$0xfe]
      %v709 = vld [vmem:[#allocation2 + $0x20] sm:$0xff]
      %v710 = vld [vmem:[#allocation2 + $0x28] sm:$0xff]
      %v711 = vld [vmem:[#allocation2 + $0x30] sm:$0x1]
      %v712 = vld [vmem:[#allocation2 + $0x38] sm:$0x1]
      %713 = vrot.lane.b32.xlu0 %v380, 122
      %v714 = vpop.permute.xlu0 %713
      %s715 = vtos %v714
      %v716 = vstv %s715
      %v718 = vmul.f32 %v716, %v707
      %v719 = vmul.f32 %v716, %v708
      %v720 = vmul.f32 %v716, %v709
      %v721 = vmul.f32 %v716, %v710
      %v722 = vmul.f32 %v716, %v711
      %v723 = vmul.f32 %v716, %v712
      %vm730 = vcmask 1045504
      %v731 = vrot.slane %v718, 2
      %v732 = vrot.slane %v719, 2
      %v733 = vrot.slane %v720, 2
      %v734 = vsel %vm730, %v731, %v733
      %v735 = vrot.slane %v721, 2
      %v736 = vsel %vm730, %v732, %v735
      %v737 = vrot.slane %v722, 2
      %v738 = vsel %vm730, %v733, %v737
      %v739 = vrot.slane %v723, 2
      %v740 = vsel %vm730, %v735, %v739
      %v747 = vadd.f32 %v674, %v731
      %v748 = vadd.f32 %v675, %v732
      %v749 = vadd.f32 %v676, %v734
      %v750 = vadd.f32 %v677, %v736
      %v751 = vadd.f32 %v678, %v738
      %v752 = vadd.f32 %v679, %v740
      %753 = vrot.lane.b32.xlu0 %v414, 122
      %v754 = vpop.permute.xlu0 %753
      %s755 = vtos %v754
      %v756 = vstv %s755
      %v758 = vmul.f32 %v756, %v707
      %v759 = vmul.f32 %v756, %v708
      %v760 = vmul.f32 %v756, %v709
      %v761 = vmul.f32 %v756, %v710
      %v762 = vmul.f32 %v756, %v711
      %v763 = vmul.f32 %v756, %v712
      %v770 = vrot.slane %v758, 2
      %v771 = vrot.slane %v759, 2
      %v772 = vrot.slane %v760, 2
      %v773 = vsel %vm730, %v770, %v772
      %v774 = vrot.slane %v761, 2
      %v775 = vsel %vm730, %v771, %v774
      %v776 = vrot.slane %v762, 2
      %v777 = vsel %vm730, %v772, %v776
      %v778 = vrot.slane %v763, 2
      %v779 = vsel %vm730, %v774, %v778
      %v786 = vadd.f32 %v701, %v770
      %v787 = vadd.f32 %v702, %v771
      %v788 = vadd.f32 %v703, %v773
      %v789 = vadd.f32 %v704, %v775
      %v790 = vadd.f32 %v705, %v777
      %v791 = vadd.f32 %v706, %v779
      %792 = vrot.lane.b32.xlu0 %v380, 121
      %v793 = vpop.permute.xlu0 %792
      %s794 = vtos %v793
      %v795 = vstv %s794
      %v797 = vmul.f32 %v795, %v708
      %v798 = vmul.f32 %v795, %v710
      %v799 = vmul.f32 %v795, %v712
      %v803 = vrot.slane %v797, 2
      %v804 = vrot.slane %v798, 2
      %v805 = vsel %vm730, %v803, %v804
      %v806 = vrot.slane %v799, 2
      %v807 = vsel %vm730, %v804, %v806
      %808 = vrot.lane.b32.xlu0 %v803, 127
      %v809 = vpop.permute.xlu0 %808
      %810 = vrot.lane.b32.xlu0 %v805, 127
      %v811 = vpop.permute.xlu0 %810
      %812 = vrot.lane.b32.xlu0 %v807, 127
      %v813 = vpop.permute.xlu0 %812
      %v817 = vadd.f32 %v747, %v809
      %v818 = vadd.f32 %v748, %v809
      %v819 = vadd.f32 %v749, %v811
      %v820 = vadd.f32 %v750, %v811
      %v821 = vadd.f32 %v751, %v813
      %v822 = vadd.f32 %v752, %v813
      %823 = vrot.lane.b32.xlu0 %v414, 121
      %v824 = vpop.permute.xlu0 %823
      %s825 = vtos %v824
      %v826 = vstv %s825
      %v828 = vmul.f32 %v826, %v708
      %v829 = vmul.f32 %v826, %v710
      %v830 = vmul.f32 %v826, %v712
      %v834 = vrot.slane %v828, 2
      %v835 = vrot.slane %v829, 2
      %v836 = vsel %vm730, %v834, %v835
      %v837 = vrot.slane %v830, 2
      %v838 = vsel %vm730, %v835, %v837
      %839 = vrot.lane.b32.xlu0 %v834, 127
      %v840 = vpop.permute.xlu0 %839
      %841 = vrot.lane.b32.xlu0 %v836, 127
      %v842 = vpop.permute.xlu0 %841
      %843 = vrot.lane.b32.xlu0 %v838, 127
      %v844 = vpop.permute.xlu0 %843
      %v848 = vadd.f32 %v786, %v840
      %v849 = vadd.f32 %v787, %v840
      %v850 = vadd.f32 %v788, %v842
      %v851 = vadd.f32 %v789, %v842
      %v852 = vadd.f32 %v790, %v844
      %v853 = vadd.f32 %v791, %v844
      %854 = vrot.lane.b32.xlu0 %v380, 120
      %v855 = vpop.permute.xlu0 %854
      %s856 = vtos %v855
      %v857 = vstv %s856
      %v859 = vmul.f32 %v857, %v708
      %v860 = vmul.f32 %v857, %v710
      %v861 = vmul.f32 %v857, %v712
      %v865 = vrot.slane %v859, 2
      %v866 = vrot.slane %v860, 2
      %v867 = vsel %vm730, %v865, %v866
      %v868 = vrot.slane %v861, 2
      %v869 = vsel %vm730, %v866, %v868
      %870 = vrot.lane.b32.xlu0 %v865, 126
      %v871 = vpop.permute.xlu0 %870
      %872 = vrot.lane.b32.xlu0 %v867, 126
      %v873 = vpop.permute.xlu0 %872
      %874 = vrot.lane.b32.xlu0 %v869, 126
      %v875 = vpop.permute.xlu0 %874
      %v879 = vadd.f32 %v817, %v871
      %v880 = vadd.f32 %v818, %v871
      %v881 = vadd.f32 %v819, %v873
      %v882 = vadd.f32 %v820, %v873
      %v883 = vadd.f32 %v821, %v875
      %v884 = vadd.f32 %v822, %v875
      %885 = vrot.lane.b32.xlu0 %v414, 120
      %v886 = vpop.permute.xlu0 %885
      %s887 = vtos %v886
      %v888 = vstv %s887
      %v890 = vmul.f32 %v888, %v708
      %v891 = vmul.f32 %v888, %v710
      %v892 = vmul.f32 %v888, %v712
      %v896 = vrot.slane %v890, 2
      %v897 = vrot.slane %v891, 2
      %v898 = vsel %vm730, %v896, %v897
      %v899 = vrot.slane %v892, 2
      %v900 = vsel %vm730, %v897, %v899
      %901 = vrot.lane.b32.xlu0 %v896, 126
      %v902 = vpop.permute.xlu0 %901
      %903 = vrot.lane.b32.xlu0 %v898, 126
      %v904 = vpop.permute.xlu0 %903
      %905 = vrot.lane.b32.xlu0 %v900, 126
      %v906 = vpop.permute.xlu0 %905
      %v910 = vadd.f32 %v848, %v902
      %v911 = vadd.f32 %v849, %v902
      %v912 = vadd.f32 %v850, %v904
      %v913 = vadd.f32 %v851, %v904
      %v914 = vadd.f32 %v852, %v906
      %v915 = vadd.f32 %v853, %v906
      %v916 = vld [vmem:[#allocation3] sm:$0x80]
      %v917 = vld [vmem:[#allocation3 + $0x8] sm:$0x80]
      %v918 = vld [vmem:[#allocation3 + $0x10] sm:$0xff]
      %v919 = vld [vmem:[#allocation3 + $0x18] sm:$0xff]
      %v920 = vld [vmem:[#allocation3 + $0x20] sm:$0x7f]
      %v921 = vld [vmem:[#allocation3 + $0x28] sm:$0x7f]
      %922 = vrot.lane.b32.xlu0 %v380, 119
      %v923 = vpop.permute.xlu0 %922
      %s924 = vtos %v923
      %v925 = vstv %s924
      %v927 = vmul.f32 %v925, %v916
      %v928 = vmul.f32 %v925, %v917
      %v929 = vmul.f32 %v925, %v918
      %v930 = vmul.f32 %v925, %v919
      %v931 = vmul.f32 %v925, %v920
      %v932 = vmul.f32 %v925, %v921
      %v933 = vadd.f32 %v879, %v927
      %v934 = vadd.f32 %v880, %v928
      %v935 = vadd.f32 %v881, %v929
      %v936 = vadd.f32 %v882, %v930
      %v937 = vadd.f32 %v883, %v931
      %v938 = vadd.f32 %v884, %v932
      %939 = vrot.lane.b32.xlu0 %v414, 119
      %v940 = vpop.permute.xlu0 %939
      %s941 = vtos %v940
      %v942 = vstv %s941
      %v944 = vmul.f32 %v942, %v916
      %v945 = vmul.f32 %v942, %v917
      %v946 = vmul.f32 %v942, %v918
      %v947 = vmul.f32 %v942, %v919
      %v948 = vmul.f32 %v942, %v920
      %v949 = vmul.f32 %v942, %v921
      %v950 = vadd.f32 %v910, %v944
      %v951 = vadd.f32 %v911, %v945
      %v952 = vadd.f32 %v912, %v946
      %v953 = vadd.f32 %v913, %v947
      %v954 = vadd.f32 %v914, %v948
      %v955 = vadd.f32 %v915, %v949
      %956 = vrot.lane.b32.xlu0 %v380, 118
      %v957 = vpop.permute.xlu0 %956
      %s958 = vtos %v957
      %v959 = vstv %s958
      %v961 = vmul.f32 %v959, %v917
      %v962 = vmul.f32 %v959, %v919
      %v963 = vmul.f32 %v959, %v921
      %967 = vrot.lane.b32.xlu0 %v961, 127
      %v968 = vpop.permute.xlu0 %967
      %969 = vrot.lane.b32.xlu0 %v962, 127
      %v970 = vpop.permute.xlu0 %969
      %971 = vrot.lane.b32.xlu0 %v963, 127
      %v972 = vpop.permute.xlu0 %971
      %v976 = vadd.f32 %v933, %v968
      %v977 = vadd.f32 %v934, %v968
      %v978 = vadd.f32 %v935, %v970
      %v979 = vadd.f32 %v936, %v970
      %v980 = vadd.f32 %v937, %v972
      %v981 = vadd.f32 %v938, %v972
      %982 = vrot.lane.b32.xlu0 %v414, 118
      %v983 = vpop.permute.xlu0 %982
      %s984 = vtos %v983
      %v985 = vstv %s984
      %v987 = vmul.f32 %v985, %v917
      %v988 = vmul.f32 %v985, %v919
      %v989 = vmul.f32 %v985, %v921
      %993 = vrot.lane.b32.xlu0 %v987, 127
      %v994 = vpop.permute.xlu0 %993
      %995 = vrot.lane.b32.xlu0 %v988, 127
      %v996 = vpop.permute.xlu0 %995
      %997 = vrot.lane.b32.xlu0 %v989, 127
      %v998 = vpop.permute.xlu0 %997
      %v1002 = vadd.f32 %v950, %v994
      %v1003 = vadd.f32 %v951, %v994
      %v1004 = vadd.f32 %v952, %v996
      %v1005 = vadd.f32 %v953, %v996
      %v1006 = vadd.f32 %v954, %v998
      %v1007 = vadd.f32 %v955, %v998
      %1008 = vrot.lane.b32.xlu0 %v380, 117
      %v1009 = vpop.permute.xlu0 %1008
      %s1010 = vtos %v1009
      %v1011 = vstv %s1010
      %v1013 = vmul.f32 %v1011, %v917
      %v1014 = vmul.f32 %v1011, %v919
      %v1015 = vmul.f32 %v1011, %v921
      %1019 = vrot.lane.b32.xlu0 %v1013, 126
      %v1020 = vpop.permute.xlu0 %1019
      %1021 = vrot.lane.b32.xlu0 %v1014, 126
      %v1022 = vpop.permute.xlu0 %1021
      %1023 = vrot.lane.b32.xlu0 %v1015, 126
      %v1024 = vpop.permute.xlu0 %1023
      %v1028 = vadd.f32 %v976, %v1020
      %v1029 = vadd.f32 %v977, %v1020
      %v1030 = vadd.f32 %v978, %v1022
      %v1031 = vadd.f32 %v979, %v1022
      %v1032 = vadd.f32 %v980, %v1024
      %v1033 = vadd.f32 %v981, %v1024
      %1034 = vrot.lane.b32.xlu0 %v414, 117
      %v1035 = vpop.permute.xlu0 %1034
      %s1036 = vtos %v1035
      %v1037 = vstv %s1036
      %v1039 = vmul.f32 %v1037, %v917
      %v1040 = vmul.f32 %v1037, %v919
      %v1041 = vmul.f32 %v1037, %v921
      %1045 = vrot.lane.b32.xlu0 %v1039, 126
      %v1046 = vpop.permute.xlu0 %1045
      %1047 = vrot.lane.b32.xlu0 %v1040, 126
      %v1048 = vpop.permute.xlu0 %1047
      %1049 = vrot.lane.b32.xlu0 %v1041, 126
      %v1050 = vpop.permute.xlu0 %1049
      %v1054 = vadd.f32 %v1002, %v1046
      %v1055 = vadd.f32 %v1003, %v1046
      %v1056 = vadd.f32 %v1004, %v1048
      %v1057 = vadd.f32 %v1005, %v1048
      %v1058 = vadd.f32 %v1006, %v1050
      %v1059 = vadd.f32 %v1007, %v1050
      %v1060 = vld [vmem:[#allocation3 + $0x20] sm:$0xff]
      %v1061 = vld [vmem:[#allocation3 + $0x28] sm:$0xff]
      %1062 = vrot.lane.b32.xlu0 %v380, 116
      %v1063 = vpop.permute.xlu0 %1062
      %s1064 = vtos %v1063
      %v1065 = vstv %s1064
      %v1067 = vmul.f32 %v1065, %v918
      %v1068 = vmul.f32 %v1065, %v919
      %v1069 = vmul.f32 %v1065, %v1060
      %v1070 = vmul.f32 %v1065, %v1061
      %v1075 = vrot.slane %v1067, 1
      %v1076 = vrot.slane %v1068, 1
      %v1077 = vrot.slane %v1069, 1
      %v1078 = vsel %vm549, %v1075, %v1077
      %v1079 = vrot.slane %v1070, 1
      %v1080 = vsel %vm549, %v1076, %v1079
      %v1087 = vadd.f32 %v1028, %v1075
      %v1088 = vadd.f32 %v1029, %v1076
      %v1089 = vadd.f32 %v1030, %v1078
      %v1090 = vadd.f32 %v1031, %v1080
      %v1091 = vadd.f32 %v1032, %v1077
      %v1092 = vadd.f32 %v1033, %v1079
      %1093 = vrot.lane.b32.xlu0 %v414, 116
      %v1094 = vpop.permute.xlu0 %1093
      %s1095 = vtos %v1094
      %v1096 = vstv %s1095
      %v1098 = vmul.f32 %v1096, %v918
      %v1099 = vmul.f32 %v1096, %v919
      %v1100 = vmul.f32 %v1096, %v1060
      %v1101 = vmul.f32 %v1096, %v1061
      %v1106 = vrot.slane %v1098, 1
      %v1107 = vrot.slane %v1099, 1
      %v1108 = vrot.slane %v1100, 1
      %v1109 = vsel %vm549, %v1106, %v1108
      %v1110 = vrot.slane %v1101, 1
      %v1111 = vsel %vm549, %v1107, %v1110
      %v1118 = vadd.f32 %v1054, %v1106
      %v1119 = vadd.f32 %v1055, %v1107
      %v1120 = vadd.f32 %v1056, %v1109
      %v1121 = vadd.f32 %v1057, %v1111
      %v1122 = vadd.f32 %v1058, %v1108
      %v1123 = vadd.f32 %v1059, %v1110
      %1124 = vrot.lane.b32.xlu0 %v380, 115
      %v1125 = vpop.permute.xlu0 %1124
      %s1126 = vtos %v1125
      %v1127 = vstv %s1126
      %v1129 = vmul.f32 %v1127, %v919
      %v1130 = vmul.f32 %v1127, %v1061
      %v1133 = vrot.slane %v1129, 1
      %v1134 = vrot.slane %v1130, 1
      %v1135 = vsel %vm549, %v1133, %v1134
      %1136 = vrot.lane.b32.xlu0 %v1133, 127
      %v1137 = vpop.permute.xlu0 %1136
      %1138 = vrot.lane.b32.xlu0 %v1135, 127
      %v1139 = vpop.permute.xlu0 %1138
      %1140 = vrot.lane.b32.xlu0 %v1134, 127
      %v1141 = vpop.permute.xlu0 %1140
      %v1145 = vadd.f32 %v1087, %v1137
      %v1146 = vadd.f32 %v1088, %v1137
      %v1147 = vadd.f32 %v1089, %v1139
      %v1148 = vadd.f32 %v1090, %v1139
      %v1149 = vadd.f32 %v1091, %v1141
      %v1150 = vadd.f32 %v1092, %v1141
      %1151 = vrot.lane.b32.xlu0 %v414, 115
      %v1152 = vpop.permute.xlu0 %1151
      %s1153 = vtos %v1152
      %v1154 = vstv %s1153
      %v1156 = vmul.f32 %v1154, %v919
      %v1157 = vmul.f32 %v1154, %v1061
      %v1160 = vrot.slane %v1156, 1
      %v1161 = vrot.slane %v1157, 1
      %v1162 = vsel %vm549, %v1160, %v1161
      %1163 = vrot.lane.b32.xlu0 %v1160, 127
      %v1164 = vpop.permute.xlu0 %1163
      %1165 = vrot.lane.b32.xlu0 %v1162, 127
      %v1166 = vpop.permute.xlu0 %1165
      %1167 = vrot.lane.b32.xlu0 %v1161, 127
      %v1168 = vpop.permute.xlu0 %1167
      %v1172 = vadd.f32 %v1118, %v1164
      %v1173 = vadd.f32 %v1119, %v1164
      %v1174 = vadd.f32 %v1120, %v1166
      %v1175 = vadd.f32 %v1121, %v1166
      %v1176 = vadd.f32 %v1122, %v1168
      %v1177 = vadd.f32 %v1123, %v1168
      %1178 = vrot.lane.b32.xlu0 %v380, 114
      %v1179 = vpop.permute.xlu0 %1178
      %s1180 = vtos %v1179
      %v1181 = vstv %s1180
      %v1183 = vmul.f32 %v1181, %v919
      %v1184 = vmul.f32 %v1181, %v1061
      %v1187 = vrot.slane %v1183, 1
      %v1188 = vrot.slane %v1184, 1
      %v1189 = vsel %vm549, %v1187, %v1188
      %1190 = vrot.lane.b32.xlu0 %v1187, 126
      %v1191 = vpop.permute.xlu0 %1190
      %1192 = vrot.lane.b32.xlu0 %v1189, 126
      %v1193 = vpop.permute.xlu0 %1192
      %1194 = vrot.lane.b32.xlu0 %v1188, 126
      %v1195 = vpop.permute.xlu0 %1194
      %v1199 = vadd.f32 %v1145, %v1191
      %v1200 = vadd.f32 %v1146, %v1191
      %v1201 = vadd.f32 %v1147, %v1193
      %v1202 = vadd.f32 %v1148, %v1193
      %v1203 = vadd.f32 %v1149, %v1195
      %v1204 = vadd.f32 %v1150, %v1195
      %1205 = vrot.lane.b32.xlu0 %v414, 114
      %v1206 = vpop.permute.xlu0 %1205
      %s1207 = vtos %v1206
      %v1208 = vstv %s1207
      %v1210 = vmul.f32 %v1208, %v919
      %v1211 = vmul.f32 %v1208, %v1061
      %v1214 = vrot.slane %v1210, 1
      %v1215 = vrot.slane %v1211, 1
      %v1216 = vsel %vm549, %v1214, %v1215
      %1217 = vrot.lane.b32.xlu0 %v1214, 126
      %v1218 = vpop.permute.xlu0 %1217
      %1219 = vrot.lane.b32.xlu0 %v1216, 126
      %v1220 = vpop.permute.xlu0 %1219
      %1221 = vrot.lane.b32.xlu0 %v1215, 126
      %v1222 = vpop.permute.xlu0 %1221
      %v1226 = vadd.f32 %v1172, %v1218
      %v1227 = vadd.f32 %v1173, %v1218
      %v1228 = vadd.f32 %v1174, %v1220
      %v1229 = vadd.f32 %v1175, %v1220
      %v1230 = vadd.f32 %v1176, %v1222
      %v1231 = vadd.f32 %v1177, %v1222
      %v1232 = vld [vmem:[#allocation3 + $0x10] sm:$0xfe]
      %v1233 = vld [vmem:[#allocation3 + $0x18] sm:$0xfe]
      %v1234 = vld [vmem:[#allocation3 + $0x20] sm:$0xff]
      %v1235 = vld [vmem:[#allocation3 + $0x28] sm:$0xff]
      %v1236 = vld [vmem:[#allocation3 + $0x30] sm:$0x1]
      %v1237 = vld [vmem:[#allocation3 + $0x38] sm:$0x1]
      %1238 = vrot.lane.b32.xlu0 %v380, 113
      %v1239 = vpop.permute.xlu0 %1238
      %s1240 = vtos %v1239
      %v1241 = vstv %s1240
      %v1243 = vmul.f32 %v1241, %v1232
      %v1244 = vmul.f32 %v1241, %v1233
      %v1245 = vmul.f32 %v1241, %v1234
      %v1246 = vmul.f32 %v1241, %v1235
      %v1247 = vmul.f32 %v1241, %v1236
      %v1248 = vmul.f32 %v1241, %v1237
      %v1255 = vrot.slane %v1243, 2
      %v1256 = vrot.slane %v1244, 2
      %v1257 = vrot.slane %v1245, 2
      %v1258 = vsel %vm730, %v1255, %v1257
      %v1259 = vrot.slane %v1246, 2
      %v1260 = vsel %vm730, %v1256, %v1259
      %v1261 = vrot.slane %v1247, 2
      %v1262 = vsel %vm730, %v1257, %v1261
      %v1263 = vrot.slane %v1248, 2
      %v1264 = vsel %vm730, %v1259, %v1263
      %v1271 = vadd.f32 %v1199, %v1255
      %v1272 = vadd.f32 %v1200, %v1256
      %v1273 = vadd.f32 %v1201, %v1258
      %v1274 = vadd.f32 %v1202, %v1260
      %v1275 = vadd.f32 %v1203, %v1262
      %v1276 = vadd.f32 %v1204, %v1264
      %1277 = vrot.lane.b32.xlu0 %v414, 113
      %v1278 = vpop.permute.xlu0 %1277
      %s1279 = vtos %v1278
      %v1280 = vstv %s1279
      %v1282 = vmul.f32 %v1280, %v1232
      %v1283 = vmul.f32 %v1280, %v1233
      %v1284 = vmul.f32 %v1280, %v1234
      %v1285 = vmul.f32 %v1280, %v1235
      %v1286 = vmul.f32 %v1280, %v1236
      %v1287 = vmul.f32 %v1280, %v1237
      %v1294 = vrot.slane %v1282, 2
      %v1295 = vrot.slane %v1283, 2
      %v1296 = vrot.slane %v1284, 2
      %v1297 = vsel %vm730, %v1294, %v1296
      %v1298 = vrot.slane %v1285, 2
      %v1299 = vsel %vm730, %v1295, %v1298
      %v1300 = vrot.slane %v1286, 2
      %v1301 = vsel %vm730, %v1296, %v1300
      %v1302 = vrot.slane %v1287, 2
      %v1303 = vsel %vm730, %v1298, %v1302
      %v1310 = vadd.f32 %v1226, %v1294
      %v1311 = vadd.f32 %v1227, %v1295
      %v1312 = vadd.f32 %v1228, %v1297
      %v1313 = vadd.f32 %v1229, %v1299
      %v1314 = vadd.f32 %v1230, %v1301
      %v1315 = vadd.f32 %v1231, %v1303
      %1316 = vrot.lane.b32.xlu0 %v380, 112
      %v1317 = vpop.permute.xlu0 %1316
      %s1318 = vtos %v1317
      %v1319 = vstv %s1318
      %v1321 = vmul.f32 %v1319, %v1233
      %v1322 = vmul.f32 %v1319, %v1235
      %v1323 = vmul.f32 %v1319, %v1237
      %v1327 = vrot.slane %v1321, 2
      %v1328 = vrot.slane %v1322, 2
      %v1329 = vsel %vm730, %v1327, %v1328
      %v1330 = vrot.slane %v1323, 2
      %v1331 = vsel %vm730, %v1328, %v1330
      %1332 = vrot.lane.b32.xlu0 %v1327, 127
      %v1333 = vpop.permute.xlu0 %1332
      %1334 = vrot.lane.b32.xlu0 %v1329, 127
      %v1335 = vpop.permute.xlu0 %1334
      %1336 = vrot.lane.b32.xlu0 %v1331, 127
      %v1337 = vpop.permute.xlu0 %1336
      %v1341 = vadd.f32 %v1271, %v1333
      %v1342 = vadd.f32 %v1272, %v1333
      %v1343 = vadd.f32 %v1273, %v1335
      %v1344 = vadd.f32 %v1274, %v1335
      %v1345 = vadd.f32 %v1275, %v1337
      %v1346 = vadd.f32 %v1276, %v1337
      %1347 = vrot.lane.b32.xlu0 %v414, 112
      %v1348 = vpop.permute.xlu0 %1347
      %s1349 = vtos %v1348
      %v1350 = vstv %s1349
      %v1352 = vmul.f32 %v1350, %v1233
      %v1353 = vmul.f32 %v1350, %v1235
      %v1354 = vmul.f32 %v1350, %v1237
      %v1358 = vrot.slane %v1352, 2
      %v1359 = vrot.slane %v1353, 2
      %v1360 = vsel %vm730, %v1358, %v1359
      %v1361 = vrot.slane %v1354, 2
      %v1362 = vsel %vm730, %v1359, %v1361
      %1363 = vrot.lane.b32.xlu0 %v1358, 127
      %v1364 = vpop.permute.xlu0 %1363
      %1365 = vrot.lane.b32.xlu0 %v1360, 127
      %v1366 = vpop.permute.xlu0 %1365
      %1367 = vrot.lane.b32.xlu0 %v1362, 127
      %v1368 = vpop.permute.xlu0 %1367
      %v1372 = vadd.f32 %v1310, %v1364
      %v1373 = vadd.f32 %v1311, %v1364
      %v1374 = vadd.f32 %v1312, %v1366
      %v1375 = vadd.f32 %v1313, %v1366
      %v1376 = vadd.f32 %v1314, %v1368
      %v1377 = vadd.f32 %v1315, %v1368
      %1378 = vrot.lane.b32.xlu0 %v380, 111
      %v1379 = vpop.permute.xlu0 %1378
      %s1380 = vtos %v1379
      %v1381 = vstv %s1380
      %v1383 = vmul.f32 %v1381, %v1233
      %v1384 = vmul.f32 %v1381, %v1235
      %v1385 = vmul.f32 %v1381, %v1237
      %v1389 = vrot.slane %v1383, 2
      %v1390 = vrot.slane %v1384, 2
      %v1391 = vsel %vm730, %v1389, %v1390
      %v1392 = vrot.slane %v1385, 2
      %v1393 = vsel %vm730, %v1390, %v1392
      %1394 = vrot.lane.b32.xlu0 %v1389, 126
      %v1395 = vpop.permute.xlu0 %1394
      %1396 = vrot.lane.b32.xlu0 %v1391, 126
      %v1397 = vpop.permute.xlu0 %1396
      %1398 = vrot.lane.b32.xlu0 %v1393, 126
      %v1399 = vpop.permute.xlu0 %1398
      %v1403 = vadd.f32 %v1341, %v1395
      %v1404 = vadd.f32 %v1342, %v1395
      %v1405 = vadd.f32 %v1343, %v1397
      %v1406 = vadd.f32 %v1344, %v1397
      %v1407 = vadd.f32 %v1345, %v1399
      %v1408 = vadd.f32 %v1346, %v1399
      %1409 = vrot.lane.b32.xlu0 %v414, 111
      %v1410 = vpop.permute.xlu0 %1409
      %s1411 = vtos %v1410
      %v1412 = vstv %s1411
      %v1414 = vmul.f32 %v1412, %v1233
      %v1415 = vmul.f32 %v1412, %v1235
      %v1416 = vmul.f32 %v1412, %v1237
      %v1420 = vrot.slane %v1414, 2
      %v1421 = vrot.slane %v1415, 2
      %v1422 = vsel %vm730, %v1420, %v1421
      %v1423 = vrot.slane %v1416, 2
      %v1424 = vsel %vm730, %v1421, %v1423
      %1425 = vrot.lane.b32.xlu0 %v1420, 126
      %v1426 = vpop.permute.xlu0 %1425
      %1427 = vrot.lane.b32.xlu0 %v1422, 126
      %v1428 = vpop.permute.xlu0 %1427
      %1429 = vrot.lane.b32.xlu0 %v1424, 126
      %v1430 = vpop.permute.xlu0 %1429
      %v1434 = vadd.f32 %v1372, %v1426
      %v1435 = vadd.f32 %v1373, %v1426
      %v1436 = vadd.f32 %v1374, %v1428
      %v1437 = vadd.f32 %v1375, %v1428
      %v1438 = vadd.f32 %v1376, %v1430
      %v1439 = vadd.f32 %v1377, %v1430
      %1446 = vrot.lane.b32.xlu0 %v1403, 1
      %v1447 = vpop.permute.xlu0 %1446
      %1448 = vrot.lane.b32.xlu0 %v1404, 1
      %v1449 = vpop.permute.xlu0 %1448
      %1450 = vrot.lane.b32.xlu0 %v1405, 1
      %v1451 = vpop.permute.xlu0 %1450
      %1452 = vrot.lane.b32.xlu0 %v1406, 1
      %v1453 = vpop.permute.xlu0 %1452
      %1454 = vrot.lane.b32.xlu0 %v1407, 1
      %v1455 = vpop.permute.xlu0 %1454
      %1456 = vrot.lane.b32.xlu0 %v1408, 1
      %v1457 = vpop.permute.xlu0 %1456
      %vm1458 = vcmask 7168
      %v1459 = vsel %vm1458, %v1447, %v1449
      %v1460 = vsel %vm1458, %v1451, %v1453
      %v1461 = vsel %vm1458, %v1455, %v1457
      %vm1465 = vcmask 31751
      %1466 = vst.msk [vmem:[%s239 - $0x7] sm:$0x80] %vm1465, %v1459
      %1467 = vst.msk [vmem:[%s239 + $0x1] sm:$0xff] %vm375, %v1460
      %vm1468 = vcmask 30720
      %1469 = vst.msk [vmem:[%s239 + $0x9] sm:$0x7f] %vm1468, %v1461
      %1476 = vrot.lane.b32.xlu0 %v1434, 1
      %v1477 = vpop.permute.xlu0 %1476
      %1478 = vrot.lane.b32.xlu0 %v1435, 1
      %v1479 = vpop.permute.xlu0 %1478
      %1480 = vrot.lane.b32.xlu0 %v1436, 1
      %v1481 = vpop.permute.xlu0 %1480
      %1482 = vrot.lane.b32.xlu0 %v1437, 1
      %v1483 = vpop.permute.xlu0 %1482
      %1484 = vrot.lane.b32.xlu0 %v1438, 1
      %v1485 = vpop.permute.xlu0 %1484
      %1486 = vrot.lane.b32.xlu0 %v1439, 1
      %v1487 = vpop.permute.xlu0 %1486
      %v1488 = vsel %vm1458, %v1477, %v1479
      %v1489 = vsel %vm1458, %v1481, %v1483
      %v1490 = vsel %vm1458, %v1485, %v1487
      %s1494 = scalar_lea.vmem %s239, 16
      %1495 = vst.msk [vmem:[%s1494 - $0x7] sm:$0x80] %vm1465, %v1488
      %1496 = vst.msk [vmem:[%s1494 + $0x1] sm:$0xff] %vm375, %v1489
      %1497 = vst.msk [vmem:[%s1494 + $0x9] sm:$0x7f] %vm1468, %v1490
      %v1498 = vsel %vm1465, %v1459, 0.0
      %1499 = vadd.xlane.f32.xlu0 %v1498
      %v1500 = vpop.xlane.xlu0 %1499
      %v1501 = vsel %vm375, %v1460, 0.0
      %1502 = vadd.xlane.f32.xlu0 %v1501
      %v1503 = vpop.xlane.xlu0 %1502
      %v1504 = vsel %vm1468, %v1461, 0.0
      %1505 = vadd.xlane.f32.xlu0 %v1504
      %v1506 = vpop.xlane.xlu0 %1505
      %vm1507 = vcmask 7175
      %1508 = vst.msk [vmem:[%s244 - $0x7] sm:$0x80] %vm1507, %v1500
      %1509 = vst.msk [vmem:[%s244 + $0x1] sm:$0xff] %vm1458, %v1503
      %vm1510 = vcmask 6144
      %1511 = vst.msk [vmem:[%s244 + $0x9] sm:$0x7f] %vm1510, %v1506
      %v1512 = vsel %vm1465, %v1488, 0.0
      %1513 = vadd.xlane.f32.xlu0 %v1512
      %v1514 = vpop.xlane.xlu0 %1513
      %v1515 = vsel %vm375, %v1489, 0.0
      %1516 = vadd.xlane.f32.xlu0 %v1515
      %v1517 = vpop.xlane.xlu0 %1516
      %v1518 = vsel %vm1468, %v1490, 0.0
      %1519 = vadd.xlane.f32.xlu0 %v1518
      %v1520 = vpop.xlane.xlu0 %1519
      %s1521 = scalar_lea.vmem %s244, 16
      %1522 = vst.msk [vmem:[%s1521 - $0x7] sm:$0x80] %vm1507, %v1514
      %1523 = vst.msk [vmem:[%s1521 + $0x1] sm:$0xff] %vm1458, %v1517
      %1524 = vst.msk [vmem:[%s1521 + $0x9] sm:$0x7f] %vm1510, %v1520
      %v1525 = vmul.f32 %v1403, %v1403
      %v1526 = vmul.f32 %v1404, %v1404
      %v1527 = vmul.f32 %v1405, %v1405
      %v1528 = vmul.f32 %v1406, %v1406
      %v1529 = vmul.f32 %v1407, %v1407
      %v1530 = vmul.f32 %v1408, %v1408
      %1537 = vrot.lane.b32.xlu0 %v1525, 1
      %v1538 = vpop.permute.xlu0 %1537
      %1539 = vrot.lane.b32.xlu0 %v1526, 1
      %v1540 = vpop.permute.xlu0 %1539
      %1541 = vrot.lane.b32.xlu0 %v1527, 1
      %v1542 = vpop.permute.xlu0 %1541
      %1543 = vrot.lane.b32.xlu0 %v1528, 1
      %v1544 = vpop.permute.xlu0 %1543
      %1545 = vrot.lane.b32.xlu0 %v1529, 1
      %v1546 = vpop.permute.xlu0 %1545
      %1547 = vrot.lane.b32.xlu0 %v1530, 1
      %v1548 = vpop.permute.xlu0 %1547
      %v1549 = vsel %vm1458, %v1538, %v1540
      %v1550 = vsel %vm1458, %v1542, %v1544
      %v1551 = vsel %vm1458, %v1546, %v1548
      %v1555 = vsel %vm1465, %v1549, 0.0
      %1556 = vadd.xlane.f32.xlu0 %v1555
      %v1557 = vpop.xlane.xlu0 %1556
      %v1558 = vsel %vm375, %v1550, 0.0
      %1559 = vadd.xlane.f32.xlu0 %v1558
      %v1560 = vpop.xlane.xlu0 %1559
      %v1561 = vsel %vm1468, %v1551, 0.0
      %1562 = vadd.xlane.f32.xlu0 %v1561
      %v1563 = vpop.xlane.xlu0 %1562
      %1564 = vst.msk [vmem:[%s249 - $0x7] sm:$0x80] %vm1507, %v1557
      %1565 = vst.msk [vmem:[%s249 + $0x1] sm:$0xff] %vm1458, %v1560
      %1566 = vst.msk [vmem:[%s249 + $0x9] sm:$0x7f] %vm1510, %v1563
      %v1567 = vmul.f32 %v1434, %v1434
      %v1568 = vmul.f32 %v1435, %v1435
      %v1569 = vmul.f32 %v1436, %v1436
      %v1570 = vmul.f32 %v1437, %v1437
      %v1571 = vmul.f32 %v1438, %v1438
      %v1572 = vmul.f32 %v1439, %v1439
      %1579 = vrot.lane.b32.xlu0 %v1567, 1
      %v1580 = vpop.permute.xlu0 %1579
      %1581 = vrot.lane.b32.xlu0 %v1568, 1
      %v1582 = vpop.permute.xlu0 %1581
      %1583 = vrot.lane.b32.xlu0 %v1569, 1
      %v1584 = vpop.permute.xlu0 %1583
      %1585 = vrot.lane.b32.xlu0 %v1570, 1
      %v1586 = vpop.permute.xlu0 %1585
      %1587 = vrot.lane.b32.xlu0 %v1571, 1
      %v1588 = vpop.permute.xlu0 %1587
      %1589 = vrot.lane.b32.xlu0 %v1572, 1
      %v1590 = vpop.permute.xlu0 %1589
      %v1591 = vsel %vm1458, %v1580, %v1582
      %v1592 = vsel %vm1458, %v1584, %v1586
      %v1593 = vsel %vm1458, %v1588, %v1590
      %v1597 = vsel %vm1465, %v1591, 0.0
      %1598 = vadd.xlane.f32.xlu0 %v1597
      %v1599 = vpop.xlane.xlu0 %1598
      %v1600 = vsel %vm375, %v1592, 0.0
      %1601 = vadd.xlane.f32.xlu0 %v1600
      %v1602 = vpop.xlane.xlu0 %1601
      %v1603 = vsel %vm1468, %v1593, 0.0
      %1604 = vadd.xlane.f32.xlu0 %v1603
      %v1605 = vpop.xlane.xlu0 %1604
      %s1606 = scalar_lea.vmem %s249, 16
      %1607 = vst.msk [vmem:[%s1606 - $0x7] sm:$0x80] %vm1507, %v1599
      %1608 = vst.msk [vmem:[%s1606 + $0x1] sm:$0xff] %vm1458, %v1602
      %1609 = vst.msk [vmem:[%s1606 + $0x9] sm:$0x7f] %vm1510, %v1605
      %p1610 = scmp.lt.s32.totalorder %s17, 1
      %s1611 = scalar_select %p1610, %s17, 1
      %s1612 = smul.addr %s1611, 4
      %s1613 = smul.addr %s1612, 8
      %s1614 = scalar_lea.vmem %s3, %s1613
      %p1615 = scmp.lt.s32.totalorder %s17, 1
      %s1616 = scalar_select %p1615, %s17, 1
      %s1617 = smul.addr %s1616, 4
      %s1618 = smul.addr %s1617, 8
      %s1619 = scalar_lea.vmem %s4, %s1618
      %p1620 = scmp.lt.s32.totalorder %s17, 1
      %s1621 = scalar_select %p1620, %s17, 1
      %s1622 = smul.addr %s1621, 4
      %s1623 = smul.addr %s1622, 8
      %s1624 = scalar_lea.vmem %s5, %s1623
      // Predicated region
      $region33: #{_lambda_.18} parent=31 // pred_check
        %p1625 = pneg %p103
      $region34: #{_lambda_.18} parent=31 // pred_check_branch
        %1627 = sbr.rel (%p1625) target = $region36
      $region35: #{_lambda_.18} parent=31 // pred_region
        _
      $region36: #{_lambda_.18} parent=31 // pred_fallthru
        _
      // Predicated region
      $region37: #{_lambda_.18} parent=31 // pred_check
        %p1628 = pneg %p129
      $region38: #{_lambda_.18} parent=31 // pred_check_branch
        %1630 = sbr.rel (%p1628) target = $region40
      $region39: #{_lambda_.18} parent=31 // pred_region
        _
      $region40: #{_lambda_.18} parent=31 // pred_fallthru
        _
      // Predicated region
      $region41: #{_lambda_.18} parent=31 // pred_check
        %p1631 = pneg %p155
      $region42: #{_lambda_.18} parent=31 // pred_check_branch
        %1633 = sbr.rel (%p1631) target = $region44
      $region43: #{_lambda_.18} parent=31 // pred_region
        _
      $region44: #{_lambda_.18} parent=31 // pred_fallthru
        _
    $region32: #{_lambda_.18} parent=5 // pred_fallthru
      _
    %p1634 = scmp.le.s32.totalorder 2, %s12
    // Predicated region
    $region45: #{_lambda_.18} parent=5 // pred_check
      %p1635 = pneg %p1634
    $region46: #{_lambda_.18} parent=5 // pred_check_branch
      %1637 = sbr.rel (%p1635) target = $region48
    $region47: #{_lambda_.18} parent=5 // pred_region
      %s1638 = ssub.s32 %s12, 2
      // Predicated region
      $region49: #{_lambda_.18} parent=47 // pred_check
        %p1639 = pneg %p109
      $region50: #{_lambda_.18} parent=47 // pred_check_branch
        %1641 = sbr.rel (%p1639) target = $region52
      $region51: #{_lambda_.18} parent=47 // pred_region
        %p1642 = scmp.lt.s32.totalorder %s18, 1
        %s1643 = scalar_select %p1642, %s18, 1
        %s1644 = smul.addr %s1643, 4
        %s1645 = smul.addr %s1644, 8
        %s1646 = scalar_lea.vmem %s3, %s1645
      $region52: #{_lambda_.18} parent=47 // pred_fallthru
        _
      // Predicated region
      $region53: #{_lambda_.18} parent=47 // pred_check
        %p1647 = pneg %p135
      $region54: #{_lambda_.18} parent=47 // pred_check_branch
        %1649 = sbr.rel (%p1647) target = $region56
      $region55: #{_lambda_.18} parent=47 // pred_region
        %p1650 = scmp.lt.s32.totalorder %s18, 1
        %s1651 = scalar_select %p1650, %s18, 1
        %s1652 = smul.addr %s1651, 4
        %s1653 = smul.addr %s1652, 8
        %s1654 = scalar_lea.vmem %s4, %s1653
      $region56: #{_lambda_.18} parent=47 // pred_fallthru
        _
      // Predicated region
      $region57: #{_lambda_.18} parent=47 // pred_check
        %p1655 = pneg %p161
      $region58: #{_lambda_.18} parent=47 // pred_check_branch
        %1657 = sbr.rel (%p1655) target = $region60
      $region59: #{_lambda_.18} parent=47 // pred_region
        %p1658 = scmp.lt.s32.totalorder %s18, 1
        %s1659 = scalar_select %p1658, %s18, 1
        %s1660 = smul.addr %s1659, 4
        %s1661 = smul.addr %s1660, 8
        %s1662 = scalar_lea.vmem %s5, %s1661
      $region60: #{_lambda_.18} parent=47 // pred_fallthru
        _
    $region48: #{_lambda_.18} parent=5 // pred_fallthru
      _
  $region6: #{_lambda_.18} parent=0 // loop_footer
    %s16 = sadd.s32 1, %s12
  $region7: #{_lambda_.18} parent=0 // loop_footer_branch
    %11 = sbr.rel target = $region3
  $region8: #{_lambda_.18} parent=0 // loop_exit
    _

// kernel: _lambda_.21
$region0: #{_lambda_.21}
  #allocation0 [shape = 'u32[]', space=smem, size = 0x4, offset = 0x4, fixed_abs, tag = 'smem constant byte address 0x4 - core index']
  #allocation1 [shape = 'u32[144,128]{1,0:T(1,128)}', space=vmem, size = 0x12000, scoped, tag = 'internal scratch']
  %s0 = inlined_call_operand.vmem [shape: f32[2,4,256], index: 0, kind: input, shape index: {}]
  %s1 = inlined_call_operand.vmem [shape: f32[2,2,256], index: 1, kind: input, shape index: {}]
  %s2 = inlined_call_operand.vmem [shape: f32[2,2,1], index: 2, kind: input, shape index: {}]
  %s3 = inlined_call_operand.vmem [shape: f32[2,1,1], index: 3, kind: input, shape index: {}]
  %s4 = inlined_call_operand.vmem [shape: f32[2,4,256], index: 4, kind: output, shape index: {}]
  %s5 = sld [smem:[#allocation0]]
  $region49: #{_lambda_.21} parent=0
    _
  %s7 = ssub.s32 1, %s5
  %s8 = scalar_select 0, %s7, %s5
  loop: start=0, step=1, limit=4
  $region2: #{_lambda_.21} parent=0 // loop_pre_header
    _
  $region3: #{_lambda_.21} parent=0 // loop_header
    %s10 = sphi 0, %s14
    %p11 = scmp.ge.s32.totalorder %s10, 4
    %s17 = sphi 0, %s29
    %s18 = sphi 0, %s25
    %s19 = sphi 0, %s17
    %s20 = sphi 0, %s18
    %s21 = sphi 0, %s19
    %s22 = sphi 0, %s20
    %s34 = sphi 0, %s36
    %s37 = sphi 0, %s34
    %s38 = sphi 0, %s37
    %s54 = sphi 0, %s38
    %s62 = sphi 0, %s64
    %s65 = sphi 0, %s62
    %s66 = sphi 0, %s65
    %s82 = sphi 0, %s66
    %s88 = sphi 0, %s90
    %s91 = sphi 0, %s88
    %s92 = sphi 0, %s91
    %s108 = sphi 0, %s92
    %s114 = sphi 0, %s116
    %s117 = sphi 0, %s114
    %s118 = sphi 0, %s117
    %s134 = sphi 0, %s118
    %s142 = sphi 0, %s144
    %s145 = sphi 0, %s142
    %s146 = sphi 0, %s145
    %s162 = sphi 0, %s146
  $region4: #{_lambda_.21} parent=0 // loop_header_branch
    %13 = sbr.rel (%p11) target = $region8
  $region5: #{_lambda_.21} parent=0 // loop_body
    %s15 = ssub.s32 %s10, 1
    %s16 = ssub.s32 %s10, 2
    %s23 = sadd.s32 1, %s18
    %p24 = scmp.ge.s32.totalorder %s23, 1
    %s25 = scalar_select %p24, 0, %s23
    %s26 = sadd.s32 1, %s17
    %s27 = scalar_select %p24, %s26, %s17
    %p28 = scmp.ge.s32.totalorder %s27, 2
    %s29 = scalar_select %p28, 0, %s27
    %s30 = ssub.s32 %s17, %s29
    %s31 = ssub.s32 %s18, %s25
    %s32 = sor.u32 %s30, %s31
    %p33 = scmp.eq.s32.totalorder %s32, 0
    %s35 = sadd.s32 %s34, 1
    %s36 = scalar_select %p33, %s34, %s35
    %p39 = pneg %p33
    %p40 = scmp.eq.s32.totalorder %s10, 1
    %p41 = por %p39, %p40
    %p42 = scmp.ne.s32.totalorder %s34, %s37
    %p43 = scmp.eq.s32.totalorder %s10, 0
    %p44 = por %p42, %p43
    %p45 = scmp.ne.s32.totalorder %s34, %s37
    %p46 = scmp.eq.s32.totalorder %s15, 1
    %p47 = por %p45, %p46
    %p48 = scmp.ne.s32.totalorder %s37, %s38
    %p49 = scmp.eq.s32.totalorder %s15, 0
    %p50 = por %p48, %p49
    %p51 = scmp.ne.s32.totalorder %s37, %s38
    %p52 = scmp.eq.s32.totalorder %s16, 1
    %p53 = por %p51, %p52
    %p55 = scmp.ne.s32.totalorder %s38, %s54
    %p56 = scmp.eq.s32.totalorder %s16, 0
    %p57 = por %p55, %p56
    %s58 = ssub.s32 %s17, %s29
    %s59 = ssub.s32 %s18, %s25
    %s60 = sor.u32 %s58, %s59
    %p61 = scmp.eq.s32.totalorder %s60, 0
    %s63 = sadd.s32 %s62, 1
    %s64 = scalar_select %p61, %s62, %s63
    %p67 = pneg %p61
    %p68 = scmp.eq.s32.totalorder %s10, 1
    %p69 = por %p67, %p68
    %p70 = scmp.ne.s32.totalorder %s62, %s65
    %p71 = scmp.eq.s32.totalorder %s10, 0
    %p72 = por %p70, %p71
    %p73 = scmp.ne.s32.totalorder %s62, %s65
    %p74 = scmp.eq.s32.totalorder %s15, 1
    %p75 = por %p73, %p74
    %p76 = scmp.ne.s32.totalorder %s65, %s66
    %p77 = scmp.eq.s32.totalorder %s15, 0
    %p78 = por %p76, %p77
    %p79 = scmp.ne.s32.totalorder %s65, %s66
    %p80 = scmp.eq.s32.totalorder %s16, 1
    %p81 = por %p79, %p80
    %p83 = scmp.ne.s32.totalorder %s66, %s82
    %p84 = scmp.eq.s32.totalorder %s16, 0
    %p85 = por %p83, %p84
    %s86 = ssub.s32 %s17, %s29
    %p87 = scmp.eq.s32.totalorder %s86, 0
    %s89 = sadd.s32 %s88, 1
    %s90 = scalar_select %p87, %s88, %s89
    %p93 = pneg %p87
    %p94 = scmp.eq.s32.totalorder %s10, 1
    %p95 = por %p93, %p94
    %p96 = scmp.ne.s32.totalorder %s88, %s91
    %p97 = scmp.eq.s32.totalorder %s10, 0
    %p98 = por %p96, %p97
    %p99 = scmp.ne.s32.totalorder %s88, %s91
    %p100 = scmp.eq.s32.totalorder %s15, 1
    %p101 = por %p99, %p100
    %p102 = scmp.ne.s32.totalorder %s91, %s92
    %p103 = scmp.eq.s32.totalorder %s15, 0
    %p104 = por %p102, %p103
    %p105 = scmp.ne.s32.totalorder %s91, %s92
    %p106 = scmp.eq.s32.totalorder %s16, 1
    %p107 = por %p105, %p106
    %p109 = scmp.ne.s32.totalorder %s92, %s108
    %p110 = scmp.eq.s32.totalorder %s16, 0
    %p111 = por %p109, %p110
    %s112 = ssub.s32 %s17, %s29
    %p113 = scmp.eq.s32.totalorder %s112, 0
    %s115 = sadd.s32 %s114, 1
    %s116 = scalar_select %p113, %s114, %s115
    %p119 = pneg %p113
    %p120 = scmp.eq.s32.totalorder %s10, 1
    %p121 = por %p119, %p120
    %p122 = scmp.ne.s32.totalorder %s114, %s117
    %p123 = scmp.eq.s32.totalorder %s10, 0
    %p124 = por %p122, %p123
    %p125 = scmp.ne.s32.totalorder %s114, %s117
    %p126 = scmp.eq.s32.totalorder %s15, 1
    %p127 = por %p125, %p126
    %p128 = scmp.ne.s32.totalorder %s117, %s118
    %p129 = scmp.eq.s32.totalorder %s15, 0
    %p130 = por %p128, %p129
    %p131 = scmp.ne.s32.totalorder %s117, %s118
    %p132 = scmp.eq.s32.totalorder %s16, 1
    %p133 = por %p131, %p132
    %p135 = scmp.ne.s32.totalorder %s118, %s134
    %p136 = scmp.eq.s32.totalorder %s16, 0
    %p137 = por %p135, %p136
    %s138 = ssub.s32 %s17, %s29
    %s139 = ssub.s32 %s18, %s25
    %s140 = sor.u32 %s138, %s139
    %p141 = scmp.eq.s32.totalorder %s140, 0
    %s143 = sadd.s32 %s142, 1
    %s144 = scalar_select %p141, %s142, %s143
    %p147 = pneg %p141
    %p148 = scmp.eq.s32.totalorder %s10, 1
    %p149 = por %p147, %p148
    %p150 = scmp.ne.s32.totalorder %s142, %s145
    %p151 = scmp.eq.s32.totalorder %s10, 0
    %p152 = por %p150, %p151
    %p153 = scmp.ne.s32.totalorder %s142, %s145
    %p154 = scmp.eq.s32.totalorder %s15, 1
    %p155 = por %p153, %p154
    %p156 = scmp.ne.s32.totalorder %s145, %s146
    %p157 = scmp.eq.s32.totalorder %s15, 0
    %p158 = por %p156, %p157
    %p159 = scmp.ne.s32.totalorder %s145, %s146
    %p160 = scmp.eq.s32.totalorder %s16, 1
    %p161 = por %p159, %p160
    %p163 = scmp.ne.s32.totalorder %s146, %s162
    %p164 = scmp.eq.s32.totalorder %s16, 0
    %p165 = por %p163, %p164
    %p166 = scmp.le.s32.totalorder 1, %s10
    %p167 = scmp.lt.s32.totalorder %s10, 3
    %p168 = pnand %p166, %p167
    %p169 = pneg %p168
    // Predicated region
    $region9: #{_lambda_.21} parent=5 // pred_check
      _
    $region10: #{_lambda_.21} parent=5 // pred_check_branch
      %171 = sbr.rel (%p168) target = $region12
    $region11: #{_lambda_.21} parent=5 // pred_region
      %s172 = ssub.s32 %s10, 1
    $region12: #{_lambda_.21} parent=5 // pred_fallthru
      _
    %p173 = scmp.lt.s32.totalorder %s10, 2
    // Predicated region
    $region13: #{_lambda_.21} parent=5 // pred_check
      %p174 = pneg %p173
    $region14: #{_lambda_.21} parent=5 // pred_check_branch
      %176 = sbr.rel (%p174) target = $region16
    $region15: #{_lambda_.21} parent=5 // pred_region
      // Predicated region
      $region17: #{_lambda_.21} parent=15 // pred_check
        %p177 = pneg %p44
      $region18: #{_lambda_.21} parent=15 // pred_check_branch
        %179 = sbr.rel (%p177) target = $region20
      $region19: #{_lambda_.21} parent=15 // pred_region
        %s180 = smul.u32 2, %s18
        %p181 = scmp.lt.s32.totalorder %s17, 1
        %s182 = scalar_select %p181, %s17, 1
        %p183 = scmp.lt.s32.totalorder %s180, 1
        %s184 = scalar_select %p183, %s180, 1
        %s185 = smul.addr %s182, 2
        %s186 = sadd.s32 %s184, %s185
        %s187 = smul.addr %s186, 4
        %s188 = scalar_lea.vmem %s0, %s187
        %s189 = smul.u32 2, %s18
      $region20: #{_lambda_.21} parent=15 // pred_fallthru
        _
      // Predicated region
      $region21: #{_lambda_.21} parent=15 // pred_check
        %p190 = pneg %p72
      $region22: #{_lambda_.21} parent=15 // pred_check_branch
        %192 = sbr.rel (%p190) target = $region24
      $region23: #{_lambda_.21} parent=15 // pred_region
        %s193 = smul.u32 2, %s18
        %p194 = scmp.lt.s32.totalorder %s17, 1
        %s195 = scalar_select %p194, %s17, 1
        %p196 = scmp.lt.s32.totalorder %s193, 1
        %s197 = scalar_select %p196, %s193, 1
        %s198 = smul.addr %s195, 2
        %s199 = sadd.s32 %s197, %s198
        %s200 = smul.addr %s199, 2
        %s201 = scalar_lea.vmem %s1, %s200
        %s202 = smul.u32 2, %s18
      $region24: #{_lambda_.21} parent=15 // pred_fallthru
        _
      // Predicated region
      $region25: #{_lambda_.21} parent=15 // pred_check
        %p203 = pneg %p98
      $region26: #{_lambda_.21} parent=15 // pred_check_branch
        %205 = sbr.rel (%p203) target = $region28
      $region27: #{_lambda_.21} parent=15 // pred_region
        %p206 = scmp.lt.s32.totalorder %s17, 1
        %s207 = scalar_select %p206, %s17, 1
        %s208 = smul.addr %s207, 2
        %s209 = scalar_lea.vmem %s2, %s208
      $region28: #{_lambda_.21} parent=15 // pred_fallthru
        _
      // Predicated region
      $region29: #{_lambda_.21} parent=15 // pred_check
        %p210 = pneg %p124
      $region30: #{_lambda_.21} parent=15 // pred_check_branch
        %212 = sbr.rel (%p210) target = $region32
      $region31: #{_lambda_.21} parent=15 // pred_region
        %p213 = scmp.lt.s32.totalorder %s17, 1
        %s214 = scalar_select %p213, %s17, 1
        %s215 = scalar_lea.vmem %s3, %s214
      $region32: #{_lambda_.21} parent=15 // pred_fallthru
        _
    $region16: #{_lambda_.21} parent=5 // pred_fallthru
      _
    %p216 = scmp.le.s32.totalorder 1, %s10
    %p217 = scmp.lt.s32.totalorder %s10, 3
    %p218 = pnand %p216, %p217
    %p219 = pneg %p218
    // Predicated region
    $region33: #{_lambda_.21} parent=5 // pred_check
      _
    $region34: #{_lambda_.21} parent=5 // pred_check_branch
      %221 = sbr.rel (%p218) target = $region36
    $region35: #{_lambda_.21} parent=5 // pred_region
      %s222 = ssub.s32 %s10, 1
      %s223 = smul.u32 2, %s20
      %p224 = scmp.lt.s32.totalorder %s19, 1
      %s225 = scalar_select %p224, %s19, 1
      %p226 = scmp.lt.s32.totalorder %s223, 1
      %s227 = scalar_select %p226, %s223, 1
      %s228 = smul.addr %s225, 2
      %s229 = sadd.s32 %s227, %s228
      %s230 = smul.addr %s229, 4
      %s231 = scalar_lea.vmem %s0, %s230
      %p232 = pneg %p50
      %p233 = pneg %p47
      %s234 = smul.u32 2, %s20
      %p235 = scmp.lt.s32.totalorder %s19, 1
      %s236 = scalar_select %p235, %s19, 1
      %p237 = scmp.lt.s32.totalorder %s234, 1
      %s238 = scalar_select %p237, %s234, 1
      %s239 = smul.addr %s236, 2
      %s240 = sadd.s32 %s238, %s239
      %s241 = smul.addr %s240, 2
      %s242 = scalar_lea.vmem %s1, %s241
      %p243 = pneg %p78
      %p244 = pneg %p75
      %p245 = scmp.lt.s32.totalorder %s19, 1
      %s246 = scalar_select %p245, %s19, 1
      %s247 = smul.addr %s246, 2
      %s248 = scalar_lea.vmem %s2, %s247
      %p249 = pneg %p104
      %p250 = pneg %p101
      %p251 = scmp.lt.s32.totalorder %s19, 1
      %s252 = scalar_select %p251, %s19, 1
      %s253 = scalar_lea.vmem %s3, %s252
      %p254 = pneg %p130
      %p255 = pneg %p127
      %p256 = pneg %p158
      %p257 = pneg %p155
      %s258 = smul.u32 2, %s20
      %p259 = scmp.lt.s32.totalorder %s19, 1
      %s260 = scalar_select %p259, %s19, 1
      %p261 = scmp.lt.s32.totalorder %s258, 1
      %s262 = scalar_select %p261, %s258, 1
      %s263 = smul.addr %s260, 2
      %s264 = sadd.s32 %s262, %s263
      %s265 = smul.addr %s264, 4
      %s266 = scalar_lea.vmem %s4, %s265
      %s267 = smul.u32 2, %s20
      %p268 = scmp.lt.s32.totalorder %s19, 1
      %s269 = scalar_select %p268, %s19, 1
      %p270 = scmp.lt.s32.totalorder %s267, 1
      %s271 = scalar_select %p270, %s267, 1
      %s272 = smul.addr %s269, 2
      %s273 = sadd.s32 %s271, %s272
      %s274 = smul.addr %s273, 4
      %s275 = scalar_lea.vmem %s0, %s274
      %s276 = smul.u32 2, %s20
      %s277 = smul.u32 2, %s20
      %p278 = scmp.lt.s32.totalorder %s19, 1
      %s279 = scalar_select %p278, %s19, 1
      %p280 = scmp.lt.s32.totalorder %s277, 1
      %s281 = scalar_select %p280, %s277, 1
      %s282 = smul.addr %s279, 2
      %s283 = sadd.s32 %s281, %s282
      %s284 = smul.addr %s283, 2
      %s285 = scalar_lea.vmem %s1, %s284
      %s286 = smul.u32 2, %s20
      %p287 = scmp.lt.s32.totalorder %s19, 1
      %s288 = scalar_select %p287, %s19, 1
      %s289 = smul.addr %s288, 2
      %s290 = scalar_lea.vmem %s2, %s289
      %p291 = scmp.lt.s32.totalorder %s19, 1
      %s292 = scalar_select %p291, %s19, 1
      %s293 = scalar_lea.vmem %s3, %s292
      %s294 = smul.u32 2, %s20
      %p295 = scmp.lt.s32.totalorder %s19, 1
      %s296 = scalar_select %p295, %s19, 1
      %p297 = scmp.lt.s32.totalorder %s294, 1
      %s298 = scalar_select %p297, %s294, 1
      %s299 = smul.addr %s296, 2
      %s300 = sadd.s32 %s298, %s299
      %s301 = smul.addr %s300, 4
      %s302 = scalar_lea.vmem %s4, %s301
      %s303 = smul.u32 2, %s20
      %v304 = vld [vmem:[%s285] ss:$2 sm:$0x3]
      %s305 = scalar_lea.vmem %s285, 1
      %v306 = vld [vmem:[%s305] ss:$2 sm:$0x3]
      %v307 = vld [vmem:[%s290] sm:$0x3]
      %v308 = vld [vmem:[%s293] sm:$0x1]
      %310 = vset.pattern.permute.xlu0 0
      %311 = vperm.xlu0 %310, %v307
      %v312 = vpop.permute.xlu0 %311
      %v313 = vlaneseq
      %v314 = vshrl.u32 %v313, 7
      %v315 = vsub.s32 0, %v314
      %v316 = vrot.slane %v312, %v315
      %v318 = vmul.f32 %v304, %v316
      %v319 = vlaneseq
      %v320 = vshrl.u32 %v319, 7
      %v321 = vsub.s32 1, %v320
      %v322 = vrot.slane %v312, %v321
      %v324 = vmul.f32 %v306, %v322
      %v325 = vadd.f32 %v318, %v324
      %327 = vset.pattern.permute.xlu0 0
      %328 = vperm.xlu0 %327, %v308
      %v329 = vpop.permute.xlu0 %328
      %v331 = vlaneseq
      %v332 = vshrl.u32 %v331, 7
      %v333 = vsub.s32 0, %v332
      %v334 = vrot.slane %v329, %v333
      %v335 = vadd.f32 %v325, %v334
      %v336 = vxor.u32 %v335, 2147483648
      %v337 = vmul.f32 %v336, 1.442695
      %v338 = vpow.pop %v337
      %v339 = vadd.f32 %v338, 1.0
      %v340 = vrcp.pop %v339
      %v341 = vmul.f32 1.0, %v340
      %v342 = vld [vmem:[%s275] sm:$0xff]
      %v344 = vlaneseq
      %v345 = vshrl.u32 %v344, 7
      %v346 = vsub.s32 0, %v345
      %v347 = vrot.slane %v341, %v346
      %v348 = vlaneseq
      %v349 = vshrl.u32 %v348, 7
      %v350 = vsub.s32 1, %v349
      %v351 = vrot.slane %v341, %v350
      %v352 = vcombine.low %v347, %v351
      %v354 = vmul.f32 %v342, %v352
      %355 = vst [vmem:[%s302] sm:$0xff] %v354
      %s356 = smul.u32 2, %s20
      %p357 = scmp.lt.s32.totalorder %s19, 1
      %s358 = scalar_select %p357, %s19, 1
      %p359 = scmp.lt.s32.totalorder %s356, 1
      %s360 = scalar_select %p359, %s356, 1
      %s361 = smul.addr %s358, 2
      %s362 = sadd.s32 %s360, %s361
      %s363 = smul.addr %s362, 4
      %s364 = scalar_lea.vmem %s4, %s363
      // Predicated region
      $region37: #{_lambda_.21} parent=35 // pred_check
        %p365 = pneg %p155
      $region38: #{_lambda_.21} parent=35 // pred_check_branch
        %367 = sbr.rel (%p365) target = $region40
      $region39: #{_lambda_.21} parent=35 // pred_region
        %s368 = smul.u32 2, %s20
      $region40: #{_lambda_.21} parent=35 // pred_fallthru
        _
    $region36: #{_lambda_.21} parent=5 // pred_fallthru
      _
    %p369 = scmp.le.s32.totalorder 2, %s10
    // Predicated region
    $region41: #{_lambda_.21} parent=5 // pred_check
      %p370 = pneg %p369
    $region42: #{_lambda_.21} parent=5 // pred_check_branch
      %372 = sbr.rel (%p370) target = $region44
    $region43: #{_lambda_.21} parent=5 // pred_region
      %s373 = ssub.s32 %s10, 2
      // Predicated region
      $region45: #{_lambda_.21} parent=43 // pred_check
        %p374 = pneg %p161
      $region46: #{_lambda_.21} parent=43 // pred_check_branch
        %376 = sbr.rel (%p374) target = $region48
      $region47: #{_lambda_.21} parent=43 // pred_region
        %s377 = smul.u32 2, %s22
        %p378 = scmp.lt.s32.totalorder %s21, 1
        %s379 = scalar_select %p378, %s21, 1
        %p380 = scmp.lt.s32.totalorder %s377, 1
        %s381 = scalar_select %p380, %s377, 1
        %s382 = smul.addr %s379, 2
        %s383 = sadd.s32 %s381, %s382
        %s384 = smul.addr %s383, 4
        %s385 = scalar_lea.vmem %s4, %s384
      $region48: #{_lambda_.21} parent=43 // pred_fallthru
        _
    $region44: #{_lambda_.21} parent=5 // pred_fallthru
      _
  $region6: #{_lambda_.21} parent=0 // loop_footer
    %s14 = sadd.s32 1, %s10
  $region7: #{_lambda_.21} parent=0 // loop_footer_branch
    %9 = sbr.rel target = $region3
  $region8: #{_lambda_.21} parent=0 // loop_exit
    _

// kernel: _lambda_.20
$region0: #{_lambda_.20}
  #allocation0 [shape = 'u32[]', space=smem, size = 0x4, offset = 0x4, fixed_abs, tag = 'smem constant byte address 0x4 - core index']
  #allocation1 [shape = 'u32[144,128]{1,0:T(1,128)}', space=vmem, size = 0x12000, scoped, tag = 'internal scratch']
  #allocation2 [shape = 'f32[32,256]{1,0:T(8,128)}', space=vmem, size = 0x8000, scoped, tag = 'scratch operand']
  #allocation3 [shape = 'f32[32,256]{1,0:T(8,128)}', space=vmem, size = 0x8000, scoped, tag = 'scratch operand']
  %s0 = inlined_call_operand.vmem [shape: f32[2,4,16,16], index: 0, kind: input, shape index: {}]
  %s1 = inlined_call_operand.vmem [shape: f32[2,18], index: 1, kind: input, shape index: {}]
  %s2 = inlined_call_operand.vmem [shape: f32[2,1], index: 2, kind: input, shape index: {}]
  %s3 = inlined_call_operand.vmem [shape: f32[2,2,16,16], index: 3, kind: output, shape index: {0}]
  %s4 = inlined_call_operand.vmem [shape: f32[2,2,16,1], index: 4, kind: output, shape index: {1}]
  %s5 = inlined_call_operand.vmem [shape: f32[2,2,16,1], index: 5, kind: output, shape index: {2}]
  %6 = xla_tuple %s3, %s4, %s5
  %s7 = sld [smem:[#allocation0]]
  $region61: #{_lambda_.20} parent=0
    _
  %s9 = ssub.s32 1, %s7
  %s10 = scalar_select 0, %s9, %s7
  loop: start=0, step=1, limit=4
  $region2: #{_lambda_.20} parent=0 // loop_pre_header
    _
  $region3: #{_lambda_.20} parent=0 // loop_header
    %s12 = sphi 0, %s16
    %p13 = scmp.ge.s32.totalorder %s12, 4
    %s22 = sphi 0, %s24
    %s25 = sphi 0, %s22
    %s26 = sphi 0, %s25
    %s42 = sphi 0, %s26
    %s46 = sphi 0, %s46
    %s48 = sphi 0, %s46
    %s49 = sphi 0, %s48
    %s63 = sphi 0, %s49
    %s67 = sphi 0, %s67
    %s69 = sphi 0, %s67
    %s70 = sphi 0, %s69
    %s84 = sphi 0, %s70
    %s90 = sphi 0, %s92
    %s93 = sphi 0, %s90
    %s94 = sphi 0, %s93
    %s110 = sphi 0, %s94
    %s116 = sphi 0, %s118
    %s119 = sphi 0, %s116
    %s120 = sphi 0, %s119
    %s136 = sphi 0, %s120
    %s142 = sphi 0, %s144
    %s145 = sphi 0, %s142
    %s146 = sphi 0, %s145
    %s162 = sphi 0, %s146
  $region4: #{_lambda_.20} parent=0 // loop_header_branch
    %15 = sbr.rel (%p13) target = $region8
  $region5: #{_lambda_.20} parent=0 // loop_body
    %s17 = ssub.s32 %s12, 1
    %s18 = ssub.s32 %s12, 2
    %s19 = sadd.s32 %s12, 1
    %s20 = ssub.s32 %s12, %s19
    %p21 = scmp.eq.s32.totalorder %s20, 0
    %s23 = sadd.s32 %s22, 1
    %s24 = scalar_select %p21, %s22, %s23
    %p27 = pneg %p21
    %p28 = scmp.eq.s32.totalorder %s12, 1
    %p29 = por %p27, %p28
    %p30 = scmp.ne.s32.totalorder %s22, %s25
    %p31 = scmp.eq.s32.totalorder %s12, 0
    %p32 = por %p30, %p31
    %p33 = scmp.ne.s32.totalorder %s22, %s25
    %p34 = scmp.eq.s32.totalorder %s17, 1
    %p35 = por %p33, %p34
    %p36 = scmp.ne.s32.totalorder %s25, %s26
    %p37 = scmp.eq.s32.totalorder %s17, 0
    %p38 = por %p36, %p37
    %p39 = scmp.ne.s32.totalorder %s25, %s26
    %p40 = scmp.eq.s32.totalorder %s18, 1
    %p41 = por %p39, %p40
    %p43 = scmp.ne.s32.totalorder %s26, %s42
    %p44 = scmp.eq.s32.totalorder %s18, 0
    %p45 = por %p43, %p44
    %s47 = sadd.s32 %s46, 1
    %p50 = scmp.eq.s32.totalorder %s12, 1
    %p51 = scmp.ne.s32.totalorder %s46, %s48
    %p52 = scmp.eq.s32.totalorder %s12, 0
    %p53 = por %p51, %p52
    %p54 = scmp.ne.s32.totalorder %s46, %s48
    %p55 = scmp.eq.s32.totalorder %s17, 1
    %p56 = por %p54, %p55
    %p57 = scmp.ne.s32.totalorder %s48, %s49
    %p58 = scmp.eq.s32.totalorder %s17, 0
    %p59 = por %p57, %p58
    %p60 = scmp.ne.s32.totalorder %s48, %s49
    %p61 = scmp.eq.s32.totalorder %s18, 1
    %p62 = por %p60, %p61
    %p64 = scmp.ne.s32.totalorder %s49, %s63
    %p65 = scmp.eq.s32.totalorder %s18, 0
    %p66 = por %p64, %p65
    %s68 = sadd.s32 %s67, 1
    %p71 = scmp.eq.s32.totalorder %s12, 1
    %p72 = scmp.ne.s32.totalorder %s67, %s69
    %p73 = scmp.eq.s32.totalorder %s12, 0
    %p74 = por %p72, %p73
    %p75 = scmp.ne.s32.totalorder %s67, %s69
    %p76 = scmp.eq.s32.totalorder %s17, 1
    %p77 = por %p75, %p76
    %p78 = scmp.ne.s32.totalorder %s69, %s70
    %p79 = scmp.eq.s32.totalorder %s17, 0
    %p80 = por %p78, %p79
    %p81 = scmp.ne.s32.totalorder %s69, %s70
    %p82 = scmp.eq.s32.totalorder %s18, 1
    %p83 = por %p81, %p82
    %p85 = scmp.ne.s32.totalorder %s70, %s84
    %p86 = scmp.eq.s32.totalorder %s18, 0
    %p87 = por %p85, %p86
    %s88 = ssub.s32 %s12, %s19
    %p89 = scmp.eq.s32.totalorder %s88, 0
    %s91 = sadd.s32 %s90, 1
    %s92 = scalar_select %p89, %s90, %s91
    %p95 = pneg %p89
    %p96 = scmp.eq.s32.totalorder %s12, 1
    %p97 = por %p95, %p96
    %p98 = scmp.ne.s32.totalorder %s90, %s93
    %p99 = scmp.eq.s32.totalorder %s12, 0
    %p100 = por %p98, %p99
    %p101 = scmp.ne.s32.totalorder %s90, %s93
    %p102 = scmp.eq.s32.totalorder %s17, 1
    %p103 = por %p101, %p102
    %p104 = scmp.ne.s32.totalorder %s93, %s94
    %p105 = scmp.eq.s32.totalorder %s17, 0
    %p106 = por %p104, %p105
    %p107 = scmp.ne.s32.totalorder %s93, %s94
    %p108 = scmp.eq.s32.totalorder %s18, 1
    %p109 = por %p107, %p108
    %p111 = scmp.ne.s32.totalorder %s94, %s110
    %p112 = scmp.eq.s32.totalorder %s18, 0
    %p113 = por %p111, %p112
    %s114 = ssub.s32 %s12, %s19
    %p115 = scmp.eq.s32.totalorder %s114, 0
    %s117 = sadd.s32 %s116, 1
    %s118 = scalar_select %p115, %s116, %s117
    %p121 = pneg %p115
    %p122 = scmp.eq.s32.totalorder %s12, 1
    %p123 = por %p121, %p122
    %p124 = scmp.ne.s32.totalorder %s116, %s119
    %p125 = scmp.eq.s32.totalorder %s12, 0
    %p126 = por %p124, %p125
    %p127 = scmp.ne.s32.totalorder %s116, %s119
    %p128 = scmp.eq.s32.totalorder %s17, 1
    %p129 = por %p127, %p128
    %p130 = scmp.ne.s32.totalorder %s119, %s120
    %p131 = scmp.eq.s32.totalorder %s17, 0
    %p132 = por %p130, %p131
    %p133 = scmp.ne.s32.totalorder %s119, %s120
    %p134 = scmp.eq.s32.totalorder %s18, 1
    %p135 = por %p133, %p134
    %p137 = scmp.ne.s32.totalorder %s120, %s136
    %p138 = scmp.eq.s32.totalorder %s18, 0
    %p139 = por %p137, %p138
    %s140 = ssub.s32 %s12, %s19
    %p141 = scmp.eq.s32.totalorder %s140, 0
    %s143 = sadd.s32 %s142, 1
    %s144 = scalar_select %p141, %s142, %s143
    %p147 = pneg %p141
    %p148 = scmp.eq.s32.totalorder %s12, 1
    %p149 = por %p147, %p148
    %p150 = scmp.ne.s32.totalorder %s142, %s145
    %p151 = scmp.eq.s32.totalorder %s12, 0
    %p152 = por %p150, %p151
    %p153 = scmp.ne.s32.totalorder %s142, %s145
    %p154 = scmp.eq.s32.totalorder %s17, 1
    %p155 = por %p153, %p154
    %p156 = scmp.ne.s32.totalorder %s145, %s146
    %p157 = scmp.eq.s32.totalorder %s17, 0
    %p158 = por %p156, %p157
    %p159 = scmp.ne.s32.totalorder %s145, %s146
    %p160 = scmp.eq.s32.totalorder %s18, 1
    %p161 = por %p159, %p160
    %p163 = scmp.ne.s32.totalorder %s146, %s162
    %p164 = scmp.eq.s32.totalorder %s18, 0
    %p165 = por %p163, %p164
    %p166 = scmp.le.s32.totalorder 1, %s12
    %p167 = scmp.lt.s32.totalorder %s12, 3
    %p168 = pnand %p166, %p167
    %p169 = pneg %p168
    // Predicated region
    $region9: #{_lambda_.20} parent=5 // pred_check
      _
    $region10: #{_lambda_.20} parent=5 // pred_check_branch
      %171 = sbr.rel (%p168) target = $region12
    $region11: #{_lambda_.20} parent=5 // pred_region
      %s172 = ssub.s32 %s12, 1
      // Predicated region
      $region13: #{_lambda_.20} parent=11 // pred_check
        %p173 = pneg %p59
      $region14: #{_lambda_.20} parent=11 // pred_check_branch
        %175 = sbr.rel (%p173) target = $region16
      $region15: #{_lambda_.20} parent=11 // pred_region
        _
      $region16: #{_lambda_.20} parent=11 // pred_fallthru
        _
      // Predicated region
      $region17: #{_lambda_.20} parent=11 // pred_check
        %p176 = pneg %p80
      $region18: #{_lambda_.20} parent=11 // pred_check_branch
        %178 = sbr.rel (%p176) target = $region20
      $region19: #{_lambda_.20} parent=11 // pred_region
        _
      $region20: #{_lambda_.20} parent=11 // pred_fallthru
        _
    $region12: #{_lambda_.20} parent=5 // pred_fallthru
      _
    %p179 = scmp.lt.s32.totalorder %s12, 2
    // Predicated region
    $region21: #{_lambda_.20} parent=5 // pred_check
      %p180 = pneg %p179
    $region22: #{_lambda_.20} parent=5 // pred_check_branch
      %182 = sbr.rel (%p180) target = $region24
    $region23: #{_lambda_.20} parent=5 // pred_region
      // Predicated region
      $region25: #{_lambda_.20} parent=23 // pred_check
        %p183 = pneg %p32
      $region26: #{_lambda_.20} parent=23 // pred_check_branch
        %185 = sbr.rel (%p183) target = $region28
      $region27: #{_lambda_.20} parent=23 // pred_region
        %p186 = scmp.lt.s32.totalorder %s12, 1
        %s187 = scalar_select %p186, %s12, 1
        %s188 = smul.addr %s187, 8
        %s189 = smul.addr %s188, 8
        %s190 = scalar_lea.vmem %s0, %s189
      $region28: #{_lambda_.20} parent=23 // pred_fallthru
        _
    $region24: #{_lambda_.20} parent=5 // pred_fallthru
      _
    %p191 = scmp.le.s32.totalorder 1, %s12
    %p192 = scmp.lt.s32.totalorder %s12, 3
    %p193 = pnand %p191, %p192
    %p194 = pneg %p193
    // Predicated region
    $region29: #{_lambda_.20} parent=5 // pred_check
      _
    $region30: #{_lambda_.20} parent=5 // pred_check_branch
      %196 = sbr.rel (%p193) target = $region32
    $region31: #{_lambda_.20} parent=5 // pred_region
      %s197 = ssub.s32 %s12, 1
      %p198 = scmp.lt.s32.totalorder %s17, 1
      %s199 = scalar_select %p198, %s17, 1
      %s200 = smul.addr %s199, 8
      %s201 = smul.addr %s200, 8
      %s202 = scalar_lea.vmem %s0, %s201
      %p203 = pneg %p38
      %p204 = pneg %p35
      %p205 = pneg %p59
      %p206 = pneg %p56
      %p207 = pneg %p80
      %p208 = pneg %p77
      %p209 = pneg %p106
      %p210 = pneg %p103
      %p211 = scmp.lt.s32.totalorder %s17, 1
      %s212 = scalar_select %p211, %s17, 1
      %s213 = smul.addr %s212, 4
      %s214 = smul.addr %s213, 8
      %s215 = scalar_lea.vmem %s3, %s214
      %p216 = pneg %p132
      %p217 = pneg %p129
      %p218 = scmp.lt.s32.totalorder %s17, 1
      %s219 = scalar_select %p218, %s17, 1
      %s220 = smul.addr %s219, 4
      %s221 = smul.addr %s220, 8
      %s222 = scalar_lea.vmem %s4, %s221
      %p223 = pneg %p158
      %p224 = pneg %p155
      %p225 = scmp.lt.s32.totalorder %s17, 1
      %s226 = scalar_select %p225, %s17, 1
      %s227 = smul.addr %s226, 4
      %s228 = smul.addr %s227, 8
      %s229 = scalar_lea.vmem %s5, %s228
      %p230 = scmp.lt.s32.totalorder %s17, 1
      %s231 = scalar_select %p230, %s17, 1
      %s232 = smul.addr %s231, 8
      %s233 = smul.addr %s232, 8
      %s234 = scalar_lea.vmem %s0, %s233
      %p235 = scmp.lt.s32.totalorder %s17, 1
      %s236 = scalar_select %p235, %s17, 1
      %s237 = smul.addr %s236, 4
      %s238 = smul.addr %s237, 8
      %s239 = scalar_lea.vmem %s3, %s238
      %p240 = scmp.lt.s32.totalorder %s17, 1
      %s241 = scalar_select %p240, %s17, 1
      %s242 = smul.addr %s241, 4
      %s243 = smul.addr %s242, 8
      %s244 = scalar_lea.vmem %s4, %s243
      %p245 = scmp.lt.s32.totalorder %s17, 1
      %s246 = scalar_select %p245, %s17, 1
      %s247 = smul.addr %s246, 4
      %s248 = smul.addr %s247, 8
      %s249 = scalar_lea.vmem %s5, %s248
      %v250 = vld [vmem:[%s234] sm:$0xff]
      %v251 = vld [vmem:[%s234 + $0x8] sm:$0xff]
      %s252 = scalar_lea.vmem %s234, 16
      %v253 = vld [vmem:[%s252] sm:$0xff]
      %v254 = vld [vmem:[%s252 + $0x8] sm:$0xff]
      %v255 = vmax.f32 %v250, %v253
      %v256 = vmax.f32 %v251, %v254
      %v257 = vadd.f32 %v250, %v253
      %v258 = vadd.f32 %v251, %v254
      %s259 = scalar_lea.vmem %s234, 32
      %v260 = vld [vmem:[%s259] sm:$0xff]
      %v261 = vld [vmem:[%s259 + $0x8] sm:$0xff]
      %v262 = vmax.f32 %v255, %v260
      %v263 = vmax.f32 %v256, %v261
      %v264 = vadd.f32 %v257, %v260
      %v265 = vadd.f32 %v258, %v261
      %s266 = scalar_lea.vmem %s234, 48
      %v267 = vld [vmem:[%s266] sm:$0xff]
      %v268 = vld [vmem:[%s266 + $0x8] sm:$0xff]
      %v269 = vmax.f32 %v262, %v267
      %v270 = vmax.f32 %v263, %v268
      %v271 = vadd.f32 %v264, %v267
      %v272 = vadd.f32 %v265, %v268
      %v273 = vmul.f32 %v271, 0.25
      %v274 = vmul.f32 %v272, 0.25
      %275 = vst [vmem:[#allocation2] sm:$0xff] 0.0
      %276 = vst [vmem:[#allocation2 + $0x8] sm:$0xff] 0.0
      %277 = vst [vmem:[#allocation2 + $0x10] sm:$0xff] 0.0
      %278 = vst [vmem:[#allocation2 + $0x18] sm:$0xff] 0.0
      %279 = vst [vmem:[#allocation2 + $0x20] sm:$0xff] 0.0
      %280 = vst [vmem:[#allocation2 + $0x28] sm:$0xff] 0.0
      %281 = vst [vmem:[#allocation2 + $0x30] sm:$0xff] 0.0
      %282 = vst [vmem:[#allocation2 + $0x38] sm:$0xff] 0.0
      %283 = vst [vmem:[#allocation3] sm:$0xff] 0.0
      %284 = vst [vmem:[#allocation3 + $0x8] sm:$0xff] 0.0
      %285 = vst [vmem:[#allocation3 + $0x10] sm:$0xff] 0.0
      %286 = vst [vmem:[#allocation3 + $0x18] sm:$0xff] 0.0
      %287 = vst [vmem:[#allocation3 + $0x20] sm:$0xff] 0.0
      %288 = vst [vmem:[#allocation3 + $0x28] sm:$0xff] 0.0
      %289 = vst [vmem:[#allocation3 + $0x30] sm:$0xff] 0.0
      %290 = vst [vmem:[#allocation3 + $0x38] sm:$0xff] 0.0
      %vm291 = vcmask 130048
      %292 = vst.msk [vmem:[#allocation2 + $0x18] sm:$0xff] %vm291, %v269
      %293 = vst.msk [vmem:[#allocation2 + $0x28] sm:$0xff] %vm291, %v270
      %294 = vst.msk [vmem:[#allocation3 + $0x18] sm:$0xff] %vm291, %v273
      %295 = vst.msk [vmem:[#allocation3 + $0x28] sm:$0xff] %vm291, %v274
      %v296 = vld [vmem:[%s1] sm:$0x3]
      %v297 = vld [vmem:[%s2] sm:$0x3]
      %s299 = vtos %v297
      %v300 = vstv %s299
      %v302 = vadd.f32 %v300, 0.0
      %v303 = vrot.slane %v297, 1
      %s304 = vtos %v303
      %v305 = vstv %s304
      %v307 = vadd.f32 %v305, 0.0
      %v308 = vld [vmem:[#allocation2] sm:$0x80]
      %v309 = vld [vmem:[#allocation2 + $0x8] sm:$0x80]
      %v310 = vld [vmem:[#allocation2 + $0x10] sm:$0xff]
      %v311 = vld [vmem:[#allocation2 + $0x18] sm:$0xff]
      %v312 = vld [vmem:[#allocation2 + $0x20] sm:$0x7f]
      %v313 = vld [vmem:[#allocation2 + $0x28] sm:$0x7f]
      %s315 = vtos %v296
      %v316 = vstv %s315
      %v318 = vmul.f32 %v316, %v308
      %v319 = vmul.f32 %v316, %v309
      %v320 = vmul.f32 %v316, %v310
      %v321 = vmul.f32 %v316, %v311
      %v322 = vmul.f32 %v316, %v312
      %v323 = vmul.f32 %v316, %v313
      %v324 = vadd.f32 %v302, %v318
      %v325 = vadd.f32 %v302, %v319
      %v326 = vadd.f32 %v302, %v320
      %v327 = vadd.f32 %v302, %v321
      %v328 = vadd.f32 %v302, %v322
      %v329 = vadd.f32 %v302, %v323
      %v330 = vrot.slane %v296, 1
      %s331 = vtos %v330
      %v332 = vstv %s331
      %v334 = vmul.f32 %v332, %v308
      %v335 = vmul.f32 %v332, %v309
      %v336 = vmul.f32 %v332, %v310
      %v337 = vmul.f32 %v332, %v311
      %v338 = vmul.f32 %v332, %v312
      %v339 = vmul.f32 %v332, %v313
      %v340 = vadd.f32 %v307, %v334
      %v341 = vadd.f32 %v307, %v335
      %v342 = vadd.f32 %v307, %v336
      %v343 = vadd.f32 %v307, %v337
      %v344 = vadd.f32 %v307, %v338
      %v345 = vadd.f32 %v307, %v339
      %346 = vrot.lane.b32.xlu0 %v296, 127
      %v347 = vpop.permute.xlu0 %346
      %s348 = vtos %v347
      %v349 = vstv %s348
      %v351 = vmul.f32 %v349, %v309
      %v352 = vmul.f32 %v349, %v311
      %v353 = vmul.f32 %v349, %v313
      %357 = vrot.lane.b32.xlu0 %v351, 127
      %v358 = vpop.permute.xlu0 %357
      %359 = vrot.lane.b32.xlu0 %v352, 127
      %v360 = vpop.permute.xlu0 %359
      %361 = vrot.lane.b32.xlu0 %v353, 127
      %v362 = vpop.permute.xlu0 %361
      %v366 = vadd.f32 %v324, %v358
      %v367 = vadd.f32 %v325, %v358
      %v368 = vadd.f32 %v326, %v360
      %v369 = vadd.f32 %v327, %v360
      %v370 = vadd.f32 %v328, %v362
      %v371 = vadd.f32 %v329, %v362
      %372 = vrot.lane.b32.xlu0 %v330, 127
      %v373 = vpop.permute.xlu0 %372
      %s374 = vtos %v373
      %v375 = vstv %s374
      %v377 = vmul.f32 %v375, %v309
      %v378 = vmul.f32 %v375, %v311
      %v379 = vmul.f32 %v375, %v313
      %383 = vrot.lane.b32.xlu0 %v377, 127
      %v384 = vpop.permute.xlu0 %383
      %385 = vrot.lane.b32.xlu0 %v378, 127
      %v386 = vpop.permute.xlu0 %385
      %387 = vrot.lane.b32.xlu0 %v379, 127
      %v388 = vpop.permute.xlu0 %387
      %v392 = vadd.f32 %v340, %v384
      %v393 = vadd.f32 %v341, %v384
      %v394 = vadd.f32 %v342, %v386
      %v395 = vadd.f32 %v343, %v386
      %v396 = vadd.f32 %v344, %v388
      %v397 = vadd.f32 %v345, %v388
      %398 = vrot.lane.b32.xlu0 %v296, 126
      %v399 = vpop.permute.xlu0 %398
      %s400 = vtos %v399
      %v401 = vstv %s400
      %v403 = vmul.f32 %v401, %v309
      %v404 = vmul.f32 %v401, %v311
      %v405 = vmul.f32 %v401, %v313
      %409 = vrot.lane.b32.xlu0 %v403, 126
      %v410 = vpop.permute.xlu0 %409
      %411 = vrot.lane.b32.xlu0 %v404, 126
      %v412 = vpop.permute.xlu0 %411
      %413 = vrot.lane.b32.xlu0 %v405, 126
      %v414 = vpop.permute.xlu0 %413
      %v418 = vadd.f32 %v366, %v410
      %v419 = vadd.f32 %v367, %v410
      %v420 = vadd.f32 %v368, %v412
      %v421 = vadd.f32 %v369, %v412
      %v422 = vadd.f32 %v370, %v414
      %v423 = vadd.f32 %v371, %v414
      %424 = vrot.lane.b32.xlu0 %v330, 126
      %v425 = vpop.permute.xlu0 %424
      %s426 = vtos %v425
      %v427 = vstv %s426
      %v429 = vmul.f32 %v427, %v309
      %v430 = vmul.f32 %v427, %v311
      %v431 = vmul.f32 %v427, %v313
      %435 = vrot.lane.b32.xlu0 %v429, 126
      %v436 = vpop.permute.xlu0 %435
      %437 = vrot.lane.b32.xlu0 %v430, 126
      %v438 = vpop.permute.xlu0 %437
      %439 = vrot.lane.b32.xlu0 %v431, 126
      %v440 = vpop.permute.xlu0 %439
      %v444 = vadd.f32 %v392, %v436
      %v445 = vadd.f32 %v393, %v436
      %v446 = vadd.f32 %v394, %v438
      %v447 = vadd.f32 %v395, %v438
      %v448 = vadd.f32 %v396, %v440
      %v449 = vadd.f32 %v397, %v440
      %v450 = vld [vmem:[#allocation2 + $0x20] sm:$0xff]
      %v451 = vld [vmem:[#allocation2 + $0x28] sm:$0xff]
      %452 = vrot.lane.b32.xlu0 %v296, 125
      %v453 = vpop.permute.xlu0 %452
      %s454 = vtos %v453
      %v455 = vstv %s454
      %v457 = vmul.f32 %v455, %v310
      %v458 = vmul.f32 %v455, %v311
      %v459 = vmul.f32 %v455, %v450
      %v460 = vmul.f32 %v455, %v451
      %vm465 = vcmask 1046528
      %v466 = vrot.slane %v457, 1
      %v467 = vrot.slane %v458, 1
      %v468 = vrot.slane %v459, 1
      %v469 = vsel %vm465, %v466, %v468
      %v470 = vrot.slane %v460, 1
      %v471 = vsel %vm465, %v467, %v470
      %v478 = vadd.f32 %v418, %v466
      %v479 = vadd.f32 %v419, %v467
      %v480 = vadd.f32 %v420, %v469
      %v481 = vadd.f32 %v421, %v471
      %v482 = vadd.f32 %v422, %v468
      %v483 = vadd.f32 %v423, %v470
      %484 = vrot.lane.b32.xlu0 %v330, 125
      %v485 = vpop.permute.xlu0 %484
      %s486 = vtos %v485
      %v487 = vstv %s486
      %v489 = vmul.f32 %v487, %v310
      %v490 = vmul.f32 %v487, %v311
      %v491 = vmul.f32 %v487, %v450
      %v492 = vmul.f32 %v487, %v451
      %v497 = vrot.slane %v489, 1
      %v498 = vrot.slane %v490, 1
      %v499 = vrot.slane %v491, 1
      %v500 = vsel %vm465, %v497, %v499
      %v501 = vrot.slane %v492, 1
      %v502 = vsel %vm465, %v498, %v501
      %v509 = vadd.f32 %v444, %v497
      %v510 = vadd.f32 %v445, %v498
      %v511 = vadd.f32 %v446, %v500
      %v512 = vadd.f32 %v447, %v502
      %v513 = vadd.f32 %v448, %v499
      %v514 = vadd.f32 %v449, %v501
      %515 = vrot.lane.b32.xlu0 %v296, 124
      %v516 = vpop.permute.xlu0 %515
      %s517 = vtos %v516
      %v518 = vstv %s517
      %v520 = vmul.f32 %v518, %v311
      %v521 = vmul.f32 %v518, %v451
      %v524 = vrot.slane %v520, 1
      %v525 = vrot.slane %v521, 1
      %v526 = vsel %vm465, %v524, %v525
      %527 = vrot.lane.b32.xlu0 %v524, 127
      %v528 = vpop.permute.xlu0 %527
      %529 = vrot.lane.b32.xlu0 %v526, 127
      %v530 = vpop.permute.xlu0 %529
      %531 = vrot.lane.b32.xlu0 %v525, 127
      %v532 = vpop.permute.xlu0 %531
      %v536 = vadd.f32 %v478, %v528
      %v537 = vadd.f32 %v479, %v528
      %v538 = vadd.f32 %v480, %v530
      %v539 = vadd.f32 %v481, %v530
      %v540 = vadd.f32 %v482, %v532
      %v541 = vadd.f32 %v483, %v532
      %542 = vrot.lane.b32.xlu0 %v330, 124
      %v543 = vpop.permute.xlu0 %542
      %s544 = vtos %v543
      %v545 = vstv %s544
      %v547 = vmul.f32 %v545, %v311
      %v548 = vmul.f32 %v545, %v451
      %v551 = vrot.slane %v547, 1
      %v552 = vrot.slane %v548, 1
      %v553 = vsel %vm465, %v551, %v552
      %554 = vrot.lane.b32.xlu0 %v551, 127
      %v555 = vpop.permute.xlu0 %554
      %556 = vrot.lane.b32.xlu0 %v553, 127
      %v557 = vpop.permute.xlu0 %556
      %558 = vrot.lane.b32.xlu0 %v552, 127
      %v559 = vpop.permute.xlu0 %558
      %v563 = vadd.f32 %v509, %v555
      %v564 = vadd.f32 %v510, %v555
      %v565 = vadd.f32 %v511, %v557
      %v566 = vadd.f32 %v512, %v557
      %v567 = vadd.f32 %v513, %v559
      %v568 = vadd.f32 %v514, %v559
      %569 = vrot.lane.b32.xlu0 %v296, 123
      %v570 = vpop.permute.xlu0 %569
      %s571 = vtos %v570
      %v572 = vstv %s571
      %v574 = vmul.f32 %v572, %v311
      %v575 = vmul.f32 %v572, %v451
      %v578 = vrot.slane %v574, 1
      %v579 = vrot.slane %v575, 1
      %v580 = vsel %vm465, %v578, %v579
      %581 = vrot.lane.b32.xlu0 %v578, 126
      %v582 = vpop.permute.xlu0 %581
      %583 = vrot.lane.b32.xlu0 %v580, 126
      %v584 = vpop.permute.xlu0 %583
      %585 = vrot.lane.b32.xlu0 %v579, 126
      %v586 = vpop.permute.xlu0 %585
      %v590 = vadd.f32 %v536, %v582
      %v591 = vadd.f32 %v537, %v582
      %v592 = vadd.f32 %v538, %v584
      %v593 = vadd.f32 %v539, %v584
      %v594 = vadd.f32 %v540, %v586
      %v595 = vadd.f32 %v541, %v586
      %596 = vrot.lane.b32.xlu0 %v330, 123
      %v597 = vpop.permute.xlu0 %596
      %s598 = vtos %v597
      %v599 = vstv %s598
      %v601 = vmul.f32 %v599, %v311
      %v602 = vmul.f32 %v599, %v451
      %v605 = vrot.slane %v601, 1
      %v606 = vrot.slane %v602, 1
      %v607 = vsel %vm465, %v605, %v606
      %608 = vrot.lane.b32.xlu0 %v605, 126
      %v609 = vpop.permute.xlu0 %608
      %610 = vrot.lane.b32.xlu0 %v607, 126
      %v611 = vpop.permute.xlu0 %610
      %612 = vrot.lane.b32.xlu0 %v606, 126
      %v613 = vpop.permute.xlu0 %612
      %v617 = vadd.f32 %v563, %v609
      %v618 = vadd.f32 %v564, %v609
      %v619 = vadd.f32 %v565, %v611
      %v620 = vadd.f32 %v566, %v611
      %v621 = vadd.f32 %v567, %v613
      %v622 = vadd.f32 %v568, %v613
      %v623 = vld [vmem:[#allocation2 + $0x10] sm:$0xfe]
      %v624 = vld [vmem:[#allocation2 + $0x18] sm:$0xfe]
      %v625 = vld [vmem:[#allocation2 + $0x20] sm:$0xff]
      %v626 = vld [vmem:[#allocation2 + $0x28] sm:$0xff]
      %v627 = vld [vmem:[#allocation2 + $0x30] sm:$0x1]
      %v628 = vld [vmem:[#allocation2 + $0x38] sm:$0x1]
      %629 = vrot.lane.b32.xlu0 %v296, 122
      %v630 = vpop.permute.xlu0 %629
      %s631 = vtos %v630
      %v632 = vstv %s631
      %v634 = vmul.f32 %v632, %v623
      %v635 = vmul.f32 %v632, %v624
      %v636 = vmul.f32 %v632, %v625
      %v637 = vmul.f32 %v632, %v626
      %v638 = vmul.f32 %v632, %v627
      %v639 = vmul.f32 %v632, %v628
      %vm646 = vcmask 1045504
      %v647 = vrot.slane %v634, 2
      %v648 = vrot.slane %v635, 2
      %v649 = vrot.slane %v636, 2
      %v650 = vsel %vm646, %v647, %v649
      %v651 = vrot.slane %v637, 2
      %v652 = vsel %vm646, %v648, %v651
      %v653 = vrot.slane %v638, 2
      %v654 = vsel %vm646, %v649, %v653
      %v655 = vrot.slane %v639, 2
      %v656 = vsel %vm646, %v651, %v655
      %v663 = vadd.f32 %v590, %v647
      %v664 = vadd.f32 %v591, %v648
      %v665 = vadd.f32 %v592, %v650
      %v666 = vadd.f32 %v593, %v652
      %v667 = vadd.f32 %v594, %v654
      %v668 = vadd.f32 %v595, %v656
      %669 = vrot.lane.b32.xlu0 %v330, 122
      %v670 = vpop.permute.xlu0 %669
      %s671 = vtos %v670
      %v672 = vstv %s671
      %v674 = vmul.f32 %v672, %v623
      %v675 = vmul.f32 %v672, %v624
      %v676 = vmul.f32 %v672, %v625
      %v677 = vmul.f32 %v672, %v626
      %v678 = vmul.f32 %v672, %v627
      %v679 = vmul.f32 %v672, %v628
      %v686 = vrot.slane %v674, 2
      %v687 = vrot.slane %v675, 2
      %v688 = vrot.slane %v676, 2
      %v689 = vsel %vm646, %v686, %v688
      %v690 = vrot.slane %v677, 2
      %v691 = vsel %vm646, %v687, %v690
      %v692 = vrot.slane %v678, 2
      %v693 = vsel %vm646, %v688, %v692
      %v694 = vrot.slane %v679, 2
      %v695 = vsel %vm646, %v690, %v694
      %v702 = vadd.f32 %v617, %v686
      %v703 = vadd.f32 %v618, %v687
      %v704 = vadd.f32 %v619, %v689
      %v705 = vadd.f32 %v620, %v691
      %v706 = vadd.f32 %v621, %v693
      %v707 = vadd.f32 %v622, %v695
      %708 = vrot.lane.b32.xlu0 %v296, 121
      %v709 = vpop.permute.xlu0 %708
      %s710 = vtos %v709
      %v711 = vstv %s710
      %v713 = vmul.f32 %v711, %v624
      %v714 = vmul.f32 %v711, %v626
      %v715 = vmul.f32 %v711, %v628
      %v719 = vrot.slane %v713, 2
      %v720 = vrot.slane %v714, 2
      %v721 = vsel %vm646, %v719, %v720
      %v722 = vrot.slane %v715, 2
      %v723 = vsel %vm646, %v720, %v722
      %724 = vrot.lane.b32.xlu0 %v719, 127
      %v725 = vpop.permute.xlu0 %724
      %726 = vrot.lane.b32.xlu0 %v721, 127
      %v727 = vpop.permute.xlu0 %726
      %728 = vrot.lane.b32.xlu0 %v723, 127
      %v729 = vpop.permute.xlu0 %728
      %v733 = vadd.f32 %v663, %v725
      %v734 = vadd.f32 %v664, %v725
      %v735 = vadd.f32 %v665, %v727
      %v736 = vadd.f32 %v666, %v727
      %v737 = vadd.f32 %v667, %v729
      %v738 = vadd.f32 %v668, %v729
      %739 = vrot.lane.b32.xlu0 %v330, 121
      %v740 = vpop.permute.xlu0 %739
      %s741 = vtos %v740
      %v742 = vstv %s741
      %v744 = vmul.f32 %v742, %v624
      %v745 = vmul.f32 %v742, %v626
      %v746 = vmul.f32 %v742, %v628
      %v750 = vrot.slane %v744, 2
      %v751 = vrot.slane %v745, 2
      %v752 = vsel %vm646, %v750, %v751
      %v753 = vrot.slane %v746, 2
      %v754 = vsel %vm646, %v751, %v753
      %755 = vrot.lane.b32.xlu0 %v750, 127
      %v756 = vpop.permute.xlu0 %755
      %757 = vrot.lane.b32.xlu0 %v752, 127
      %v758 = vpop.permute.xlu0 %757
      %759 = vrot.lane.b32.xlu0 %v754, 127
      %v760 = vpop.permute.xlu0 %759
      %v764 = vadd.f32 %v702, %v756
      %v765 = vadd.f32 %v703, %v756
      %v766 = vadd.f32 %v704, %v758
      %v767 = vadd.f32 %v705, %v758
      %v768 = vadd.f32 %v706, %v760
      %v769 = vadd.f32 %v707, %v760
      %770 = vrot.lane.b32.xlu0 %v296, 120
      %v771 = vpop.permute.xlu0 %770
      %s772 = vtos %v771
      %v773 = vstv %s772
      %v775 = vmul.f32 %v773, %v624
      %v776 = vmul.f32 %v773, %v626
      %v777 = vmul.f32 %v773, %v628
      %v781 = vrot.slane %v775, 2
      %v782 = vrot.slane %v776, 2
      %v783 = vsel %vm646, %v781, %v782
      %v784 = vrot.slane %v777, 2
      %v785 = vsel %vm646, %v782, %v784
      %786 = vrot.lane.b32.xlu0 %v781, 126
      %v787 = vpop.permute.xlu0 %786
      %788 = vrot.lane.b32.xlu0 %v783, 126
      %v789 = vpop.permute.xlu0 %788
      %790 = vrot.lane.b32.xlu0 %v785, 126
      %v791 = vpop.permute.xlu0 %790
      %v795 = vadd.f32 %v733, %v787
      %v796 = vadd.f32 %v734, %v787
      %v797 = vadd.f32 %v735, %v789
      %v798 = vadd.f32 %v736, %v789
      %v799 = vadd.f32 %v737, %v791
      %v800 = vadd.f32 %v738, %v791
      %801 = vrot.lane.b32.xlu0 %v330, 120
      %v802 = vpop.permute.xlu0 %801
      %s803 = vtos %v802
      %v804 = vstv %s803
      %v806 = vmul.f32 %v804, %v624
      %v807 = vmul.f32 %v804, %v626
      %v808 = vmul.f32 %v804, %v628
      %v812 = vrot.slane %v806, 2
      %v813 = vrot.slane %v807, 2
      %v814 = vsel %vm646, %v812, %v813
      %v815 = vrot.slane %v808, 2
      %v816 = vsel %vm646, %v813, %v815
      %817 = vrot.lane.b32.xlu0 %v812, 126
      %v818 = vpop.permute.xlu0 %817
      %819 = vrot.lane.b32.xlu0 %v814, 126
      %v820 = vpop.permute.xlu0 %819
      %821 = vrot.lane.b32.xlu0 %v816, 126
      %v822 = vpop.permute.xlu0 %821
      %v826 = vadd.f32 %v764, %v818
      %v827 = vadd.f32 %v765, %v818
      %v828 = vadd.f32 %v766, %v820
      %v829 = vadd.f32 %v767, %v820
      %v830 = vadd.f32 %v768, %v822
      %v831 = vadd.f32 %v769, %v822
      %v832 = vld [vmem:[#allocation3] sm:$0x80]
      %v833 = vld [vmem:[#allocation3 + $0x8] sm:$0x80]
      %v834 = vld [vmem:[#allocation3 + $0x10] sm:$0xff]
      %v835 = vld [vmem:[#allocation3 + $0x18] sm:$0xff]
      %v836 = vld [vmem:[#allocation3 + $0x20] sm:$0x7f]
      %v837 = vld [vmem:[#allocation3 + $0x28] sm:$0x7f]
      %838 = vrot.lane.b32.xlu0 %v296, 119
      %v839 = vpop.permute.xlu0 %838
      %s840 = vtos %v839
      %v841 = vstv %s840
      %v843 = vmul.f32 %v841, %v832
      %v844 = vmul.f32 %v841, %v833
      %v845 = vmul.f32 %v841, %v834
      %v846 = vmul.f32 %v841, %v835
      %v847 = vmul.f32 %v841, %v836
      %v848 = vmul.f32 %v841, %v837
      %v849 = vadd.f32 %v795, %v843
      %v850 = vadd.f32 %v796, %v844
      %v851 = vadd.f32 %v797, %v845
      %v852 = vadd.f32 %v798, %v846
      %v853 = vadd.f32 %v799, %v847
      %v854 = vadd.f32 %v800, %v848
      %855 = vrot.lane.b32.xlu0 %v330, 119
      %v856 = vpop.permute.xlu0 %855
      %s857 = vtos %v856
      %v858 = vstv %s857
      %v860 = vmul.f32 %v858, %v832
      %v861 = vmul.f32 %v858, %v833
      %v862 = vmul.f32 %v858, %v834
      %v863 = vmul.f32 %v858, %v835
      %v864 = vmul.f32 %v858, %v836
      %v865 = vmul.f32 %v858, %v837
      %v866 = vadd.f32 %v826, %v860
      %v867 = vadd.f32 %v827, %v861
      %v868 = vadd.f32 %v828, %v862
      %v869 = vadd.f32 %v829, %v863
      %v870 = vadd.f32 %v830, %v864
      %v871 = vadd.f32 %v831, %v865
      %872 = vrot.lane.b32.xlu0 %v296, 118
      %v873 = vpop.permute.xlu0 %872
      %s874 = vtos %v873
      %v875 = vstv %s874
      %v877 = vmul.f32 %v875, %v833
      %v878 = vmul.f32 %v875, %v835
      %v879 = vmul.f32 %v875, %v837
      %883 = vrot.lane.b32.xlu0 %v877, 127
      %v884 = vpop.permute.xlu0 %883
      %885 = vrot.lane.b32.xlu0 %v878, 127
      %v886 = vpop.permute.xlu0 %885
      %887 = vrot.lane.b32.xlu0 %v879, 127
      %v888 = vpop.permute.xlu0 %887
      %v892 = vadd.f32 %v849, %v884
      %v893 = vadd.f32 %v850, %v884
      %v894 = vadd.f32 %v851, %v886
      %v895 = vadd.f32 %v852, %v886
      %v896 = vadd.f32 %v853, %v888
      %v897 = vadd.f32 %v854, %v888
      %898 = vrot.lane.b32.xlu0 %v330, 118
      %v899 = vpop.permute.xlu0 %898
      %s900 = vtos %v899
      %v901 = vstv %s900
      %v903 = vmul.f32 %v901, %v833
      %v904 = vmul.f32 %v901, %v835
      %v905 = vmul.f32 %v901, %v837
      %909 = vrot.lane.b32.xlu0 %v903, 127
      %v910 = vpop.permute.xlu0 %909
      %911 = vrot.lane.b32.xlu0 %v904, 127
      %v912 = vpop.permute.xlu0 %911
      %913 = vrot.lane.b32.xlu0 %v905, 127
      %v914 = vpop.permute.xlu0 %913
      %v918 = vadd.f32 %v866, %v910
      %v919 = vadd.f32 %v867, %v910
      %v920 = vadd.f32 %v868, %v912
      %v921 = vadd.f32 %v869, %v912
      %v922 = vadd.f32 %v870, %v914
      %v923 = vadd.f32 %v871, %v914
      %924 = vrot.lane.b32.xlu0 %v296, 117
      %v925 = vpop.permute.xlu0 %924
      %s926 = vtos %v925
      %v927 = vstv %s926
      %v929 = vmul.f32 %v927, %v833
      %v930 = vmul.f32 %v927, %v835
      %v931 = vmul.f32 %v927, %v837
      %935 = vrot.lane.b32.xlu0 %v929, 126
      %v936 = vpop.permute.xlu0 %935
      %937 = vrot.lane.b32.xlu0 %v930, 126
      %v938 = vpop.permute.xlu0 %937
      %939 = vrot.lane.b32.xlu0 %v931, 126
      %v940 = vpop.permute.xlu0 %939
      %v944 = vadd.f32 %v892, %v936
      %v945 = vadd.f32 %v893, %v936
      %v946 = vadd.f32 %v894, %v938
      %v947 = vadd.f32 %v895, %v938
      %v948 = vadd.f32 %v896, %v940
      %v949 = vadd.f32 %v897, %v940
      %950 = vrot.lane.b32.xlu0 %v330, 117
      %v951 = vpop.permute.xlu0 %950
      %s952 = vtos %v951
      %v953 = vstv %s952
      %v955 = vmul.f32 %v953, %v833
      %v956 = vmul.f32 %v953, %v835
      %v957 = vmul.f32 %v953, %v837
      %961 = vrot.lane.b32.xlu0 %v955, 126
      %v962 = vpop.permute.xlu0 %961
      %963 = vrot.lane.b32.xlu0 %v956, 126
      %v964 = vpop.permute.xlu0 %963
      %965 = vrot.lane.b32.xlu0 %v957, 126
      %v966 = vpop.permute.xlu0 %965
      %v970 = vadd.f32 %v918, %v962
      %v971 = vadd.f32 %v919, %v962
      %v972 = vadd.f32 %v920, %v964
      %v973 = vadd.f32 %v921, %v964
      %v974 = vadd.f32 %v922, %v966
      %v975 = vadd.f32 %v923, %v966
      %v976 = vld [vmem:[#allocation3 + $0x20] sm:$0xff]
      %v977 = vld [vmem:[#allocation3 + $0x28] sm:$0xff]
      %978 = vrot.lane.b32.xlu0 %v296, 116
      %v979 = vpop.permute.xlu0 %978
      %s980 = vtos %v979
      %v981 = vstv %s980
      %v983 = vmul.f32 %v981, %v834
      %v984 = vmul.f32 %v981, %v835
      %v985 = vmul.f32 %v981, %v976
      %v986 = vmul.f32 %v981, %v977
      %v991 = vrot.slane %v983, 1
      %v992 = vrot.slane %v984, 1
      %v993 = vrot.slane %v985, 1
      %v994 = vsel %vm465, %v991, %v993
      %v995 = vrot.slane %v986, 1
      %v996 = vsel %vm465, %v992, %v995
      %v1003 = vadd.f32 %v944, %v991
      %v1004 = vadd.f32 %v945, %v992
      %v1005 = vadd.f32 %v946, %v994
      %v1006 = vadd.f32 %v947, %v996
      %v1007 = vadd.f32 %v948, %v993
      %v1008 = vadd.f32 %v949, %v995
      %1009 = vrot.lane.b32.xlu0 %v330, 116
      %v1010 = vpop.permute.xlu0 %1009
      %s1011 = vtos %v1010
      %v1012 = vstv %s1011
      %v1014 = vmul.f32 %v1012, %v834
      %v1015 = vmul.f32 %v1012, %v835
      %v1016 = vmul.f32 %v1012, %v976
      %v1017 = vmul.f32 %v1012, %v977
      %v1022 = vrot.slane %v1014, 1
      %v1023 = vrot.slane %v1015, 1
      %v1024 = vrot.slane %v1016, 1
      %v1025 = vsel %vm465, %v1022, %v1024
      %v1026 = vrot.slane %v1017, 1
      %v1027 = vsel %vm465, %v1023, %v1026
      %v1034 = vadd.f32 %v970, %v1022
      %v1035 = vadd.f32 %v971, %v1023
      %v1036 = vadd.f32 %v972, %v1025
      %v1037 = vadd.f32 %v973, %v1027
      %v1038 = vadd.f32 %v974, %v1024
      %v1039 = vadd.f32 %v975, %v1026
      %1040 = vrot.lane.b32.xlu0 %v296, 115
      %v1041 = vpop.permute.xlu0 %1040
      %s1042 = vtos %v1041
      %v1043 = vstv %s1042
      %v1045 = vmul.f32 %v1043, %v835
      %v1046 = vmul.f32 %v1043, %v977
      %v1049 = vrot.slane %v1045, 1
      %v1050 = vrot.slane %v1046, 1
      %v1051 = vsel %vm465, %v1049, %v1050
      %1052 = vrot.lane.b32.xlu0 %v1049, 127
      %v1053 = vpop.permute.xlu0 %1052
      %1054 = vrot.lane.b32.xlu0 %v1051, 127
      %v1055 = vpop.permute.xlu0 %1054
      %1056 = vrot.lane.b32.xlu0 %v1050, 127
      %v1057 = vpop.permute.xlu0 %1056
      %v1061 = vadd.f32 %v1003, %v1053
      %v1062 = vadd.f32 %v1004, %v1053
      %v1063 = vadd.f32 %v1005, %v1055
      %v1064 = vadd.f32 %v1006, %v1055
      %v1065 = vadd.f32 %v1007, %v1057
      %v1066 = vadd.f32 %v1008, %v1057
      %1067 = vrot.lane.b32.xlu0 %v330, 115
      %v1068 = vpop.permute.xlu0 %1067
      %s1069 = vtos %v1068
      %v1070 = vstv %s1069
      %v1072 = vmul.f32 %v1070, %v835
      %v1073 = vmul.f32 %v1070, %v977
      %v1076 = vrot.slane %v1072, 1
      %v1077 = vrot.slane %v1073, 1
      %v1078 = vsel %vm465, %v1076, %v1077
      %1079 = vrot.lane.b32.xlu0 %v1076, 127
      %v1080 = vpop.permute.xlu0 %1079
      %1081 = vrot.lane.b32.xlu0 %v1078, 127
      %v1082 = vpop.permute.xlu0 %1081
      %1083 = vrot.lane.b32.xlu0 %v1077, 127
      %v1084 = vpop.permute.xlu0 %1083
      %v1088 = vadd.f32 %v1034, %v1080
      %v1089 = vadd.f32 %v1035, %v1080
      %v1090 = vadd.f32 %v1036, %v1082
      %v1091 = vadd.f32 %v1037, %v1082
      %v1092 = vadd.f32 %v1038, %v1084
      %v1093 = vadd.f32 %v1039, %v1084
      %1094 = vrot.lane.b32.xlu0 %v296, 114
      %v1095 = vpop.permute.xlu0 %1094
      %s1096 = vtos %v1095
      %v1097 = vstv %s1096
      %v1099 = vmul.f32 %v1097, %v835
      %v1100 = vmul.f32 %v1097, %v977
      %v1103 = vrot.slane %v1099, 1
      %v1104 = vrot.slane %v1100, 1
      %v1105 = vsel %vm465, %v1103, %v1104
      %1106 = vrot.lane.b32.xlu0 %v1103, 126
      %v1107 = vpop.permute.xlu0 %1106
      %1108 = vrot.lane.b32.xlu0 %v1105, 126
      %v1109 = vpop.permute.xlu0 %1108
      %1110 = vrot.lane.b32.xlu0 %v1104, 126
      %v1111 = vpop.permute.xlu0 %1110
      %v1115 = vadd.f32 %v1061, %v1107
      %v1116 = vadd.f32 %v1062, %v1107
      %v1117 = vadd.f32 %v1063, %v1109
      %v1118 = vadd.f32 %v1064, %v1109
      %v1119 = vadd.f32 %v1065, %v1111
      %v1120 = vadd.f32 %v1066, %v1111
      %1121 = vrot.lane.b32.xlu0 %v330, 114
      %v1122 = vpop.permute.xlu0 %1121
      %s1123 = vtos %v1122
      %v1124 = vstv %s1123
      %v1126 = vmul.f32 %v1124, %v835
      %v1127 = vmul.f32 %v1124, %v977
      %v1130 = vrot.slane %v1126, 1
      %v1131 = vrot.slane %v1127, 1
      %v1132 = vsel %vm465, %v1130, %v1131
      %1133 = vrot.lane.b32.xlu0 %v1130, 126
      %v1134 = vpop.permute.xlu0 %1133
      %1135 = vrot.lane.b32.xlu0 %v1132, 126
      %v1136 = vpop.permute.xlu0 %1135
      %1137 = vrot.lane.b32.xlu0 %v1131, 126
      %v1138 = vpop.permute.xlu0 %1137
      %v1142 = vadd.f32 %v1088, %v1134
      %v1143 = vadd.f32 %v1089, %v1134
      %v1144 = vadd.f32 %v1090, %v1136
      %v1145 = vadd.f32 %v1091, %v1136
      %v1146 = vadd.f32 %v1092, %v1138
      %v1147 = vadd.f32 %v1093, %v1138
      %v1148 = vld [vmem:[#allocation3 + $0x10] sm:$0xfe]
      %v1149 = vld [vmem:[#allocation3 + $0x18] sm:$0xfe]
      %v1150 = vld [vmem:[#allocation3 + $0x20] sm:$0xff]
      %v1151 = vld [vmem:[#allocation3 + $0x28] sm:$0xff]
      %v1152 = vld [vmem:[#allocation3 + $0x30] sm:$0x1]
      %v1153 = vld [vmem:[#allocation3 + $0x38] sm:$0x1]
      %1154 = vrot.lane.b32.xlu0 %v296, 113
      %v1155 = vpop.permute.xlu0 %1154
      %s1156 = vtos %v1155
      %v1157 = vstv %s1156
      %v1159 = vmul.f32 %v1157, %v1148
      %v1160 = vmul.f32 %v1157, %v1149
      %v1161 = vmul.f32 %v1157, %v1150
      %v1162 = vmul.f32 %v1157, %v1151
      %v1163 = vmul.f32 %v1157, %v1152
      %v1164 = vmul.f32 %v1157, %v1153
      %v1171 = vrot.slane %v1159, 2
      %v1172 = vrot.slane %v1160, 2
      %v1173 = vrot.slane %v1161, 2
      %v1174 = vsel %vm646, %v1171, %v1173
      %v1175 = vrot.slane %v1162, 2
      %v1176 = vsel %vm646, %v1172, %v1175
      %v1177 = vrot.slane %v1163, 2
      %v1178 = vsel %vm646, %v1173, %v1177
      %v1179 = vrot.slane %v1164, 2
      %v1180 = vsel %vm646, %v1175, %v1179
      %v1187 = vadd.f32 %v1115, %v1171
      %v1188 = vadd.f32 %v1116, %v1172
      %v1189 = vadd.f32 %v1117, %v1174
      %v1190 = vadd.f32 %v1118, %v1176
      %v1191 = vadd.f32 %v1119, %v1178
      %v1192 = vadd.f32 %v1120, %v1180
      %1193 = vrot.lane.b32.xlu0 %v330, 113
      %v1194 = vpop.permute.xlu0 %1193
      %s1195 = vtos %v1194
      %v1196 = vstv %s1195
      %v1198 = vmul.f32 %v1196, %v1148
      %v1199 = vmul.f32 %v1196, %v1149
      %v1200 = vmul.f32 %v1196, %v1150
      %v1201 = vmul.f32 %v1196, %v1151
      %v1202 = vmul.f32 %v1196, %v1152
      %v1203 = vmul.f32 %v1196, %v1153
      %v1210 = vrot.slane %v1198, 2
      %v1211 = vrot.slane %v1199, 2
      %v1212 = vrot.slane %v1200, 2
      %v1213 = vsel %vm646, %v1210, %v1212
      %v1214 = vrot.slane %v1201, 2
      %v1215 = vsel %vm646, %v1211, %v1214
      %v1216 = vrot.slane %v1202, 2
      %v1217 = vsel %vm646, %v1212, %v1216
      %v1218 = vrot.slane %v1203, 2
      %v1219 = vsel %vm646, %v1214, %v1218
      %v1226 = vadd.f32 %v1142, %v1210
      %v1227 = vadd.f32 %v1143, %v1211
      %v1228 = vadd.f32 %v1144, %v1213
      %v1229 = vadd.f32 %v1145, %v1215
      %v1230 = vadd.f32 %v1146, %v1217
      %v1231 = vadd.f32 %v1147, %v1219
      %1232 = vrot.lane.b32.xlu0 %v296, 112
      %v1233 = vpop.permute.xlu0 %1232
      %s1234 = vtos %v1233
      %v1235 = vstv %s1234
      %v1237 = vmul.f32 %v1235, %v1149
      %v1238 = vmul.f32 %v1235, %v1151
      %v1239 = vmul.f32 %v1235, %v1153
      %v1243 = vrot.slane %v1237, 2
      %v1244 = vrot.slane %v1238, 2
      %v1245 = vsel %vm646, %v1243, %v1244
      %v1246 = vrot.slane %v1239, 2
      %v1247 = vsel %vm646, %v1244, %v1246
      %1248 = vrot.lane.b32.xlu0 %v1243, 127
      %v1249 = vpop.permute.xlu0 %1248
      %1250 = vrot.lane.b32.xlu0 %v1245, 127
      %v1251 = vpop.permute.xlu0 %1250
      %1252 = vrot.lane.b32.xlu0 %v1247, 127
      %v1253 = vpop.permute.xlu0 %1252
      %v1257 = vadd.f32 %v1187, %v1249
      %v1258 = vadd.f32 %v1188, %v1249
      %v1259 = vadd.f32 %v1189, %v1251
      %v1260 = vadd.f32 %v1190, %v1251
      %v1261 = vadd.f32 %v1191, %v1253
      %v1262 = vadd.f32 %v1192, %v1253
      %1263 = vrot.lane.b32.xlu0 %v330, 112
      %v1264 = vpop.permute.xlu0 %1263
      %s1265 = vtos %v1264
      %v1266 = vstv %s1265
      %v1268 = vmul.f32 %v1266, %v1149
      %v1269 = vmul.f32 %v1266, %v1151
      %v1270 = vmul.f32 %v1266, %v1153
      %v1274 = vrot.slane %v1268, 2
      %v1275 = vrot.slane %v1269, 2
      %v1276 = vsel %vm646, %v1274, %v1275
      %v1277 = vrot.slane %v1270, 2
      %v1278 = vsel %vm646, %v1275, %v1277
      %1279 = vrot.lane.b32.xlu0 %v1274, 127
      %v1280 = vpop.permute.xlu0 %1279
      %1281 = vrot.lane.b32.xlu0 %v1276, 127
      %v1282 = vpop.permute.xlu0 %1281
      %1283 = vrot.lane.b32.xlu0 %v1278, 127
      %v1284 = vpop.permute.xlu0 %1283
      %v1288 = vadd.f32 %v1226, %v1280
      %v1289 = vadd.f32 %v1227, %v1280
      %v1290 = vadd.f32 %v1228, %v1282
      %v1291 = vadd.f32 %v1229, %v1282
      %v1292 = vadd.f32 %v1230, %v1284
      %v1293 = vadd.f32 %v1231, %v1284
      %1294 = vrot.lane.b32.xlu0 %v296, 111
      %v1295 = vpop.permute.xlu0 %1294
      %s1296 = vtos %v1295
      %v1297 = vstv %s1296
      %v1299 = vmul.f32 %v1297, %v1149
      %v1300 = vmul.f32 %v1297, %v1151
      %v1301 = vmul.f32 %v1297, %v1153
      %v1305 = vrot.slane %v1299, 2
      %v1306 = vrot.slane %v1300, 2
      %v1307 = vsel %vm646, %v1305, %v1306
      %v1308 = vrot.slane %v1301, 2
      %v1309 = vsel %vm646, %v1306, %v1308
      %1310 = vrot.lane.b32.xlu0 %v1305, 126
      %v1311 = vpop.permute.xlu0 %1310
      %1312 = vrot.lane.b32.xlu0 %v1307, 126
      %v1313 = vpop.permute.xlu0 %1312
      %1314 = vrot.lane.b32.xlu0 %v1309, 126
      %v1315 = vpop.permute.xlu0 %1314
      %v1319 = vadd.f32 %v1257, %v1311
      %v1320 = vadd.f32 %v1258, %v1311
      %v1321 = vadd.f32 %v1259, %v1313
      %v1322 = vadd.f32 %v1260, %v1313
      %v1323 = vadd.f32 %v1261, %v1315
      %v1324 = vadd.f32 %v1262, %v1315
      %1325 = vrot.lane.b32.xlu0 %v330, 111
      %v1326 = vpop.permute.xlu0 %1325
      %s1327 = vtos %v1326
      %v1328 = vstv %s1327
      %v1330 = vmul.f32 %v1328, %v1149
      %v1331 = vmul.f32 %v1328, %v1151
      %v1332 = vmul.f32 %v1328, %v1153
      %v1336 = vrot.slane %v1330, 2
      %v1337 = vrot.slane %v1331, 2
      %v1338 = vsel %vm646, %v1336, %v1337
      %v1339 = vrot.slane %v1332, 2
      %v1340 = vsel %vm646, %v1337, %v1339
      %1341 = vrot.lane.b32.xlu0 %v1336, 126
      %v1342 = vpop.permute.xlu0 %1341
      %1343 = vrot.lane.b32.xlu0 %v1338, 126
      %v1344 = vpop.permute.xlu0 %1343
      %1345 = vrot.lane.b32.xlu0 %v1340, 126
      %v1346 = vpop.permute.xlu0 %1345
      %v1350 = vadd.f32 %v1288, %v1342
      %v1351 = vadd.f32 %v1289, %v1342
      %v1352 = vadd.f32 %v1290, %v1344
      %v1353 = vadd.f32 %v1291, %v1344
      %v1354 = vadd.f32 %v1292, %v1346
      %v1355 = vadd.f32 %v1293, %v1346
      %1362 = vrot.lane.b32.xlu0 %v1319, 1
      %v1363 = vpop.permute.xlu0 %1362
      %1364 = vrot.lane.b32.xlu0 %v1320, 1
      %v1365 = vpop.permute.xlu0 %1364
      %1366 = vrot.lane.b32.xlu0 %v1321, 1
      %v1367 = vpop.permute.xlu0 %1366
      %1368 = vrot.lane.b32.xlu0 %v1322, 1
      %v1369 = vpop.permute.xlu0 %1368
      %1370 = vrot.lane.b32.xlu0 %v1323, 1
      %v1371 = vpop.permute.xlu0 %1370
      %1372 = vrot.lane.b32.xlu0 %v1324, 1
      %v1373 = vpop.permute.xlu0 %1372
      %vm1374 = vcmask 7168
      %v1375 = vsel %vm1374, %v1363, %v1365
      %v1376 = vsel %vm1374, %v1367, %v1369
      %v1377 = vsel %vm1374, %v1371, %v1373
      %vm1381 = vcmask 130055
      %1382 = vst.msk [vmem:[%s239 - $0x7] sm:$0x80] %vm1381, %v1375
      %1383 = vst.msk [vmem:[%s239 + $0x1] sm:$0xff] %vm291, %v1376
      %vm1384 = vcmask 129024
      %1385 = vst.msk [vmem:[%s239 + $0x9] sm:$0x7f] %vm1384, %v1377
      %1392 = vrot.lane.b32.xlu0 %v1350, 1
      %v1393 = vpop.permute.xlu0 %1392
      %1394 = vrot.lane.b32.xlu0 %v1351, 1
      %v1395 = vpop.permute.xlu0 %1394
      %1396 = vrot.lane.b32.xlu0 %v1352, 1
      %v1397 = vpop.permute.xlu0 %1396
      %1398 = vrot.lane.b32.xlu0 %v1353, 1
      %v1399 = vpop.permute.xlu0 %1398
      %1400 = vrot.lane.b32.xlu0 %v1354, 1
      %v1401 = vpop.permute.xlu0 %1400
      %1402 = vrot.lane.b32.xlu0 %v1355, 1
      %v1403 = vpop.permute.xlu0 %1402
      %v1404 = vsel %vm1374, %v1393, %v1395
      %v1405 = vsel %vm1374, %v1397, %v1399
      %v1406 = vsel %vm1374, %v1401, %v1403
      %s1410 = scalar_lea.vmem %s239, 16
      %1411 = vst.msk [vmem:[%s1410 - $0x7] sm:$0x80] %vm1381, %v1404
      %1412 = vst.msk [vmem:[%s1410 + $0x1] sm:$0xff] %vm291, %v1405
      %1413 = vst.msk [vmem:[%s1410 + $0x9] sm:$0x7f] %vm1384, %v1406
      %v1414 = vsel %vm1381, %v1375, 0.0
      %1415 = vadd.xlane.f32.xlu0 %v1414
      %v1416 = vpop.xlane.xlu0 %1415
      %v1417 = vsel %vm291, %v1376, 0.0
      %1418 = vadd.xlane.f32.xlu0 %v1417
      %v1419 = vpop.xlane.xlu0 %1418
      %v1420 = vsel %vm1384, %v1377, 0.0
      %1421 = vadd.xlane.f32.xlu0 %v1420
      %v1422 = vpop.xlane.xlu0 %1421
      %vm1423 = vcmask 7175
      %1424 = vst.msk [vmem:[%s244 - $0x7] sm:$0x80] %vm1423, %v1416
      %1425 = vst.msk [vmem:[%s244 + $0x1] sm:$0xff] %vm1374, %v1419
      %vm1426 = vcmask 6144
      %1427 = vst.msk [vmem:[%s244 + $0x9] sm:$0x7f] %vm1426, %v1422
      %v1428 = vsel %vm1381, %v1404, 0.0
      %1429 = vadd.xlane.f32.xlu0 %v1428
      %v1430 = vpop.xlane.xlu0 %1429
      %v1431 = vsel %vm291, %v1405, 0.0
      %1432 = vadd.xlane.f32.xlu0 %v1431
      %v1433 = vpop.xlane.xlu0 %1432
      %v1434 = vsel %vm1384, %v1406, 0.0
      %1435 = vadd.xlane.f32.xlu0 %v1434
      %v1436 = vpop.xlane.xlu0 %1435
      %s1437 = scalar_lea.vmem %s244, 16
      %1438 = vst.msk [vmem:[%s1437 - $0x7] sm:$0x80] %vm1423, %v1430
      %1439 = vst.msk [vmem:[%s1437 + $0x1] sm:$0xff] %vm1374, %v1433
      %1440 = vst.msk [vmem:[%s1437 + $0x9] sm:$0x7f] %vm1426, %v1436
      %v1441 = vmul.f32 %v1319, %v1319
      %v1442 = vmul.f32 %v1320, %v1320
      %v1443 = vmul.f32 %v1321, %v1321
      %v1444 = vmul.f32 %v1322, %v1322
      %v1445 = vmul.f32 %v1323, %v1323
      %v1446 = vmul.f32 %v1324, %v1324
      %1453 = vrot.lane.b32.xlu0 %v1441, 1
      %v1454 = vpop.permute.xlu0 %1453
      %1455 = vrot.lane.b32.xlu0 %v1442, 1
      %v1456 = vpop.permute.xlu0 %1455
      %1457 = vrot.lane.b32.xlu0 %v1443, 1
      %v1458 = vpop.permute.xlu0 %1457
      %1459 = vrot.lane.b32.xlu0 %v1444, 1
      %v1460 = vpop.permute.xlu0 %1459
      %1461 = vrot.lane.b32.xlu0 %v1445, 1
      %v1462 = vpop.permute.xlu0 %1461
      %1463 = vrot.lane.b32.xlu0 %v1446, 1
      %v1464 = vpop.permute.xlu0 %1463
      %v1465 = vsel %vm1374, %v1454, %v1456
      %v1466 = vsel %vm1374, %v1458, %v1460
      %v1467 = vsel %vm1374, %v1462, %v1464
      %v1471 = vsel %vm1381, %v1465, 0.0
      %1472 = vadd.xlane.f32.xlu0 %v1471
      %v1473 = vpop.xlane.xlu0 %1472
      %v1474 = vsel %vm291, %v1466, 0.0
      %1475 = vadd.xlane.f32.xlu0 %v1474
      %v1476 = vpop.xlane.xlu0 %1475
      %v1477 = vsel %vm1384, %v1467, 0.0
      %1478 = vadd.xlane.f32.xlu0 %v1477
      %v1479 = vpop.xlane.xlu0 %1478
      %1480 = vst.msk [vmem:[%s249 - $0x7] sm:$0x80] %vm1423, %v1473
      %1481 = vst.msk [vmem:[%s249 + $0x1] sm:$0xff] %vm1374, %v1476
      %1482 = vst.msk [vmem:[%s249 + $0x9] sm:$0x7f] %vm1426, %v1479
      %v1483 = vmul.f32 %v1350, %v1350
      %v1484 = vmul.f32 %v1351, %v1351
      %v1485 = vmul.f32 %v1352, %v1352
      %v1486 = vmul.f32 %v1353, %v1353
      %v1487 = vmul.f32 %v1354, %v1354
      %v1488 = vmul.f32 %v1355, %v1355
      %1495 = vrot.lane.b32.xlu0 %v1483, 1
      %v1496 = vpop.permute.xlu0 %1495
      %1497 = vrot.lane.b32.xlu0 %v1484, 1
      %v1498 = vpop.permute.xlu0 %1497
      %1499 = vrot.lane.b32.xlu0 %v1485, 1
      %v1500 = vpop.permute.xlu0 %1499
      %1501 = vrot.lane.b32.xlu0 %v1486, 1
      %v1502 = vpop.permute.xlu0 %1501
      %1503 = vrot.lane.b32.xlu0 %v1487, 1
      %v1504 = vpop.permute.xlu0 %1503
      %1505 = vrot.lane.b32.xlu0 %v1488, 1
      %v1506 = vpop.permute.xlu0 %1505
      %v1507 = vsel %vm1374, %v1496, %v1498
      %v1508 = vsel %vm1374, %v1500, %v1502
      %v1509 = vsel %vm1374, %v1504, %v1506
      %v1513 = vsel %vm1381, %v1507, 0.0
      %1514 = vadd.xlane.f32.xlu0 %v1513
      %v1515 = vpop.xlane.xlu0 %1514
      %v1516 = vsel %vm291, %v1508, 0.0
      %1517 = vadd.xlane.f32.xlu0 %v1516
      %v1518 = vpop.xlane.xlu0 %1517
      %v1519 = vsel %vm1384, %v1509, 0.0
      %1520 = vadd.xlane.f32.xlu0 %v1519
      %v1521 = vpop.xlane.xlu0 %1520
      %s1522 = scalar_lea.vmem %s249, 16
      %1523 = vst.msk [vmem:[%s1522 - $0x7] sm:$0x80] %vm1423, %v1515
      %1524 = vst.msk [vmem:[%s1522 + $0x1] sm:$0xff] %vm1374, %v1518
      %1525 = vst.msk [vmem:[%s1522 + $0x9] sm:$0x7f] %vm1426, %v1521
      %p1526 = scmp.lt.s32.totalorder %s17, 1
      %s1527 = scalar_select %p1526, %s17, 1
      %s1528 = smul.addr %s1527, 4
      %s1529 = smul.addr %s1528, 8
      %s1530 = scalar_lea.vmem %s3, %s1529
      %p1531 = scmp.lt.s32.totalorder %s17, 1
      %s1532 = scalar_select %p1531, %s17, 1
      %s1533 = smul.addr %s1532, 4
      %s1534 = smul.addr %s1533, 8
      %s1535 = scalar_lea.vmem %s4, %s1534
      %p1536 = scmp.lt.s32.totalorder %s17, 1
      %s1537 = scalar_select %p1536, %s17, 1
      %s1538 = smul.addr %s1537, 4
      %s1539 = smul.addr %s1538, 8
      %s1540 = scalar_lea.vmem %s5, %s1539
      // Predicated region
      $region33: #{_lambda_.20} parent=31 // pred_check
        %p1541 = pneg %p103
      $region34: #{_lambda_.20} parent=31 // pred_check_branch
        %1543 = sbr.rel (%p1541) target = $region36
      $region35: #{_lambda_.20} parent=31 // pred_region
        _
      $region36: #{_lambda_.20} parent=31 // pred_fallthru
        _
      // Predicated region
      $region37: #{_lambda_.20} parent=31 // pred_check
        %p1544 = pneg %p129
      $region38: #{_lambda_.20} parent=31 // pred_check_branch
        %1546 = sbr.rel (%p1544) target = $region40
      $region39: #{_lambda_.20} parent=31 // pred_region
        _
      $region40: #{_lambda_.20} parent=31 // pred_fallthru
        _
      // Predicated region
      $region41: #{_lambda_.20} parent=31 // pred_check
        %p1547 = pneg %p155
      $region42: #{_lambda_.20} parent=31 // pred_check_branch
        %1549 = sbr.rel (%p1547) target = $region44
      $region43: #{_lambda_.20} parent=31 // pred_region
        _
      $region44: #{_lambda_.20} parent=31 // pred_fallthru
        _
    $region32: #{_lambda_.20} parent=5 // pred_fallthru
      _
    %p1550 = scmp.le.s32.totalorder 2, %s12
    // Predicated region
    $region45: #{_lambda_.20} parent=5 // pred_check
      %p1551 = pneg %p1550
    $region46: #{_lambda_.20} parent=5 // pred_check_branch
      %1553 = sbr.rel (%p1551) target = $region48
    $region47: #{_lambda_.20} parent=5 // pred_region
      %s1554 = ssub.s32 %s12, 2
      // Predicated region
      $region49: #{_lambda_.20} parent=47 // pred_check
        %p1555 = pneg %p109
      $region50: #{_lambda_.20} parent=47 // pred_check_branch
        %1557 = sbr.rel (%p1555) target = $region52
      $region51: #{_lambda_.20} parent=47 // pred_region
        %p1558 = scmp.lt.s32.totalorder %s18, 1
        %s1559 = scalar_select %p1558, %s18, 1
        %s1560 = smul.addr %s1559, 4
        %s1561 = smul.addr %s1560, 8
        %s1562 = scalar_lea.vmem %s3, %s1561
      $region52: #{_lambda_.20} parent=47 // pred_fallthru
        _
      // Predicated region
      $region53: #{_lambda_.20} parent=47 // pred_check
        %p1563 = pneg %p135
      $region54: #{_lambda_.20} parent=47 // pred_check_branch
        %1565 = sbr.rel (%p1563) target = $region56
      $region55: #{_lambda_.20} parent=47 // pred_region
        %p1566 = scmp.lt.s32.totalorder %s18, 1
        %s1567 = scalar_select %p1566, %s18, 1
        %s1568 = smul.addr %s1567, 4
        %s1569 = smul.addr %s1568, 8
        %s1570 = scalar_lea.vmem %s4, %s1569
      $region56: #{_lambda_.20} parent=47 // pred_fallthru
        _
      // Predicated region
      $region57: #{_lambda_.20} parent=47 // pred_check
        %p1571 = pneg %p161
      $region58: #{_lambda_.20} parent=47 // pred_check_branch
        %1573 = sbr.rel (%p1571) target = $region60
      $region59: #{_lambda_.20} parent=47 // pred_region
        %p1574 = scmp.lt.s32.totalorder %s18, 1
        %s1575 = scalar_select %p1574, %s18, 1
        %s1576 = smul.addr %s1575, 4
        %s1577 = smul.addr %s1576, 8
        %s1578 = scalar_lea.vmem %s5, %s1577
      $region60: #{_lambda_.20} parent=47 // pred_fallthru
        _
    $region48: #{_lambda_.20} parent=5 // pred_fallthru
      _
  $region6: #{_lambda_.20} parent=0 // loop_footer
    %s16 = sadd.s32 1, %s12
  $region7: #{_lambda_.20} parent=0 // loop_footer_branch
    %11 = sbr.rel target = $region3
  $region8: #{_lambda_.20} parent=0 // loop_exit
    _

</llo_original>
